<compile_context>
chip_gen: v6e
topology: v6e:2x2x1
jax: 0.10.0
libtpu: 0.0.40
codegen_flags: <defaults>
</compile_context>

<pallas_src>
import functools

import numpy as np
import jax
import jax.numpy as jnp
from jax import lax
from jax.experimental import pallas as pl
from jax.experimental.pallas import tpu as pltpu


# ----------------------------- fused Pallas kernel --------------------------

def _fcn_kernel(x_ref, w1_ref, b1_ref, w2_ref, b2_ref, u1_ref,
                w3_ref, b3_ref, u2t_ref, w4t_ref, b4_ref,
                o_ref,
                pb1, s1, pb2, s2, p2s, pb3,
                *, H, W, C_IN, C1, C2):
    """One batch image end-to-end, everything resident in VMEM.

    x_ref  : (H, W, C_IN)  f32  unpadded NHWC input tile
    wN_ref : (9, cin, cout) bf16 per-tap conv weights (unpadded)
    bN_ref : (1, cout)      f32  biases
    u1_ref : (hh*wh, hq*wq) bf16 kron bilinear 2x upsample matrix
    u2t_ref: (hh*wh, H*W)   bf16 transposed kron upsample matrix
    w4t_ref: (cout, c3)     bf16 1x1 conv weights (transposed)
    b4_ref : (cout, 1)      f32
    o_ref  : (cout, H*W)    f32  lane-dense output slab
    pb*    : zero-bordered conv-input scratch (f32)
    s1/s2  : conv output scratch for vectorized pooling (f32)
    p2s    : (hq*wq, C2)    flattened encoder output scratch (f32)
    """
    f32 = jnp.float32
    bf16 = jnp.bfloat16
    hh, wh = H // 2, W // 2
    hq, wq = H // 4, W // 4

    def zero_border(pb, h, w, c):
        # Only the 1-pixel border ring (4 thin slabs); interior is fully
        # overwritten every grid step, so no full-buffer clear.
        pb[0:1, :, :] = jnp.zeros((1, w + 2, c), f32)
        pb[h + 1:h + 2, :, :] = jnp.zeros((1, w + 2, c), f32)
        pb[:, 0:1, :] = jnp.zeros((h + 2, 1, c), f32)
        pb[:, w + 1:w + 2, :] = jnp.zeros((h + 2, 1, c), f32)

    def conv3x3_relu(pb, w_r, b_r, h, w, cin):
        """3x3 'same' conv + bias + ReLU.

        Only 3 dx-shifted columns are materialized (strided reads); the 3 dy
        taps of each column are free leading-dim slices + lane-preserving
        reshapes (w and w//2 are multiples of 8 at the supported sizes).
        bf16 operands feed the MXU; accumulation is f32.
        """
        acc = None
        for dx in range(3):
            col = pb[:, dx:dx + w, :].astype(bf16)          # (h+2, w, cin)
            for dy in range(3):
                tap = col[dy:dy + h].reshape(h * w, cin)     # free slice+reshape
                d = jnp.dot(tap, w_r[3 * dy + dx],
                            preferred_element_type=f32)
                acc = d if acc is None else acc + d
        return jnp.maximum(acc + b_r[...], 0.0)              # (h*w, cout) f32

    def maxpool2x2(s, h, w):
        # Vectorized 2x2 max pool: 4 strided reads + 3 elementwise maxima.
        a = s[pl.ds(0, h // 2, 2), pl.ds(0, w // 2, 2), :]
        b = s[pl.ds(0, h // 2, 2), pl.ds(1, w // 2, 2), :]
        c = s[pl.ds(1, h // 2, 2), pl.ds(0, w // 2, 2), :]
        d = s[pl.ds(1, h // 2, 2), pl.ds(1, w // 2, 2), :]
        return jnp.maximum(jnp.maximum(a, b), jnp.maximum(c, d))

    # ---- encoder stage 1: conv1 (cin->16) + ReLU, vectorized 2x2 max-pool ----
    zero_border(pb1, H, W, C_IN)
    pb1[1:1 + H, 1:1 + W, :] = x_ref[...]
    h1 = conv3x3_relu(pb1, w1_ref, b1_ref, H, W, C_IN)        # (H*W, C1) f32
    s1[...] = h1.reshape(H, W, C1)

    zero_border(pb2, hh, wh, C1)
    pb2[1:1 + hh, 1:1 + wh, :] = maxpool2x2(s1, H, W)          # one bulk store

    # ---- encoder stage 2: conv2 (16->32) + ReLU, vectorized 2x2 max-pool ----
    h2 = conv3x3_relu(pb2, w2_ref, b2_ref, hh, wh, C1)         # (hh*wh, C2) f32
    s2[...] = h2.reshape(hh, wh, C2)
    p2 = maxpool2x2(s2, hh, wh)                                # (hq, wq, C2)
    for py in range(hq):                                       # tiny flatten (hq rows)
        p2s[py * wq:(py + 1) * wq, :] = p2[py]

    # ---- decoder stage 1: bilinear x2 upsample (matmul) + conv3 + ReLU ------
    up1 = jnp.dot(u1_ref[...], p2s[...].astype(bf16),
                  preferred_element_type=f32)                  # (hh*wh, C2) f32
    zero_border(pb3, hh, wh, C2)
    pb3[1:1 + hh, 1:1 + wh, :] = up1.reshape(hh, wh, C2)
    h3 = conv3x3_relu(pb3, w3_ref, b3_ref, hh, wh, C2)         # (hh*wh, C3) f32

    # ---- decoder stage 2: bilinear x2 upsample + 1x1 conv, channel-major ----
    # Contract h3's spatial (leading) dim against u2^T directly so the result
    # is (C3, H*W) and the final store is lane-dense (lanes carry H*W).
    up2_t = lax.dot_general(h3.astype(bf16), u2t_ref[...],
                            dimension_numbers=(((0,), (0,)), ((), ())),
                            preferred_element_type=f32)        # (C3, H*W) f32
    out_t = jnp.dot(w4t_ref[...], up2_t.astype(bf16),
                    preferred_element_type=f32) + b4_ref[...]  # (cout, H*W) f32
    o_ref[...] = out_t.astype(o_ref.dtype)                     # lane-dense store


# ----------------------------- packing helpers (XLA glue, tiny) -------------

def _pack_conv3x3(w):
    """Torch (cout, cin, 3, 3) -> (9, cin, cout) bf16 per-tap matrices (unpadded)."""
    cout, cin = w.shape[0], w.shape[1]
    taps = jnp.transpose(w.astype(jnp.float32), (2, 3, 1, 0)).reshape(9, cin, cout)
    return taps.astype(jnp.bfloat16)


def _pack_bias_row(b):
    return b.astype(jnp.float32).reshape(1, -1)


def _bilinear_axis_matrix(nin, nout):
    """PyTorch Upsample(bilinear, align_corners=True) along one axis."""
    m = np.zeros((nout, nin), np.float64)
    if nout == 1:
        m[0, 0] = 1.0
        return m.astype(np.float32)
    for o in range(nout):
        src = o * (nin - 1) / (nout - 1)
        i0 = min(int(np.floor(src)), nin - 1)
        i1 = min(i0 + 1, nin - 1)
        f = src - i0
        m[o, i0] += 1.0 - f
        m[o, i1] += f
    return m.astype(np.float32)


def _upsample2_matrix(h, w):
    """(2h*2w, h*w) separable bilinear 2x upsample matrix (align_corners)."""
    return np.kron(_bilinear_axis_matrix(h, 2 * h), _bilinear_axis_matrix(w, 2 * w))


# ----------------------------- forward pass ---------------------------------

@jax.jit
def simple_fcn_forward(x_nchw, params):
    n, cin, h, w = x_nchw.shape
    c1 = params["w1"].shape[0]
    c2 = params["w2"].shape[0]
    c3 = params["w3"].shape[0]
    cout = params["w4"].shape[0]
    assert h % 4 == 0 and w % 4 == 0, "two 2x2 max-pools require H, W % 4 == 0"
    hh, wh, hq, wq = h // 2, w // 2, h // 4, w // 4

    # Unpadded NHWC input in HBM (no 128-lane padding on HBM-facing tensors).
    x = jnp.transpose(x_nchw, (0, 2, 3, 1)).astype(jnp.float32)

    w1 = _pack_conv3x3(params["w1"]); b1 = _pack_bias_row(params["b1"])
    w2 = _pack_conv3x3(params["w2"]); b2 = _pack_bias_row(params["b2"])
    w3 = _pack_conv3x3(params["w3"]); b3 = _pack_bias_row(params["b3"])
    w4t = params["w4"][:, :, 0, 0].astype(jnp.bfloat16)            # (cout, c3)
    b4 = params["b4"].astype(jnp.float32).reshape(cout, 1)

    u1 = jnp.asarray(_upsample2_matrix(hq, wq), jnp.bfloat16)      # (hh*wh, hq*wq)
    u2t = jnp.asarray(_upsample2_matrix(hh, wh).T, jnp.bfloat16)   # (hh*wh, h*w)

    kernel = functools.partial(_fcn_kernel, H=h, W=w, C_IN=cin, C1=c1, C2=c2)

    out_t = pl.pallas_call(
        kernel,
        out_shape=jax.ShapeDtypeStruct((n, cout, h * w), jnp.float32),
        grid=(n,),
        in_specs=[
            pl.BlockSpec((None, h, w, cin), lambda i: (i, 0, 0, 0)),
            pl.BlockSpec((9, cin, c1), lambda i: (0, 0, 0)),
            pl.BlockSpec((1, c1), lambda i: (0, 0)),
            pl.BlockSpec((9, c1, c2), lambda i: (0, 0, 0)),
            pl.BlockSpec((1, c2), lambda i: (0, 0)),
            pl.BlockSpec((hh * wh, hq * wq), lambda i: (0, 0)),
            pl.BlockSpec((9, c2, c3), lambda i: (0, 0, 0)),
            pl.BlockSpec((1, c3), lambda i: (0, 0)),
            pl.BlockSpec((hh * wh, h * w), lambda i: (0, 0)),
            pl.BlockSpec((cout, c3), lambda i: (0, 0)),
            pl.BlockSpec((cout, 1), lambda i: (0, 0)),
        ],
        out_specs=pl.BlockSpec((None, cout, h * w), lambda i: (i, 0, 0)),
        scratch_shapes=[
            pltpu.VMEM((h + 2, w + 2, cin), jnp.float32),    # pb1: conv1 padded input
            pltpu.VMEM((h, w, c1), jnp.float32),             # s1 : conv1 out (for pool)
            pltpu.VMEM((hh + 2, wh + 2, c1), jnp.float32),   # pb2: conv2 padded input
            pltpu.VMEM((hh, wh, c2), jnp.float32),           # s2 : conv2 out (for pool)
            pltpu.VMEM((hq * wq, c2), jnp.float32),          # p2s: flattened encoder out
            pltpu.VMEM((hh + 2, wh + 2, c2), jnp.float32),   # pb3: conv3 padded input
        ],
        compiler_params=pltpu.CompilerParams(
            dimension_semantics=("parallel",)),   # v7x: one image per TensorCore
    )(x, w1, b1, w2, b2, u1, w3, b3, u2t, w4t, b4)

    # (n, cout, h*w) -> NCHW is a pure reshape (no XLA transpose / extra copy).
    return out_t.reshape(n, cout, h, w)


# ----------------------------- pure-JAX reference (correctness check) -------

@jax.jit
def _reference_forward(x_nchw, params):
    def conv3x3(x, w, b, relu):
        nb, hh, ww, cin = x.shape
        cout = w.shape[0]
        xp = jnp.pad(x, ((0, 0), (1, 1), (1, 1), (0, 0)))
        taps = [xp[:, dy:dy + hh, dx:dx + ww, :]
                for dy in range(3) for dx in range(3)]
        patches = jnp.stack(taps, axis=3).reshape(nb * hh * ww, 9 * cin)
        w_mat = jnp.transpose(w, (2, 3, 1, 0)).reshape(9 * cin, cout)
        out = patches @ w_mat + b
        if relu:
            out = jnp.maximum(out, 0.0)
        return out.reshape(nb, hh, ww, cout)

    def conv1x1(x, w, b):
        nb, hh, ww, cin = x.shape
        cout = w.shape[0]
        w_mat = jnp.transpose(w, (2, 3, 1, 0)).reshape(cin, cout)
        return (x.reshape(nb * hh * ww, cin) @ w_mat + b).reshape(nb, hh, ww, cout)

    def maxpool2(x):
        return jnp.maximum(
            jnp.maximum(x[:, 0::2, 0::2, :], x[:, 0::2, 1::2, :]),
            jnp.maximum(x[:, 1::2, 0::2, :], x[:, 1::2, 1::2, :]))

    def upsample2(x):
        nb, hh, ww, c = x.shape
        ho, wo = 2 * hh, 2 * ww

        def coords(nin, nout):
            o = jnp.arange(nout, dtype=jnp.float32)
            src = o * (nin - 1) / (nout - 1)
            i0 = jnp.clip(jnp.floor(src).astype(jnp.int32), 0, nin - 1)
            i1 = jnp.clip(i0 + 1, 0, nin - 1)
            return i0, i1, src - i0.astype(jnp.float32)

        iy0, iy1, fy = coords(hh, ho)
        ix0, ix1, fx = coords(ww, wo)
        top, bot = jnp.take(x, iy0, axis=1), jnp.take(x, iy1, axis=1)
        v00, v01 = jnp.take(top, ix0, axis=2), jnp.take(top, ix1, axis=2)
        v10, v11 = jnp.take(bot, ix0, axis=2), jnp.take(bot, ix1, axis=2)
        wy = fy[None, :, None, None]
        wx = fx[None, None, :, None]
        return ((1 - wy) * (1 - wx) * v00 + (1 - wy) * wx * v01
                + wy * (1 - wx) * v10 + wy * wx * v11)

    x = jnp.transpose(x_nchw, (0, 2, 3, 1)).astype(jnp.float32)
    x = conv3x3(x, params["w1"], params["b1"], True)
    x = maxpool2(x)
    x = conv3x3(x, params["w2"], params["b2"], True)
    x = maxpool2(x)
    x = upsample2(x)
    x = conv3x3(x, params["w3"], params["b3"], True)
    x = upsample2(x)
    x = conv1x1(x, params["w4"], params["b4"])
    return jnp.transpose(x, (0, 3, 1, 2))


# ----------------------------- params + main --------------------------------

def init_params(key, in_channels=3, out_channels=4):
    ks = jax.random.split(key, 8)

    def w_init(k, shape):
        fan_in = shape[1] * shape[2] * shape[3]
        return (jax.random.normal(k, shape, jnp.float32)
                * (1.0 / jnp.sqrt(fan_in)))

    def b_init(k, n):
        return 0.01 * jax.random.normal(k, (n,), jnp.float32)

    return {
        "w1": w_init(ks[0], (16, in_channels, 3, 3)), "b1": b_init(ks[1], 16),
        "w2": w_init(ks[2], (32, 16, 3, 3)),          "b2": b_init(ks[3], 32),
        "w3": w_init(ks[4], (16, 32, 3, 3)),          "b3": b_init(ks[5], 16),
        "w4": w_init(ks[6], (out_channels, 16, 1, 1)),
        "b4": b_init(ks[7], out_channels),
    }


if __name__ == "__main__":
    key = jax.random.PRNGKey(0)
    k_x, k_p = jax.random.split(key)
    x = jax.random.normal(k_x, (2, 3, 16, 16), jnp.float32)   # NCHW input
    params = init_params(k_p, in_channels=3, out_channels=4)

    out = jax.block_until_ready(simple_fcn_forward(x, params))

    assert out.shape == (2, 4, 16, 16), out.shape
    assert out.dtype == jnp.float32
    assert bool(jnp.all(jnp.isfinite(out)))

    ref = jax.block_until_ready(_reference_forward(x, params))
    err = float(jnp.max(jnp.abs(out - ref)))
    # bf16 MXU operands (f32 accumulation) vs a pure-f32 reference.
    assert err < 1e-1, f"max abs err vs f32 reference: {err}"

    print("KERNEL_OK")
</pallas_src>

<mosaic_0001>
module attributes {stable_mosaic.version = 11 : i64} {
  func.func @_fcn_kernel(%arg0: i32, %arg1: memref<1x16x16x3xf32, #tpu.memory_space<vmem>>, %arg2: memref<9x3x16xbf16, #tpu.memory_space<vmem>>, %arg3: memref<1x16xf32, #tpu.memory_space<vmem>>, %arg4: memref<9x16x32xbf16, #tpu.memory_space<vmem>>, %arg5: memref<1x32xf32, #tpu.memory_space<vmem>>, %arg6: memref<64x16xbf16, #tpu.memory_space<vmem>>, %arg7: memref<9x32x16xbf16, #tpu.memory_space<vmem>>, %arg8: memref<1x16xf32, #tpu.memory_space<vmem>>, %arg9: memref<64x256xbf16, #tpu.memory_space<vmem>>, %arg10: memref<4x16xbf16, #tpu.memory_space<vmem>>, %arg11: memref<4x1xf32, #tpu.memory_space<vmem>>, %arg12: memref<1x4x256xf32, #tpu.memory_space<vmem>>, %arg13: memref<18x18x3xf32, #tpu.memory_space<vmem>>, %arg14: memref<16x16x16xf32, #tpu.memory_space<vmem>>, %arg15: memref<10x10x16xf32, #tpu.memory_space<vmem>>, %arg16: memref<8x8x32xf32, #tpu.memory_space<vmem>>, %arg17: memref<16x32xf32, #tpu.memory_space<vmem>>, %arg18: memref<10x10x32xf32, #tpu.memory_space<vmem>>) attributes {dimension_semantics = [#tpu.dimension_semantics<parallel>], iteration_bounds = array<i64: 2>, scalar_prefetch = 0 : i64, scratch_operands = 6 : i64, tpu.core_type = #tpu.core_type<tc>, window_params = [{transform_indices = @transform_0, window_bounds = array<i64: 1, 16, 16, 3>}, {pipeline_mode = #tpu.pipeline_mode<synchronous>, transform_indices = @transform_1, window_bounds = array<i64: 9, 3, 16>}, {pipeline_mode = #tpu.pipeline_mode<synchronous>, transform_indices = @transform_2, window_bounds = array<i64: 1, 16>}, {pipeline_mode = #tpu.pipeline_mode<synchronous>, transform_indices = @transform_3, window_bounds = array<i64: 9, 16, 32>}, {pipeline_mode = #tpu.pipeline_mode<synchronous>, transform_indices = @transform_4, window_bounds = array<i64: 1, 32>}, {pipeline_mode = #tpu.pipeline_mode<synchronous>, transform_indices = @transform_5, window_bounds = array<i64: 64, 16>}, {pipeline_mode = #tpu.pipeline_mode<synchronous>, transform_indices = @transform_6, window_bounds = array<i64: 9, 32, 16>}, {pipeline_mode = #tpu.pipeline_mode<synchronous>, transform_indices = @transform_7, window_bounds = array<i64: 1, 16>}, {pipeline_mode = #tpu.pipeline_mode<synchronous>, transform_indices = @transform_8, window_bounds = array<i64: 64, 256>}, {pipeline_mode = #tpu.pipeline_mode<synchronous>, transform_indices = @transform_9, window_bounds = array<i64: 4, 16>}, {pipeline_mode = #tpu.pipeline_mode<synchronous>, transform_indices = @transform_10, window_bounds = array<i64: 4, 1>}, {transform_indices = @transform_11, window_bounds = array<i64: 1, 4, 256>}]} {
    %cst = arith.constant 0.000000e+00 : f32
    %0 = vector.broadcast %cst : f32 to vector<1x18x3xf32>
    %c0 = arith.constant 0 : index
    %c0_0 = arith.constant 0 : index
    %c0_1 = arith.constant 0 : index
    %1 = vector.load %arg13[%c0, %c0_0, %c0_1] : memref<18x18x3xf32, #tpu.memory_space<vmem>>, vector<1x18x3xf32>
    tpu.vector_store %arg13[%c0, %c0_0, %c0_1], %0 {strides = array<i32>} : memref<18x18x3xf32, #tpu.memory_space<vmem>>, vector<1x18x3xf32>,
    %cst_2 = arith.constant 0.000000e+00 : f32
    %2 = vector.broadcast %cst_2 : f32 to vector<1x18x3xf32>
    %c17 = arith.constant 17 : index
    %c0_3 = arith.constant 0 : index
    %c0_4 = arith.constant 0 : index
    %3 = vector.load %arg13[%c17, %c0_3, %c0_4] : memref<18x18x3xf32, #tpu.memory_space<vmem>>, vector<1x18x3xf32>
    tpu.vector_store %arg13[%c17, %c0_3, %c0_4], %2 {strides = array<i32>} : memref<18x18x3xf32, #tpu.memory_space<vmem>>, vector<1x18x3xf32>,
    %cst_5 = arith.constant 0.000000e+00 : f32
    %4 = vector.broadcast %cst_5 : f32 to vector<18x1x3xf32>
    %c0_6 = arith.constant 0 : index
    %c0_7 = arith.constant 0 : index
    %c0_8 = arith.constant 0 : index
    %5 = vector.load %arg13[%c0_6, %c0_7, %c0_8] : memref<18x18x3xf32, #tpu.memory_space<vmem>>, vector<18x1x3xf32>
    tpu.vector_store %arg13[%c0_6, %c0_7, %c0_8], %4 {strides = array<i32>} : memref<18x18x3xf32, #tpu.memory_space<vmem>>, vector<18x1x3xf32>,
    %cst_9 = arith.constant 0.000000e+00 : f32
    %6 = vector.broadcast %cst_9 : f32 to vector<18x1x3xf32>
    %c0_10 = arith.constant 0 : index
    %c17_11 = arith.constant 17 : index
    %c0_12 = arith.constant 0 : index
    %7 = vector.load %arg13[%c0_10, %c17_11, %c0_12] : memref<18x18x3xf32, #tpu.memory_space<vmem>>, vector<18x1x3xf32>
    tpu.vector_store %arg13[%c0_10, %c17_11, %c0_12], %6 {strides = array<i32>} : memref<18x18x3xf32, #tpu.memory_space<vmem>>, vector<18x1x3xf32>,
    %c0_13 = arith.constant 0 : index
    %c0_14 = arith.constant 0 : index
    %c0_15 = arith.constant 0 : index
    %c0_16 = arith.constant 0 : index
    %8 = vector.load %arg1[%c0_13, %c0_14, %c0_15, %c0_16] : memref<1x16x16x3xf32, #tpu.memory_space<vmem>>, vector<1x16x16x3xf32>
    %9 = vector.shape_cast %8 : vector<1x16x16x3xf32> to vector<16x16x3xf32>
    %c1 = arith.constant 1 : index
    %c1_17 = arith.constant 1 : index
    %c0_18 = arith.constant 0 : index
    %10 = vector.load %arg13[%c1, %c1_17, %c0_18] : memref<18x18x3xf32, #tpu.memory_space<vmem>>, vector<16x16x3xf32>
    tpu.vector_store %arg13[%c1, %c1_17, %c0_18], %9 {strides = array<i32>} : memref<18x18x3xf32, #tpu.memory_space<vmem>>, vector<16x16x3xf32>,
    %c0_19 = arith.constant 0 : index
    %c0_20 = arith.constant 0 : index
    %c0_21 = arith.constant 0 : index
    %11 = vector.load %arg13[%c0_19, %c0_20, %c0_21] : memref<18x18x3xf32, #tpu.memory_space<vmem>>, vector<18x16x3xf32>
    %12 = arith.truncf %11 : vector<18x16x3xf32> to vector<18x16x3xbf16>
    %13 = vector.extract_strided_slice %12 {offsets = [0, 0, 0], sizes = [16, 16, 3], strides = [1, 1, 1]} : vector<18x16x3xbf16> to vector<16x16x3xbf16>
    %14 = vector.shape_cast %13 : vector<16x16x3xbf16> to vector<256x3xbf16>
    %c0_22 = arith.constant 0 : index
    %c0_23 = arith.constant 0 : index
    %c0_24 = arith.constant 0 : index
    %15 = vector.load %arg2[%c0_22, %c0_23, %c0_24] : memref<9x3x16xbf16, #tpu.memory_space<vmem>>, vector<1x3x16xbf16>
    %16 = vector.shape_cast %15 : vector<1x3x16xbf16> to vector<3x16xbf16>
    %cst_25 = arith.constant dense<0.000000e+00> : vector<256x16xf32>
    %17 = tpu.matmul %14, %16, %cst_25 {dimension_numbers = #tpu.dot_dimension_numbers<[1], [0], [0], [1], [0, 0, 1, 1], [], []>} : vector<256x3xbf16>, vector<3x16xbf16>, vector<256x16xf32> -> vector<256x16xf32>
    %18 = vector.extract_strided_slice %12 {offsets = [1, 0, 0], sizes = [16, 16, 3], strides = [1, 1, 1]} : vector<18x16x3xbf16> to vector<16x16x3xbf16>
    %19 = vector.shape_cast %18 : vector<16x16x3xbf16> to vector<256x3xbf16>
    %c3 = arith.constant 3 : index
    %c0_26 = arith.constant 0 : index
    %c0_27 = arith.constant 0 : index
    %20 = vector.load %arg2[%c3, %c0_26, %c0_27] : memref<9x3x16xbf16, #tpu.memory_space<vmem>>, vector<1x3x16xbf16>
    %21 = vector.shape_cast %20 : vector<1x3x16xbf16> to vector<3x16xbf16>
    %cst_28 = arith.constant dense<0.000000e+00> : vector<256x16xf32>
    %22 = tpu.matmul %19, %21, %cst_28 {dimension_numbers = #tpu.dot_dimension_numbers<[1], [0], [0], [1], [0, 0, 1, 1], [], []>} : vector<256x3xbf16>, vector<3x16xbf16>, vector<256x16xf32> -> vector<256x16xf32>
    %23 = arith.addf %17, %22 : vector<256x16xf32>
    %24 = vector.extract_strided_slice %12 {offsets = [2, 0, 0], sizes = [16, 16, 3], strides = [1, 1, 1]} : vector<18x16x3xbf16> to vector<16x16x3xbf16>
    %25 = vector.shape_cast %24 : vector<16x16x3xbf16> to vector<256x3xbf16>
    %c6 = arith.constant 6 : index
    %c0_29 = arith.constant 0 : index
    %c0_30 = arith.constant 0 : index
    %26 = vector.load %arg2[%c6, %c0_29, %c0_30] : memref<9x3x16xbf16, #tpu.memory_space<vmem>>, vector<1x3x16xbf16>
    %27 = vector.shape_cast %26 : vector<1x3x16xbf16> to vector<3x16xbf16>
    %cst_31 = arith.constant dense<0.000000e+00> : vector<256x16xf32>
    %28 = tpu.matmul %25, %27, %cst_31 {dimension_numbers = #tpu.dot_dimension_numbers<[1], [0], [0], [1], [0, 0, 1, 1], [], []>} : vector<256x3xbf16>, vector<3x16xbf16>, vector<256x16xf32> -> vector<256x16xf32>
    %29 = arith.addf %23, %28 : vector<256x16xf32>
    %c0_32 = arith.constant 0 : index
    %c1_33 = arith.constant 1 : index
    %c0_34 = arith.constant 0 : index
    %30 = vector.load %arg13[%c0_32, %c1_33, %c0_34] : memref<18x18x3xf32, #tpu.memory_space<vmem>>, vector<18x16x3xf32>
    %31 = arith.truncf %30 : vector<18x16x3xf32> to vector<18x16x3xbf16>
    %32 = vector.extract_strided_slice %31 {offsets = [0, 0, 0], sizes = [16, 16, 3], strides = [1, 1, 1]} : vector<18x16x3xbf16> to vector<16x16x3xbf16>
    %33 = vector.shape_cast %32 : vector<16x16x3xbf16> to vector<256x3xbf16>
    %c1_35 = arith.constant 1 : index
    %c0_36 = arith.constant 0 : index
    %c0_37 = arith.constant 0 : index
    %34 = vector.load %arg2[%c1_35, %c0_36, %c0_37] : memref<9x3x16xbf16, #tpu.memory_space<vmem>>, vector<1x3x16xbf16>
    %35 = vector.shape_cast %34 : vector<1x3x16xbf16> to vector<3x16xbf16>
    %cst_38 = arith.constant dense<0.000000e+00> : vector<256x16xf32>
    %36 = tpu.matmul %33, %35, %cst_38 {dimension_numbers = #tpu.dot_dimension_numbers<[1], [0], [0], [1], [0, 0, 1, 1], [], []>} : vector<256x3xbf16>, vector<3x16xbf16>, vector<256x16xf32> -> vector<256x16xf32>
    %37 = arith.addf %29, %36 : vector<256x16xf32>
    %38 = vector.extract_strided_slice %31 {offsets = [1, 0, 0], sizes = [16, 16, 3], strides = [1, 1, 1]} : vector<18x16x3xbf16> to vector<16x16x3xbf16>
    %39 = vector.shape_cast %38 : vector<16x16x3xbf16> to vector<256x3xbf16>
    %c4 = arith.constant 4 : index
    %c0_39 = arith.constant 0 : index
    %c0_40 = arith.constant 0 : index
    %40 = vector.load %arg2[%c4, %c0_39, %c0_40] : memref<9x3x16xbf16, #tpu.memory_space<vmem>>, vector<1x3x16xbf16>
    %41 = vector.shape_cast %40 : vector<1x3x16xbf16> to vector<3x16xbf16>
    %cst_41 = arith.constant dense<0.000000e+00> : vector<256x16xf32>
    %42 = tpu.matmul %39, %41, %cst_41 {dimension_numbers = #tpu.dot_dimension_numbers<[1], [0], [0], [1], [0, 0, 1, 1], [], []>} : vector<256x3xbf16>, vector<3x16xbf16>, vector<256x16xf32> -> vector<256x16xf32>
    %43 = arith.addf %37, %42 : vector<256x16xf32>
    %44 = vector.extract_strided_slice %31 {offsets = [2, 0, 0], sizes = [16, 16, 3], strides = [1, 1, 1]} : vector<18x16x3xbf16> to vector<16x16x3xbf16>
    %45 = vector.shape_cast %44 : vector<16x16x3xbf16> to vector<256x3xbf16>
    %c7 = arith.constant 7 : index
    %c0_42 = arith.constant 0 : index
    %c0_43 = arith.constant 0 : index
    %46 = vector.load %arg2[%c7, %c0_42, %c0_43] : memref<9x3x16xbf16, #tpu.memory_space<vmem>>, vector<1x3x16xbf16>
    %47 = vector.shape_cast %46 : vector<1x3x16xbf16> to vector<3x16xbf16>
    %cst_44 = arith.constant dense<0.000000e+00> : vector<256x16xf32>
    %48 = tpu.matmul %45, %47, %cst_44 {dimension_numbers = #tpu.dot_dimension_numbers<[1], [0], [0], [1], [0, 0, 1, 1], [], []>} : vector<256x3xbf16>, vector<3x16xbf16>, vector<256x16xf32> -> vector<256x16xf32>
    %49 = arith.addf %43, %48 : vector<256x16xf32>
    %c0_45 = arith.constant 0 : index
    %c2 = arith.constant 2 : index
    %c0_46 = arith.constant 0 : index
    %50 = vector.load %arg13[%c0_45, %c2, %c0_46] : memref<18x18x3xf32, #tpu.memory_space<vmem>>, vector<18x16x3xf32>
    %51 = arith.truncf %50 : vector<18x16x3xf32> to vector<18x16x3xbf16>
    %52 = vector.extract_strided_slice %51 {offsets = [0, 0, 0], sizes = [16, 16, 3], strides = [1, 1, 1]} : vector<18x16x3xbf16> to vector<16x16x3xbf16>
    %53 = vector.shape_cast %52 : vector<16x16x3xbf16> to vector<256x3xbf16>
    %c2_47 = arith.constant 2 : index
    %c0_48 = arith.constant 0 : index
    %c0_49 = arith.constant 0 : index
    %54 = vector.load %arg2[%c2_47, %c0_48, %c0_49] : memref<9x3x16xbf16, #tpu.memory_space<vmem>>, vector<1x3x16xbf16>
    %55 = vector.shape_cast %54 : vector<1x3x16xbf16> to vector<3x16xbf16>
    %cst_50 = arith.constant dense<0.000000e+00> : vector<256x16xf32>
    %56 = tpu.matmul %53, %55, %cst_50 {dimension_numbers = #tpu.dot_dimension_numbers<[1], [0], [0], [1], [0, 0, 1, 1], [], []>} : vector<256x3xbf16>, vector<3x16xbf16>, vector<256x16xf32> -> vector<256x16xf32>
    %57 = arith.addf %49, %56 : vector<256x16xf32>
    %58 = vector.extract_strided_slice %51 {offsets = [1, 0, 0], sizes = [16, 16, 3], strides = [1, 1, 1]} : vector<18x16x3xbf16> to vector<16x16x3xbf16>
    %59 = vector.shape_cast %58 : vector<16x16x3xbf16> to vector<256x3xbf16>
    %c5 = arith.constant 5 : index
    %c0_51 = arith.constant 0 : index
    %c0_52 = arith.constant 0 : index
    %60 = vector.load %arg2[%c5, %c0_51, %c0_52] : memref<9x3x16xbf16, #tpu.memory_space<vmem>>, vector<1x3x16xbf16>
    %61 = vector.shape_cast %60 : vector<1x3x16xbf16> to vector<3x16xbf16>
    %cst_53 = arith.constant dense<0.000000e+00> : vector<256x16xf32>
    %62 = tpu.matmul %59, %61, %cst_53 {dimension_numbers = #tpu.dot_dimension_numbers<[1], [0], [0], [1], [0, 0, 1, 1], [], []>} : vector<256x3xbf16>, vector<3x16xbf16>, vector<256x16xf32> -> vector<256x16xf32>
    %63 = arith.addf %57, %62 : vector<256x16xf32>
    %64 = vector.extract_strided_slice %51 {offsets = [2, 0, 0], sizes = [16, 16, 3], strides = [1, 1, 1]} : vector<18x16x3xbf16> to vector<16x16x3xbf16>
    %65 = vector.shape_cast %64 : vector<16x16x3xbf16> to vector<256x3xbf16>
    %c8 = arith.constant 8 : index
    %c0_54 = arith.constant 0 : index
    %c0_55 = arith.constant 0 : index
    %66 = vector.load %arg2[%c8, %c0_54, %c0_55] : memref<9x3x16xbf16, #tpu.memory_space<vmem>>, vector<1x3x16xbf16>
    %67 = vector.shape_cast %66 : vector<1x3x16xbf16> to vector<3x16xbf16>
    %cst_56 = arith.constant dense<0.000000e+00> : vector<256x16xf32>
    %68 = tpu.matmul %65, %67, %cst_56 {dimension_numbers = #tpu.dot_dimension_numbers<[1], [0], [0], [1], [0, 0, 1, 1], [], []>} : vector<256x3xbf16>, vector<3x16xbf16>, vector<256x16xf32> -> vector<256x16xf32>
    %69 = arith.addf %63, %68 : vector<256x16xf32>
    %c0_57 = arith.constant 0 : index
    %c0_58 = arith.constant 0 : index
    %70 = vector.load %arg3[%c0_57, %c0_58] : memref<1x16xf32, #tpu.memory_space<vmem>>, vector<1x16xf32>
    %71 = vector.broadcast %70 : vector<1x16xf32> to vector<256x16xf32>
    %72 = arith.addf %69, %71 : vector<256x16xf32>
    %cst_59 = arith.constant 0.000000e+00 : f32
    %73 = vector.broadcast %cst_59 : f32 to vector<256x16xf32>
    %74 = arith.maximumf %72, %73 : vector<256x16xf32>
    %75 = vector.shape_cast %74 : vector<256x16xf32> to vector<16x16x16xf32>
    %c0_60 = arith.constant 0 : index
    %c0_61 = arith.constant 0 : index
    %c0_62 = arith.constant 0 : index
    %76 = vector.load %arg14[%c0_60, %c0_61, %c0_62] : memref<16x16x16xf32, #tpu.memory_space<vmem>>, vector<16x16x16xf32>
    tpu.vector_store %arg14[%c0_60, %c0_61, %c0_62], %75 {strides = array<i32>} : memref<16x16x16xf32, #tpu.memory_space<vmem>>, vector<16x16x16xf32>,
    %cst_63 = arith.constant 0.000000e+00 : f32
    %77 = vector.broadcast %cst_63 : f32 to vector<1x10x16xf32>
    %c0_64 = arith.constant 0 : index
    %c0_65 = arith.constant 0 : index
    %c0_66 = arith.constant 0 : index
    %78 = vector.load %arg15[%c0_64, %c0_65, %c0_66] : memref<10x10x16xf32, #tpu.memory_space<vmem>>, vector<1x10x16xf32>
    tpu.vector_store %arg15[%c0_64, %c0_65, %c0_66], %77 {strides = array<i32>} : memref<10x10x16xf32, #tpu.memory_space<vmem>>, vector<1x10x16xf32>,
    %cst_67 = arith.constant 0.000000e+00 : f32
    %79 = vector.broadcast %cst_67 : f32 to vector<1x10x16xf32>
    %c9 = arith.constant 9 : index
    %c0_68 = arith.constant 0 : index
    %c0_69 = arith.constant 0 : index
    %80 = vector.load %arg15[%c9, %c0_68, %c0_69] : memref<10x10x16xf32, #tpu.memory_space<vmem>>, vector<1x10x16xf32>
    tpu.vector_store %arg15[%c9, %c0_68, %c0_69], %79 {strides = array<i32>} : memref<10x10x16xf32, #tpu.memory_space<vmem>>, vector<1x10x16xf32>,
    %cst_70 = arith.constant 0.000000e+00 : f32
    %81 = vector.broadcast %cst_70 : f32 to vector<10x1x16xf32>
    %c0_71 = arith.constant 0 : index
    %c0_72 = arith.constant 0 : index
    %c0_73 = arith.constant 0 : index
    %82 = vector.load %arg15[%c0_71, %c0_72, %c0_73] : memref<10x10x16xf32, #tpu.memory_space<vmem>>, vector<10x1x16xf32>
    tpu.vector_store %arg15[%c0_71, %c0_72, %c0_73], %81 {strides = array<i32>} : memref<10x10x16xf32, #tpu.memory_space<vmem>>, vector<10x1x16xf32>,
    %cst_74 = arith.constant 0.000000e+00 : f32
    %83 = vector.broadcast %cst_74 : f32 to vector<10x1x16xf32>
    %c0_75 = arith.constant 0 : index
    %c9_76 = arith.constant 9 : index
    %c0_77 = arith.constant 0 : index
    %84 = vector.load %arg15[%c0_75, %c9_76, %c0_77] : memref<10x10x16xf32, #tpu.memory_space<vmem>>, vector<10x1x16xf32>
    tpu.vector_store %arg15[%c0_75, %c9_76, %c0_77], %83 {strides = array<i32>} : memref<10x10x16xf32, #tpu.memory_space<vmem>>, vector<10x1x16xf32>,
    %c0_78 = arith.constant 0 : index
    %c0_79 = arith.constant 0 : index
    %c0_80 = arith.constant 0 : index
    %85 = tpu.strided_load %arg14[%c0_78, %c0_79, %c0_80] {strides = array<i32: 2, 2, 1>} : memref<16x16x16xf32, #tpu.memory_space<vmem>>, vector<8x8x16xf32>
    %c0_81 = arith.constant 0 : index
    %c1_82 = arith.constant 1 : index
    %c0_83 = arith.constant 0 : index
    %86 = tpu.strided_load %arg14[%c0_81, %c1_82, %c0_83] {strides = array<i32: 2, 2, 1>} : memref<16x16x16xf32, #tpu.memory_space<vmem>>, vector<8x8x16xf32>
    %c1_84 = arith.constant 1 : index
    %c0_85 = arith.constant 0 : index
    %c0_86 = arith.constant 0 : index
    %87 = tpu.strided_load %arg14[%c1_84, %c0_85, %c0_86] {strides = array<i32: 2, 2, 1>} : memref<16x16x16xf32, #tpu.memory_space<vmem>>, vector<8x8x16xf32>
    %c1_87 = arith.constant 1 : index
    %c1_88 = arith.constant 1 : index
    %c0_89 = arith.constant 0 : index
    %88 = tpu.strided_load %arg14[%c1_87, %c1_88, %c0_89] {strides = array<i32: 2, 2, 1>} : memref<16x16x16xf32, #tpu.memory_space<vmem>>, vector<8x8x16xf32>
    %89 = arith.maximumf %85, %86 : vector<8x8x16xf32>
    %90 = arith.maximumf %87, %88 : vector<8x8x16xf32>
    %91 = arith.maximumf %89, %90 : vector<8x8x16xf32>
    %c1_90 = arith.constant 1 : index
    %c1_91 = arith.constant 1 : index
    %c0_92 = arith.constant 0 : index
    %92 = vector.load %arg15[%c1_90, %c1_91, %c0_92] : memref<10x10x16xf32, #tpu.memory_space<vmem>>, vector<8x8x16xf32>
    tpu.vector_store %arg15[%c1_90, %c1_91, %c0_92], %91 {strides = array<i32>} : memref<10x10x16xf32, #tpu.memory_space<vmem>>, vector<8x8x16xf32>,
    %c0_93 = arith.constant 0 : index
    %c0_94 = arith.constant 0 : index
    %c0_95 = arith.constant 0 : index
    %93 = vector.load %arg15[%c0_93, %c0_94, %c0_95] : memref<10x10x16xf32, #tpu.memory_space<vmem>>, vector<10x8x16xf32>
    %94 = arith.truncf %93 : vector<10x8x16xf32> to vector<10x8x16xbf16>
    %95 = vector.extract_strided_slice %94 {offsets = [0, 0, 0], sizes = [8, 8, 16], strides = [1, 1, 1]} : vector<10x8x16xbf16> to vector<8x8x16xbf16>
    %96 = vector.shape_cast %95 : vector<8x8x16xbf16> to vector<64x16xbf16>
    %c0_96 = arith.constant 0 : index
    %c0_97 = arith.constant 0 : index
    %c0_98 = arith.constant 0 : index
    %97 = vector.load %arg4[%c0_96, %c0_97, %c0_98] : memref<9x16x32xbf16, #tpu.memory_space<vmem>>, vector<1x16x32xbf16>
    %98 = vector.shape_cast %97 : vector<1x16x32xbf16> to vector<16x32xbf16>
    %cst_99 = arith.constant dense<0.000000e+00> : vector<64x32xf32>
    %99 = tpu.matmul %96, %98, %cst_99 {dimension_numbers = #tpu.dot_dimension_numbers<[1], [0], [0], [1], [0, 0, 1, 1], [], []>} : vector<64x16xbf16>, vector<16x32xbf16>, vector<64x32xf32> -> vector<64x32xf32>
    %100 = vector.extract_strided_slice %94 {offsets = [1, 0, 0], sizes = [8, 8, 16], strides = [1, 1, 1]} : vector<10x8x16xbf16> to vector<8x8x16xbf16>
    %101 = vector.shape_cast %100 : vector<8x8x16xbf16> to vector<64x16xbf16>
    %c3_100 = arith.constant 3 : index
    %c0_101 = arith.constant 0 : index
    %c0_102 = arith.constant 0 : index
    %102 = vector.load %arg4[%c3_100, %c0_101, %c0_102] : memref<9x16x32xbf16, #tpu.memory_space<vmem>>, vector<1x16x32xbf16>
    %103 = vector.shape_cast %102 : vector<1x16x32xbf16> to vector<16x32xbf16>
    %cst_103 = arith.constant dense<0.000000e+00> : vector<64x32xf32>
    %104 = tpu.matmul %101, %103, %cst_103 {dimension_numbers = #tpu.dot_dimension_numbers<[1], [0], [0], [1], [0, 0, 1, 1], [], []>} : vector<64x16xbf16>, vector<16x32xbf16>, vector<64x32xf32> -> vector<64x32xf32>
    %105 = arith.addf %99, %104 : vector<64x32xf32>
    %106 = vector.extract_strided_slice %94 {offsets = [2, 0, 0], sizes = [8, 8, 16], strides = [1, 1, 1]} : vector<10x8x16xbf16> to vector<8x8x16xbf16>
    %107 = vector.shape_cast %106 : vector<8x8x16xbf16> to vector<64x16xbf16>
    %c6_104 = arith.constant 6 : index
    %c0_105 = arith.constant 0 : index
    %c0_106 = arith.constant 0 : index
    %108 = vector.load %arg4[%c6_104, %c0_105, %c0_106] : memref<9x16x32xbf16, #tpu.memory_space<vmem>>, vector<1x16x32xbf16>
    %109 = vector.shape_cast %108 : vector<1x16x32xbf16> to vector<16x32xbf16>
    %cst_107 = arith.constant dense<0.000000e+00> : vector<64x32xf32>
    %110 = tpu.matmul %107, %109, %cst_107 {dimension_numbers = #tpu.dot_dimension_numbers<[1], [0], [0], [1], [0, 0, 1, 1], [], []>} : vector<64x16xbf16>, vector<16x32xbf16>, vector<64x32xf32> -> vector<64x32xf32>
    %111 = arith.addf %105, %110 : vector<64x32xf32>
    %c0_108 = arith.constant 0 : index
    %c1_109 = arith.constant 1 : index
    %c0_110 = arith.constant 0 : index
    %112 = vector.load %arg15[%c0_108, %c1_109, %c0_110] : memref<10x10x16xf32, #tpu.memory_space<vmem>>, vector<10x8x16xf32>
    %113 = arith.truncf %112 : vector<10x8x16xf32> to vector<10x8x16xbf16>
    %114 = vector.extract_strided_slice %113 {offsets = [0, 0, 0], sizes = [8, 8, 16], strides = [1, 1, 1]} : vector<10x8x16xbf16> to vector<8x8x16xbf16>
    %115 = vector.shape_cast %114 : vector<8x8x16xbf16> to vector<64x16xbf16>
    %c1_111 = arith.constant 1 : index
    %c0_112 = arith.constant 0 : index
    %c0_113 = arith.constant 0 : index
    %116 = vector.load %arg4[%c1_111, %c0_112, %c0_113] : memref<9x16x32xbf16, #tpu.memory_space<vmem>>, vector<1x16x32xbf16>
    %117 = vector.shape_cast %116 : vector<1x16x32xbf16> to vector<16x32xbf16>
    %cst_114 = arith.constant dense<0.000000e+00> : vector<64x32xf32>
    %118 = tpu.matmul %115, %117, %cst_114 {dimension_numbers = #tpu.dot_dimension_numbers<[1], [0], [0], [1], [0, 0, 1, 1], [], []>} : vector<64x16xbf16>, vector<16x32xbf16>, vector<64x32xf32> -> vector<64x32xf32>
    %119 = arith.addf %111, %118 : vector<64x32xf32>
    %120 = vector.extract_strided_slice %113 {offsets = [1, 0, 0], sizes = [8, 8, 16], strides = [1, 1, 1]} : vector<10x8x16xbf16> to vector<8x8x16xbf16>
    %121 = vector.shape_cast %120 : vector<8x8x16xbf16> to vector<64x16xbf16>
    %c4_115 = arith.constant 4 : index
    %c0_116 = arith.constant 0 : index
    %c0_117 = arith.constant 0 : index
    %122 = vector.load %arg4[%c4_115, %c0_116, %c0_117] : memref<9x16x32xbf16, #tpu.memory_space<vmem>>, vector<1x16x32xbf16>
    %123 = vector.shape_cast %122 : vector<1x16x32xbf16> to vector<16x32xbf16>
    %cst_118 = arith.constant dense<0.000000e+00> : vector<64x32xf32>
    %124 = tpu.matmul %121, %123, %cst_118 {dimension_numbers = #tpu.dot_dimension_numbers<[1], [0], [0], [1], [0, 0, 1, 1], [], []>} : vector<64x16xbf16>, vector<16x32xbf16>, vector<64x32xf32> -> vector<64x32xf32>
    %125 = arith.addf %119, %124 : vector<64x32xf32>
    %126 = vector.extract_strided_slice %113 {offsets = [2, 0, 0], sizes = [8, 8, 16], strides = [1, 1, 1]} : vector<10x8x16xbf16> to vector<8x8x16xbf16>
    %127 = vector.shape_cast %126 : vector<8x8x16xbf16> to vector<64x16xbf16>
    %c7_119 = arith.constant 7 : index
    %c0_120 = arith.constant 0 : index
    %c0_121 = arith.constant 0 : index
    %128 = vector.load %arg4[%c7_119, %c0_120, %c0_121] : memref<9x16x32xbf16, #tpu.memory_space<vmem>>, vector<1x16x32xbf16>
    %129 = vector.shape_cast %128 : vector<1x16x32xbf16> to vector<16x32xbf16>
    %cst_122 = arith.constant dense<0.000000e+00> : vector<64x32xf32>
    %130 = tpu.matmul %127, %129, %cst_122 {dimension_numbers = #tpu.dot_dimension_numbers<[1], [0], [0], [1], [0, 0, 1, 1], [], []>} : vector<64x16xbf16>, vector<16x32xbf16>, vector<64x32xf32> -> vector<64x32xf32>
    %131 = arith.addf %125, %130 : vector<64x32xf32>
    %c0_123 = arith.constant 0 : index
    %c2_124 = arith.constant 2 : index
    %c0_125 = arith.constant 0 : index
    %132 = vector.load %arg15[%c0_123, %c2_124, %c0_125] : memref<10x10x16xf32, #tpu.memory_space<vmem>>, vector<10x8x16xf32>
    %133 = arith.truncf %132 : vector<10x8x16xf32> to vector<10x8x16xbf16>
    %134 = vector.extract_strided_slice %133 {offsets = [0, 0, 0], sizes = [8, 8, 16], strides = [1, 1, 1]} : vector<10x8x16xbf16> to vector<8x8x16xbf16>
    %135 = vector.shape_cast %134 : vector<8x8x16xbf16> to vector<64x16xbf16>
    %c2_126 = arith.constant 2 : index
    %c0_127 = arith.constant 0 : index
    %c0_128 = arith.constant 0 : index
    %136 = vector.load %arg4[%c2_126, %c0_127, %c0_128] : memref<9x16x32xbf16, #tpu.memory_space<vmem>>, vector<1x16x32xbf16>
    %137 = vector.shape_cast %136 : vector<1x16x32xbf16> to vector<16x32xbf16>
    %cst_129 = arith.constant dense<0.000000e+00> : vector<64x32xf32>
    %138 = tpu.matmul %135, %137, %cst_129 {dimension_numbers = #tpu.dot_dimension_numbers<[1], [0], [0], [1], [0, 0, 1, 1], [], []>} : vector<64x16xbf16>, vector<16x32xbf16>, vector<64x32xf32> -> vector<64x32xf32>
    %139 = arith.addf %131, %138 : vector<64x32xf32>
    %140 = vector.extract_strided_slice %133 {offsets = [1, 0, 0], sizes = [8, 8, 16], strides = [1, 1, 1]} : vector<10x8x16xbf16> to vector<8x8x16xbf16>
    %141 = vector.shape_cast %140 : vector<8x8x16xbf16> to vector<64x16xbf16>
    %c5_130 = arith.constant 5 : index
    %c0_131 = arith.constant 0 : index
    %c0_132 = arith.constant 0 : index
    %142 = vector.load %arg4[%c5_130, %c0_131, %c0_132] : memref<9x16x32xbf16, #tpu.memory_space<vmem>>, vector<1x16x32xbf16>
    %143 = vector.shape_cast %142 : vector<1x16x32xbf16> to vector<16x32xbf16>
    %cst_133 = arith.constant dense<0.000000e+00> : vector<64x32xf32>
    %144 = tpu.matmul %141, %143, %cst_133 {dimension_numbers = #tpu.dot_dimension_numbers<[1], [0], [0], [1], [0, 0, 1, 1], [], []>} : vector<64x16xbf16>, vector<16x32xbf16>, vector<64x32xf32> -> vector<64x32xf32>
    %145 = arith.addf %139, %144 : vector<64x32xf32>
    %146 = vector.extract_strided_slice %133 {offsets = [2, 0, 0], sizes = [8, 8, 16], strides = [1, 1, 1]} : vector<10x8x16xbf16> to vector<8x8x16xbf16>
    %147 = vector.shape_cast %146 : vector<8x8x16xbf16> to vector<64x16xbf16>
    %c8_134 = arith.constant 8 : index
    %c0_135 = arith.constant 0 : index
    %c0_136 = arith.constant 0 : index
    %148 = vector.load %arg4[%c8_134, %c0_135, %c0_136] : memref<9x16x32xbf16, #tpu.memory_space<vmem>>, vector<1x16x32xbf16>
    %149 = vector.shape_cast %148 : vector<1x16x32xbf16> to vector<16x32xbf16>
    %cst_137 = arith.constant dense<0.000000e+00> : vector<64x32xf32>
    %150 = tpu.matmul %147, %149, %cst_137 {dimension_numbers = #tpu.dot_dimension_numbers<[1], [0], [0], [1], [0, 0, 1, 1], [], []>} : vector<64x16xbf16>, vector<16x32xbf16>, vector<64x32xf32> -> vector<64x32xf32>
    %151 = arith.addf %145, %150 : vector<64x32xf32>
    %c0_138 = arith.constant 0 : index
    %c0_139 = arith.constant 0 : index
    %152 = vector.load %arg5[%c0_138, %c0_139] : memref<1x32xf32, #tpu.memory_space<vmem>>, vector<1x32xf32>
    %153 = vector.broadcast %152 : vector<1x32xf32> to vector<64x32xf32>
    %154 = arith.addf %151, %153 : vector<64x32xf32>
    %cst_140 = arith.constant 0.000000e+00 : f32
    %155 = vector.broadcast %cst_140 : f32 to vector<64x32xf32>
    %156 = arith.maximumf %154, %155 : vector<64x32xf32>
    %157 = vector.shape_cast %156 : vector<64x32xf32> to vector<8x8x32xf32>
    %c0_141 = arith.constant 0 : index
    %c0_142 = arith.constant 0 : index
    %c0_143 = arith.constant 0 : index
    %158 = vector.load %arg16[%c0_141, %c0_142, %c0_143] : memref<8x8x32xf32, #tpu.memory_space<vmem>>, vector<8x8x32xf32>
    tpu.vector_store %arg16[%c0_141, %c0_142, %c0_143], %157 {strides = array<i32>} : memref<8x8x32xf32, #tpu.memory_space<vmem>>, vector<8x8x32xf32>,
    %c0_144 = arith.constant 0 : index
    %c0_145 = arith.constant 0 : index
    %c0_146 = arith.constant 0 : index
    %159 = tpu.strided_load %arg16[%c0_144, %c0_145, %c0_146] {strides = array<i32: 2, 2, 1>} : memref<8x8x32xf32, #tpu.memory_space<vmem>>, vector<4x4x32xf32>
    %c0_147 = arith.constant 0 : index
    %c1_148 = arith.constant 1 : index
    %c0_149 = arith.constant 0 : index
    %160 = tpu.strided_load %arg16[%c0_147, %c1_148, %c0_149] {strides = array<i32: 2, 2, 1>} : memref<8x8x32xf32, #tpu.memory_space<vmem>>, vector<4x4x32xf32>
    %c1_150 = arith.constant 1 : index
    %c0_151 = arith.constant 0 : index
    %c0_152 = arith.constant 0 : index
    %161 = tpu.strided_load %arg16[%c1_150, %c0_151, %c0_152] {strides = array<i32: 2, 2, 1>} : memref<8x8x32xf32, #tpu.memory_space<vmem>>, vector<4x4x32xf32>
    %c1_153 = arith.constant 1 : index
    %c1_154 = arith.constant 1 : index
    %c0_155 = arith.constant 0 : index
    %162 = tpu.strided_load %arg16[%c1_153, %c1_154, %c0_155] {strides = array<i32: 2, 2, 1>} : memref<8x8x32xf32, #tpu.memory_space<vmem>>, vector<4x4x32xf32>
    %163 = arith.maximumf %159, %160 : vector<4x4x32xf32>
    %164 = arith.maximumf %161, %162 : vector<4x4x32xf32>
    %165 = arith.maximumf %163, %164 : vector<4x4x32xf32>
    %166 = vector.extract_strided_slice %165 {offsets = [0, 0, 0], sizes = [1, 4, 32], strides = [1, 1, 1]} : vector<4x4x32xf32> to vector<1x4x32xf32>
    %167 = vector.shape_cast %166 : vector<1x4x32xf32> to vector<4x32xf32>
    %c0_156 = arith.constant 0 : index
    %c0_157 = arith.constant 0 : index
    %168 = vector.load %arg17[%c0_156, %c0_157] : memref<16x32xf32, #tpu.memory_space<vmem>>, vector<4x32xf32>
    tpu.vector_store %arg17[%c0_156, %c0_157], %167 {strides = array<i32>} : memref<16x32xf32, #tpu.memory_space<vmem>>, vector<4x32xf32>,
    %169 = vector.extract_strided_slice %165 {offsets = [1, 0, 0], sizes = [1, 4, 32], strides = [1, 1, 1]} : vector<4x4x32xf32> to vector<1x4x32xf32>
    %170 = vector.shape_cast %169 : vector<1x4x32xf32> to vector<4x32xf32>
    %c4_158 = arith.constant 4 : index
    %c0_159 = arith.constant 0 : index
    %171 = vector.load %arg17[%c4_158, %c0_159] : memref<16x32xf32, #tpu.memory_space<vmem>>, vector<4x32xf32>
    tpu.vector_store %arg17[%c4_158, %c0_159], %170 {strides = array<i32>} : memref<16x32xf32, #tpu.memory_space<vmem>>, vector<4x32xf32>,
    %172 = vector.extract_strided_slice %165 {offsets = [2, 0, 0], sizes = [1, 4, 32], strides = [1, 1, 1]} : vector<4x4x32xf32> to vector<1x4x32xf32>
    %173 = vector.shape_cast %172 : vector<1x4x32xf32> to vector<4x32xf32>
    %c8_160 = arith.constant 8 : index
    %c0_161 = arith.constant 0 : index
    %174 = vector.load %arg17[%c8_160, %c0_161] : memref<16x32xf32, #tpu.memory_space<vmem>>, vector<4x32xf32>
    tpu.vector_store %arg17[%c8_160, %c0_161], %173 {strides = array<i32>} : memref<16x32xf32, #tpu.memory_space<vmem>>, vector<4x32xf32>,
    %175 = vector.extract_strided_slice %165 {offsets = [3, 0, 0], sizes = [1, 4, 32], strides = [1, 1, 1]} : vector<4x4x32xf32> to vector<1x4x32xf32>
    %176 = vector.shape_cast %175 : vector<1x4x32xf32> to vector<4x32xf32>
    %c12 = arith.constant 12 : index
    %c0_162 = arith.constant 0 : index
    %177 = vector.load %arg17[%c12, %c0_162] : memref<16x32xf32, #tpu.memory_space<vmem>>, vector<4x32xf32>
    tpu.vector_store %arg17[%c12, %c0_162], %176 {strides = array<i32>} : memref<16x32xf32, #tpu.memory_space<vmem>>, vector<4x32xf32>,
    %c0_163 = arith.constant 0 : index
    %c0_164 = arith.constant 0 : index
    %178 = vector.load %arg6[%c0_163, %c0_164] : memref<64x16xbf16, #tpu.memory_space<vmem>>, vector<64x16xbf16>
    %c0_165 = arith.constant 0 : index
    %c0_166 = arith.constant 0 : index
    %179 = vector.load %arg17[%c0_165, %c0_166] : memref<16x32xf32, #tpu.memory_space<vmem>>, vector<16x32xf32>
    %180 = arith.truncf %179 : vector<16x32xf32> to vector<16x32xbf16>
    %cst_167 = arith.constant dense<0.000000e+00> : vector<64x32xf32>
    %181 = tpu.matmul %178, %180, %cst_167 {dimension_numbers = #tpu.dot_dimension_numbers<[1], [0], [0], [1], [0, 0, 1, 1], [], []>} : vector<64x16xbf16>, vector<16x32xbf16>, vector<64x32xf32> -> vector<64x32xf32>
    %cst_168 = arith.constant 0.000000e+00 : f32
    %182 = vector.broadcast %cst_168 : f32 to vector<1x10x32xf32>
    %c0_169 = arith.constant 0 : index
    %c0_170 = arith.constant 0 : index
    %c0_171 = arith.constant 0 : index
    %183 = vector.load %arg18[%c0_169, %c0_170, %c0_171] : memref<10x10x32xf32, #tpu.memory_space<vmem>>, vector<1x10x32xf32>
    tpu.vector_store %arg18[%c0_169, %c0_170, %c0_171], %182 {strides = array<i32>} : memref<10x10x32xf32, #tpu.memory_space<vmem>>, vector<1x10x32xf32>,
    %cst_172 = arith.constant 0.000000e+00 : f32
    %184 = vector.broadcast %cst_172 : f32 to vector<1x10x32xf32>
    %c9_173 = arith.constant 9 : index
    %c0_174 = arith.constant 0 : index
    %c0_175 = arith.constant 0 : index
    %185 = vector.load %arg18[%c9_173, %c0_174, %c0_175] : memref<10x10x32xf32, #tpu.memory_space<vmem>>, vector<1x10x32xf32>
    tpu.vector_store %arg18[%c9_173, %c0_174, %c0_175], %184 {strides = array<i32>} : memref<10x10x32xf32, #tpu.memory_space<vmem>>, vector<1x10x32xf32>,
    %cst_176 = arith.constant 0.000000e+00 : f32
    %186 = vector.broadcast %cst_176 : f32 to vector<10x1x32xf32>
    %c0_177 = arith.constant 0 : index
    %c0_178 = arith.constant 0 : index
    %c0_179 = arith.constant 0 : index
    %187 = vector.load %arg18[%c0_177, %c0_178, %c0_179] : memref<10x10x32xf32, #tpu.memory_space<vmem>>, vector<10x1x32xf32>
    tpu.vector_store %arg18[%c0_177, %c0_178, %c0_179], %186 {strides = array<i32>} : memref<10x10x32xf32, #tpu.memory_space<vmem>>, vector<10x1x32xf32>,
    %cst_180 = arith.constant 0.000000e+00 : f32
    %188 = vector.broadcast %cst_180 : f32 to vector<10x1x32xf32>
    %c0_181 = arith.constant 0 : index
    %c9_182 = arith.constant 9 : index
    %c0_183 = arith.constant 0 : index
    %189 = vector.load %arg18[%c0_181, %c9_182, %c0_183] : memref<10x10x32xf32, #tpu.memory_space<vmem>>, vector<10x1x32xf32>
    tpu.vector_store %arg18[%c0_181, %c9_182, %c0_183], %188 {strides = array<i32>} : memref<10x10x32xf32, #tpu.memory_space<vmem>>, vector<10x1x32xf32>,
    %190 = vector.shape_cast %181 : vector<64x32xf32> to vector<8x8x32xf32>
    %c1_184 = arith.constant 1 : index
    %c1_185 = arith.constant 1 : index
    %c0_186 = arith.constant 0 : index
    %191 = vector.load %arg18[%c1_184, %c1_185, %c0_186] : memref<10x10x32xf32, #tpu.memory_space<vmem>>, vector<8x8x32xf32>
    tpu.vector_store %arg18[%c1_184, %c1_185, %c0_186], %190 {strides = array<i32>} : memref<10x10x32xf32, #tpu.memory_space<vmem>>, vector<8x8x32xf32>,
    %c0_187 = arith.constant 0 : index
    %c0_188 = arith.constant 0 : index
    %c0_189 = arith.constant 0 : index
    %192 = vector.load %arg18[%c0_187, %c0_188, %c0_189] : memref<10x10x32xf32, #tpu.memory_space<vmem>>, vector<10x8x32xf32>
    %193 = arith.truncf %192 : vector<10x8x32xf32> to vector<10x8x32xbf16>
    %194 = vector.extract_strided_slice %193 {offsets = [0, 0, 0], sizes = [8, 8, 32], strides = [1, 1, 1]} : vector<10x8x32xbf16> to vector<8x8x32xbf16>
    %195 = vector.shape_cast %194 : vector<8x8x32xbf16> to vector<64x32xbf16>
    %c0_190 = arith.constant 0 : index
    %c0_191 = arith.constant 0 : index
    %c0_192 = arith.constant 0 : index
    %196 = vector.load %arg7[%c0_190, %c0_191, %c0_192] : memref<9x32x16xbf16, #tpu.memory_space<vmem>>, vector<1x32x16xbf16>
    %197 = vector.shape_cast %196 : vector<1x32x16xbf16> to vector<32x16xbf16>
    %cst_193 = arith.constant dense<0.000000e+00> : vector<64x16xf32>
    %198 = tpu.matmul %195, %197, %cst_193 {dimension_numbers = #tpu.dot_dimension_numbers<[1], [0], [0], [1], [0, 0, 1, 1], [], []>} : vector<64x32xbf16>, vector<32x16xbf16>, vector<64x16xf32> -> vector<64x16xf32>
    %199 = vector.extract_strided_slice %193 {offsets = [1, 0, 0], sizes = [8, 8, 32], strides = [1, 1, 1]} : vector<10x8x32xbf16> to vector<8x8x32xbf16>
    %200 = vector.shape_cast %199 : vector<8x8x32xbf16> to vector<64x32xbf16>
    %c3_194 = arith.constant 3 : index
    %c0_195 = arith.constant 0 : index
    %c0_196 = arith.constant 0 : index
    %201 = vector.load %arg7[%c3_194, %c0_195, %c0_196] : memref<9x32x16xbf16, #tpu.memory_space<vmem>>, vector<1x32x16xbf16>
    %202 = vector.shape_cast %201 : vector<1x32x16xbf16> to vector<32x16xbf16>
    %cst_197 = arith.constant dense<0.000000e+00> : vector<64x16xf32>
    %203 = tpu.matmul %200, %202, %cst_197 {dimension_numbers = #tpu.dot_dimension_numbers<[1], [0], [0], [1], [0, 0, 1, 1], [], []>} : vector<64x32xbf16>, vector<32x16xbf16>, vector<64x16xf32> -> vector<64x16xf32>
    %204 = arith.addf %198, %203 : vector<64x16xf32>
    %205 = vector.extract_strided_slice %193 {offsets = [2, 0, 0], sizes = [8, 8, 32], strides = [1, 1, 1]} : vector<10x8x32xbf16> to vector<8x8x32xbf16>
    %206 = vector.shape_cast %205 : vector<8x8x32xbf16> to vector<64x32xbf16>
    %c6_198 = arith.constant 6 : index
    %c0_199 = arith.constant 0 : index
    %c0_200 = arith.constant 0 : index
    %207 = vector.load %arg7[%c6_198, %c0_199, %c0_200] : memref<9x32x16xbf16, #tpu.memory_space<vmem>>, vector<1x32x16xbf16>
    %208 = vector.shape_cast %207 : vector<1x32x16xbf16> to vector<32x16xbf16>
    %cst_201 = arith.constant dense<0.000000e+00> : vector<64x16xf32>
    %209 = tpu.matmul %206, %208, %cst_201 {dimension_numbers = #tpu.dot_dimension_numbers<[1], [0], [0], [1], [0, 0, 1, 1], [], []>} : vector<64x32xbf16>, vector<32x16xbf16>, vector<64x16xf32> -> vector<64x16xf32>
    %210 = arith.addf %204, %209 : vector<64x16xf32>
    %c0_202 = arith.constant 0 : index
    %c1_203 = arith.constant 1 : index
    %c0_204 = arith.constant 0 : index
    %211 = vector.load %arg18[%c0_202, %c1_203, %c0_204] : memref<10x10x32xf32, #tpu.memory_space<vmem>>, vector<10x8x32xf32>
    %212 = arith.truncf %211 : vector<10x8x32xf32> to vector<10x8x32xbf16>
    %213 = vector.extract_strided_slice %212 {offsets = [0, 0, 0], sizes = [8, 8, 32], strides = [1, 1, 1]} : vector<10x8x32xbf16> to vector<8x8x32xbf16>
    %214 = vector.shape_cast %213 : vector<8x8x32xbf16> to vector<64x32xbf16>
    %c1_205 = arith.constant 1 : index
    %c0_206 = arith.constant 0 : index
    %c0_207 = arith.constant 0 : index
    %215 = vector.load %arg7[%c1_205, %c0_206, %c0_207] : memref<9x32x16xbf16, #tpu.memory_space<vmem>>, vector<1x32x16xbf16>
    %216 = vector.shape_cast %215 : vector<1x32x16xbf16> to vector<32x16xbf16>
    %cst_208 = arith.constant dense<0.000000e+00> : vector<64x16xf32>
    %217 = tpu.matmul %214, %216, %cst_208 {dimension_numbers = #tpu.dot_dimension_numbers<[1], [0], [0], [1], [0, 0, 1, 1], [], []>} : vector<64x32xbf16>, vector<32x16xbf16>, vector<64x16xf32> -> vector<64x16xf32>
    %218 = arith.addf %210, %217 : vector<64x16xf32>
    %219 = vector.extract_strided_slice %212 {offsets = [1, 0, 0], sizes = [8, 8, 32], strides = [1, 1, 1]} : vector<10x8x32xbf16> to vector<8x8x32xbf16>
    %220 = vector.shape_cast %219 : vector<8x8x32xbf16> to vector<64x32xbf16>
    %c4_209 = arith.constant 4 : index
    %c0_210 = arith.constant 0 : index
    %c0_211 = arith.constant 0 : index
    %221 = vector.load %arg7[%c4_209, %c0_210, %c0_211] : memref<9x32x16xbf16, #tpu.memory_space<vmem>>, vector<1x32x16xbf16>
    %222 = vector.shape_cast %221 : vector<1x32x16xbf16> to vector<32x16xbf16>
    %cst_212 = arith.constant dense<0.000000e+00> : vector<64x16xf32>
    %223 = tpu.matmul %220, %222, %cst_212 {dimension_numbers = #tpu.dot_dimension_numbers<[1], [0], [0], [1], [0, 0, 1, 1], [], []>} : vector<64x32xbf16>, vector<32x16xbf16>, vector<64x16xf32> -> vector<64x16xf32>
    %224 = arith.addf %218, %223 : vector<64x16xf32>
    %225 = vector.extract_strided_slice %212 {offsets = [2, 0, 0], sizes = [8, 8, 32], strides = [1, 1, 1]} : vector<10x8x32xbf16> to vector<8x8x32xbf16>
    %226 = vector.shape_cast %225 : vector<8x8x32xbf16> to vector<64x32xbf16>
    %c7_213 = arith.constant 7 : index
    %c0_214 = arith.constant 0 : index
    %c0_215 = arith.constant 0 : index
    %227 = vector.load %arg7[%c7_213, %c0_214, %c0_215] : memref<9x32x16xbf16, #tpu.memory_space<vmem>>, vector<1x32x16xbf16>
    %228 = vector.shape_cast %227 : vector<1x32x16xbf16> to vector<32x16xbf16>
    %cst_216 = arith.constant dense<0.000000e+00> : vector<64x16xf32>
    %229 = tpu.matmul %226, %228, %cst_216 {dimension_numbers = #tpu.dot_dimension_numbers<[1], [0], [0], [1], [0, 0, 1, 1], [], []>} : vector<64x32xbf16>, vector<32x16xbf16>, vector<64x16xf32> -> vector<64x16xf32>
    %230 = arith.addf %224, %229 : vector<64x16xf32>
    %c0_217 = arith.constant 0 : index
    %c2_218 = arith.constant 2 : index
    %c0_219 = arith.constant 0 : index
    %231 = vector.load %arg18[%c0_217, %c2_218, %c0_219] : memref<10x10x32xf32, #tpu.memory_space<vmem>>, vector<10x8x32xf32>
    %232 = arith.truncf %231 : vector<10x8x32xf32> to vector<10x8x32xbf16>
    %233 = vector.extract_strided_slice %232 {offsets = [0, 0, 0], sizes = [8, 8, 32], strides = [1, 1, 1]} : vector<10x8x32xbf16> to vector<8x8x32xbf16>
    %234 = vector.shape_cast %233 : vector<8x8x32xbf16> to vector<64x32xbf16>
    %c2_220 = arith.constant 2 : index
    %c0_221 = arith.constant 0 : index
    %c0_222 = arith.constant 0 : index
    %235 = vector.load %arg7[%c2_220, %c0_221, %c0_222] : memref<9x32x16xbf16, #tpu.memory_space<vmem>>, vector<1x32x16xbf16>
    %236 = vector.shape_cast %235 : vector<1x32x16xbf16> to vector<32x16xbf16>
    %cst_223 = arith.constant dense<0.000000e+00> : vector<64x16xf32>
    %237 = tpu.matmul %234, %236, %cst_223 {dimension_numbers = #tpu.dot_dimension_numbers<[1], [0], [0], [1], [0, 0, 1, 1], [], []>} : vector<64x32xbf16>, vector<32x16xbf16>, vector<64x16xf32> -> vector<64x16xf32>
    %238 = arith.addf %230, %237 : vector<64x16xf32>
    %239 = vector.extract_strided_slice %232 {offsets = [1, 0, 0], sizes = [8, 8, 32], strides = [1, 1, 1]} : vector<10x8x32xbf16> to vector<8x8x32xbf16>
    %240 = vector.shape_cast %239 : vector<8x8x32xbf16> to vector<64x32xbf16>
    %c5_224 = arith.constant 5 : index
    %c0_225 = arith.constant 0 : index
    %c0_226 = arith.constant 0 : index
    %241 = vector.load %arg7[%c5_224, %c0_225, %c0_226] : memref<9x32x16xbf16, #tpu.memory_space<vmem>>, vector<1x32x16xbf16>
    %242 = vector.shape_cast %241 : vector<1x32x16xbf16> to vector<32x16xbf16>
    %cst_227 = arith.constant dense<0.000000e+00> : vector<64x16xf32>
    %243 = tpu.matmul %240, %242, %cst_227 {dimension_numbers = #tpu.dot_dimension_numbers<[1], [0], [0], [1], [0, 0, 1, 1], [], []>} : vector<64x32xbf16>, vector<32x16xbf16>, vector<64x16xf32> -> vector<64x16xf32>
    %244 = arith.addf %238, %243 : vector<64x16xf32>
    %245 = vector.extract_strided_slice %232 {offsets = [2, 0, 0], sizes = [8, 8, 32], strides = [1, 1, 1]} : vector<10x8x32xbf16> to vector<8x8x32xbf16>
    %246 = vector.shape_cast %245 : vector<8x8x32xbf16> to vector<64x32xbf16>
    %c8_228 = arith.constant 8 : index
    %c0_229 = arith.constant 0 : index
    %c0_230 = arith.constant 0 : index
    %247 = vector.load %arg7[%c8_228, %c0_229, %c0_230] : memref<9x32x16xbf16, #tpu.memory_space<vmem>>, vector<1x32x16xbf16>
    %248 = vector.shape_cast %247 : vector<1x32x16xbf16> to vector<32x16xbf16>
    %cst_231 = arith.constant dense<0.000000e+00> : vector<64x16xf32>
    %249 = tpu.matmul %246, %248, %cst_231 {dimension_numbers = #tpu.dot_dimension_numbers<[1], [0], [0], [1], [0, 0, 1, 1], [], []>} : vector<64x32xbf16>, vector<32x16xbf16>, vector<64x16xf32> -> vector<64x16xf32>
    %250 = arith.addf %244, %249 : vector<64x16xf32>
    %c0_232 = arith.constant 0 : index
    %c0_233 = arith.constant 0 : index
    %251 = vector.load %arg8[%c0_232, %c0_233] : memref<1x16xf32, #tpu.memory_space<vmem>>, vector<1x16xf32>
    %252 = vector.broadcast %251 : vector<1x16xf32> to vector<64x16xf32>
    %253 = arith.addf %250, %252 : vector<64x16xf32>
    %cst_234 = arith.constant 0.000000e+00 : f32
    %254 = vector.broadcast %cst_234 : f32 to vector<64x16xf32>
    %255 = arith.maximumf %253, %254 : vector<64x16xf32>
    %256 = arith.truncf %255 : vector<64x16xf32> to vector<64x16xbf16>
    %c0_235 = arith.constant 0 : index
    %c0_236 = arith.constant 0 : index
    %257 = vector.load %arg9[%c0_235, %c0_236] : memref<64x256xbf16, #tpu.memory_space<vmem>>, vector<64x256xbf16>
    %cst_237 = arith.constant dense<0.000000e+00> : vector<16x256xf32>
    %258 = tpu.matmul %256, %257, %cst_237 {dimension_numbers = #tpu.dot_dimension_numbers<[0], [0], [1], [1], [0, 1, 1, 1], [], []>} : vector<64x16xbf16>, vector<64x256xbf16>, vector<16x256xf32> -> vector<16x256xf32>
    %c0_238 = arith.constant 0 : index
    %c0_239 = arith.constant 0 : index
    %259 = vector.load %arg10[%c0_238, %c0_239] : memref<4x16xbf16, #tpu.memory_space<vmem>>, vector<4x16xbf16>
    %260 = arith.truncf %258 : vector<16x256xf32> to vector<16x256xbf16>
    %cst_240 = arith.constant dense<0.000000e+00> : vector<4x256xf32>
    %261 = tpu.matmul %259, %260, %cst_240 {dimension_numbers = #tpu.dot_dimension_numbers<[1], [0], [0], [1], [0, 0, 1, 1], [], []>} : vector<4x16xbf16>, vector<16x256xbf16>, vector<4x256xf32> -> vector<4x256xf32>
    %c0_241 = arith.constant 0 : index
    %c0_242 = arith.constant 0 : index
    %262 = vector.load %arg11[%c0_241, %c0_242] : memref<4x1xf32, #tpu.memory_space<vmem>>, vector<4x1xf32>
    %263 = vector.broadcast %262 : vector<4x1xf32> to vector<4x256xf32>
    %264 = arith.addf %261, %263 : vector<4x256xf32>
    %c0_243 = arith.constant 0 : index
    %c0_244 = arith.constant 0 : index
    %c0_245 = arith.constant 0 : index
    %265 = vector.load %arg12[%c0_243, %c0_244, %c0_245] : memref<1x4x256xf32, #tpu.memory_space<vmem>>, vector<1x4x256xf32>
    %266 = vector.shape_cast %265 : vector<1x4x256xf32> to vector<4x256xf32>
    %267 = vector.shape_cast %264 : vector<4x256xf32> to vector<1x4x256xf32>
    tpu.vector_store %arg12[%c0_243, %c0_244, %c0_245], %267 {strides = array<i32>} : memref<1x4x256xf32, #tpu.memory_space<vmem>>, vector<1x4x256xf32>,
    return
  }
  func.func @transform_0(%arg0: i32) -> (i32, i32, i32, i32) {
    %c0_i32 = arith.constant 0 : i32
    %c0_i32_0 = arith.constant 0 : i32
    %c0_i32_1 = arith.constant 0 : i32
    %c0_i32_2 = arith.constant 0 : i32
    return %arg0, %c0_i32, %c0_i32_0, %c0_i32_1 : i32, i32, i32, i32
  }
  func.func @transform_1(%arg0: i32) -> (i32, i32, i32) {
    %c0_i32 = arith.constant 0 : i32
    %c0_i32_0 = arith.constant 0 : i32
    %c0_i32_1 = arith.constant 0 : i32
    %c0_i32_2 = arith.constant 0 : i32
    return %c0_i32, %c0_i32_0, %c0_i32_1 : i32, i32, i32
  }
  func.func @transform_2(%arg0: i32) -> (i32, i32) {
    %c0_i32 = arith.constant 0 : i32
    %c0_i32_0 = arith.constant 0 : i32
    %c0_i32_1 = arith.constant 0 : i32
    return %c0_i32, %c0_i32_0 : i32, i32
  }
  func.func @transform_3(%arg0: i32) -> (i32, i32, i32) {
    %c0_i32 = arith.constant 0 : i32
    %c0_i32_0 = arith.constant 0 : i32
    %c0_i32_1 = arith.constant 0 : i32
    %c0_i32_2 = arith.constant 0 : i32
    return %c0_i32, %c0_i32_0, %c0_i32_1 : i32, i32, i32
  }
  func.func @transform_4(%arg0: i32) -> (i32, i32) {
    %c0_i32 = arith.constant 0 : i32
    %c0_i32_0 = arith.constant 0 : i32
    %c0_i32_1 = arith.constant 0 : i32
    return %c0_i32, %c0_i32_0 : i32, i32
  }
  func.func @transform_5(%arg0: i32) -> (i32, i32) {
    %c0_i32 = arith.constant 0 : i32
    %c0_i32_0 = arith.constant 0 : i32
    %c0_i32_1 = arith.constant 0 : i32
    return %c0_i32, %c0_i32_0 : i32, i32
  }
  func.func @transform_6(%arg0: i32) -> (i32, i32, i32) {
    %c0_i32 = arith.constant 0 : i32
    %c0_i32_0 = arith.constant 0 : i32
    %c0_i32_1 = arith.constant 0 : i32
    %c0_i32_2 = arith.constant 0 : i32
    return %c0_i32, %c0_i32_0, %c0_i32_1 : i32, i32, i32
  }
  func.func @transform_7(%arg0: i32) -> (i32, i32) {
    %c0_i32 = arith.constant 0 : i32
    %c0_i32_0 = arith.constant 0 : i32
    %c0_i32_1 = arith.constant 0 : i32
    return %c0_i32, %c0_i32_0 : i32, i32
  }
  func.func @transform_8(%arg0: i32) -> (i32, i32) {
    %c0_i32 = arith.constant 0 : i32
    %c0_i32_0 = arith.constant 0 : i32
    %c0_i32_1 = arith.constant 0 : i32
    return %c0_i32, %c0_i32_0 : i32, i32
  }
  func.func @transform_9(%arg0: i32) -> (i32, i32) {
    %c0_i32 = arith.constant 0 : i32
    %c0_i32_0 = arith.constant 0 : i32
    %c0_i32_1 = arith.constant 0 : i32
    return %c0_i32, %c0_i32_0 : i32, i32
  }
  func.func @transform_10(%arg0: i32) -> (i32, i32) {
    %c0_i32 = arith.constant 0 : i32
    %c0_i32_0 = arith.constant 0 : i32
    %c0_i32_1 = arith.constant 0 : i32
    return %c0_i32, %c0_i32_0 : i32, i32
  }
  func.func @transform_11(%arg0: i32) -> (i32, i32, i32) {
    %c0_i32 = arith.constant 0 : i32
    %c0_i32_0 = arith.constant 0 : i32
    %c0_i32_1 = arith.constant 0 : i32
    return %arg0, %c0_i32, %c0_i32_0 : i32, i32, i32
  }
}

</mosaic_0001>

<llo_original>
// kernel: simple_fcn_forward.1
$region0: #{simple_fcn_forward.1}
  #allocation0 [shape = 'u32[]', space=smem, size = 0x4, offset = 0x4, fixed_abs, tag = 'smem constant byte address 0x4 - core index']
  #allocation1 [shape = 'u32[144,128]{1,0:T(1,128)}', space=vmem, size = 0x12000, scoped, tag = 'internal scratch']
  #allocation2 [shape = 'f32[18,18,3]{2,1,0:T(8,128)}', space=vmem, size = 0x36000, scoped, tag = 'scratch operand']
  #allocation3 [shape = 'f32[16,16,16]{2,1,0:T(8,128)}', space=vmem, size = 0x20000, scoped, tag = 'scratch operand']
  #allocation4 [shape = 'f32[10,10,16]{2,1,0:T(8,128)}', space=vmem, size = 0x14000, scoped, tag = 'scratch operand']
  #allocation5 [shape = 'f32[8,8,32]{2,1,0:T(8,128)}', space=vmem, size = 0x8000, scoped, tag = 'scratch operand']
  #allocation6 [shape = 'f32[16,32]{1,0:T(8,128)}', space=vmem, size = 0x2000, scoped, tag = 'scratch operand']
  #allocation7 [shape = 'f32[10,10,32]{2,1,0:T(8,128)}', space=vmem, size = 0x14000, scoped, tag = 'scratch operand']
  %s0 = inlined_call_operand.vmem [shape: f32[2,16,16,3], index: 0, kind: input, shape index: {}]
  %s1 = inlined_call_operand.vmem [shape: bf16[9,3,16], index: 1, kind: input, shape index: {}]
  %s2 = inlined_call_operand.vmem [shape: f32[1,16], index: 2, kind: input, shape index: {}]
  %s3 = inlined_call_operand.vmem [shape: bf16[9,16,32], index: 3, kind: input, shape index: {}]
  %s4 = inlined_call_operand.vmem [shape: f32[1,32], index: 4, kind: input, shape index: {}]
  %s5 = inlined_call_operand.vmem [shape: bf16[64,16], index: 5, kind: input, shape index: {}]
  %s6 = inlined_call_operand.vmem [shape: bf16[9,32,16], index: 6, kind: input, shape index: {}]
  %s7 = inlined_call_operand.vmem [shape: f32[1,16], index: 7, kind: input, shape index: {}]
  %s8 = inlined_call_operand.vmem [shape: bf16[64,256], index: 8, kind: input, shape index: {}]
  %s9 = inlined_call_operand.vmem [shape: bf16[4,16], index: 9, kind: input, shape index: {}]
  %s10 = inlined_call_operand.vmem [shape: f32[4,1], index: 10, kind: input, shape index: {}]
  %s11 = inlined_call_operand.vmem [shape: f32[2,4,256], index: 11, kind: output, shape index: {}]
  %s12 = sld [smem:[#allocation0]]
  $region77: #{simple_fcn_forward.1} parent=0
    _
  %s14 = ssub.s32 1, %s12
  %s15 = scalar_select 0, %s14, %s12
  loop: start=0, step=1, limit=4
  $region2: #{simple_fcn_forward.1} parent=0 // loop_pre_header
    _
  $region3: #{simple_fcn_forward.1} parent=0 // loop_header
    %s17 = sphi 0, %s21
    %p18 = scmp.ge.s32.totalorder %s17, 4
    %s27 = sphi 0, %s29
    %s30 = sphi 0, %s27
    %s31 = sphi 0, %s30
    %s47 = sphi 0, %s31
    %s51 = sphi 0, %s51
    %s53 = sphi 0, %s51
    %s54 = sphi 0, %s53
    %s68 = sphi 0, %s54
    %s72 = sphi 0, %s72
    %s74 = sphi 0, %s72
    %s75 = sphi 0, %s74
    %s89 = sphi 0, %s75
    %s93 = sphi 0, %s93
    %s95 = sphi 0, %s93
    %s96 = sphi 0, %s95
    %s110 = sphi 0, %s96
    %s114 = sphi 0, %s114
    %s116 = sphi 0, %s114
    %s117 = sphi 0, %s116
    %s131 = sphi 0, %s117
    %s135 = sphi 0, %s135
    %s137 = sphi 0, %s135
    %s138 = sphi 0, %s137
    %s152 = sphi 0, %s138
    %s156 = sphi 0, %s156
    %s158 = sphi 0, %s156
    %s159 = sphi 0, %s158
    %s173 = sphi 0, %s159
    %s177 = sphi 0, %s177
    %s179 = sphi 0, %s177
    %s180 = sphi 0, %s179
    %s194 = sphi 0, %s180
    %s198 = sphi 0, %s198
    %s200 = sphi 0, %s198
    %s201 = sphi 0, %s200
    %s215 = sphi 0, %s201
    %s219 = sphi 0, %s219
    %s221 = sphi 0, %s219
    %s222 = sphi 0, %s221
    %s236 = sphi 0, %s222
    %s240 = sphi 0, %s240
    %s242 = sphi 0, %s240
    %s243 = sphi 0, %s242
    %s257 = sphi 0, %s243
    %s263 = sphi 0, %s265
    %s266 = sphi 0, %s263
    %s267 = sphi 0, %s266
    %s283 = sphi 0, %s267
  $region4: #{simple_fcn_forward.1} parent=0 // loop_header_branch
    %20 = sbr.rel (%p18) target = $region8
  $region5: #{simple_fcn_forward.1} parent=0 // loop_body
    %s22 = ssub.s32 %s17, 1
    %s23 = ssub.s32 %s17, 2
    %s24 = sadd.s32 %s17, 1
    %s25 = ssub.s32 %s17, %s24
    %p26 = scmp.eq.s32.totalorder %s25, 0
    %s28 = sadd.s32 %s27, 1
    %s29 = scalar_select %p26, %s27, %s28
    %p32 = pneg %p26
    %p33 = scmp.eq.s32.totalorder %s17, 1
    %p34 = por %p32, %p33
    %p35 = scmp.ne.s32.totalorder %s27, %s30
    %p36 = scmp.eq.s32.totalorder %s17, 0
    %p37 = por %p35, %p36
    %p38 = scmp.ne.s32.totalorder %s27, %s30
    %p39 = scmp.eq.s32.totalorder %s22, 1
    %p40 = por %p38, %p39
    %p41 = scmp.ne.s32.totalorder %s30, %s31
    %p42 = scmp.eq.s32.totalorder %s22, 0
    %p43 = por %p41, %p42
    %p44 = scmp.ne.s32.totalorder %s30, %s31
    %p45 = scmp.eq.s32.totalorder %s23, 1
    %p46 = por %p44, %p45
    %p48 = scmp.ne.s32.totalorder %s31, %s47
    %p49 = scmp.eq.s32.totalorder %s23, 0
    %p50 = por %p48, %p49
    %s52 = sadd.s32 %s51, 1
    %p55 = scmp.eq.s32.totalorder %s17, 1
    %p56 = scmp.ne.s32.totalorder %s51, %s53
    %p57 = scmp.eq.s32.totalorder %s17, 0
    %p58 = por %p56, %p57
    %p59 = scmp.ne.s32.totalorder %s51, %s53
    %p60 = scmp.eq.s32.totalorder %s22, 1
    %p61 = por %p59, %p60
    %p62 = scmp.ne.s32.totalorder %s53, %s54
    %p63 = scmp.eq.s32.totalorder %s22, 0
    %p64 = por %p62, %p63
    %p65 = scmp.ne.s32.totalorder %s53, %s54
    %p66 = scmp.eq.s32.totalorder %s23, 1
    %p67 = por %p65, %p66
    %p69 = scmp.ne.s32.totalorder %s54, %s68
    %p70 = scmp.eq.s32.totalorder %s23, 0
    %p71 = por %p69, %p70
    %s73 = sadd.s32 %s72, 1
    %p76 = scmp.eq.s32.totalorder %s17, 1
    %p77 = scmp.ne.s32.totalorder %s72, %s74
    %p78 = scmp.eq.s32.totalorder %s17, 0
    %p79 = por %p77, %p78
    %p80 = scmp.ne.s32.totalorder %s72, %s74
    %p81 = scmp.eq.s32.totalorder %s22, 1
    %p82 = por %p80, %p81
    %p83 = scmp.ne.s32.totalorder %s74, %s75
    %p84 = scmp.eq.s32.totalorder %s22, 0
    %p85 = por %p83, %p84
    %p86 = scmp.ne.s32.totalorder %s74, %s75
    %p87 = scmp.eq.s32.totalorder %s23, 1
    %p88 = por %p86, %p87
    %p90 = scmp.ne.s32.totalorder %s75, %s89
    %p91 = scmp.eq.s32.totalorder %s23, 0
    %p92 = por %p90, %p91
    %s94 = sadd.s32 %s93, 1
    %p97 = scmp.eq.s32.totalorder %s17, 1
    %p98 = scmp.ne.s32.totalorder %s93, %s95
    %p99 = scmp.eq.s32.totalorder %s17, 0
    %p100 = por %p98, %p99
    %p101 = scmp.ne.s32.totalorder %s93, %s95
    %p102 = scmp.eq.s32.totalorder %s22, 1
    %p103 = por %p101, %p102
    %p104 = scmp.ne.s32.totalorder %s95, %s96
    %p105 = scmp.eq.s32.totalorder %s22, 0
    %p106 = por %p104, %p105
    %p107 = scmp.ne.s32.totalorder %s95, %s96
    %p108 = scmp.eq.s32.totalorder %s23, 1
    %p109 = por %p107, %p108
    %p111 = scmp.ne.s32.totalorder %s96, %s110
    %p112 = scmp.eq.s32.totalorder %s23, 0
    %p113 = por %p111, %p112
    %s115 = sadd.s32 %s114, 1
    %p118 = scmp.eq.s32.totalorder %s17, 1
    %p119 = scmp.ne.s32.totalorder %s114, %s116
    %p120 = scmp.eq.s32.totalorder %s17, 0
    %p121 = por %p119, %p120
    %p122 = scmp.ne.s32.totalorder %s114, %s116
    %p123 = scmp.eq.s32.totalorder %s22, 1
    %p124 = por %p122, %p123
    %p125 = scmp.ne.s32.totalorder %s116, %s117
    %p126 = scmp.eq.s32.totalorder %s22, 0
    %p127 = por %p125, %p126
    %p128 = scmp.ne.s32.totalorder %s116, %s117
    %p129 = scmp.eq.s32.totalorder %s23, 1
    %p130 = por %p128, %p129
    %p132 = scmp.ne.s32.totalorder %s117, %s131
    %p133 = scmp.eq.s32.totalorder %s23, 0
    %p134 = por %p132, %p133
    %s136 = sadd.s32 %s135, 1
    %p139 = scmp.eq.s32.totalorder %s17, 1
    %p140 = scmp.ne.s32.totalorder %s135, %s137
    %p141 = scmp.eq.s32.totalorder %s17, 0
    %p142 = por %p140, %p141
    %p143 = scmp.ne.s32.totalorder %s135, %s137
    %p144 = scmp.eq.s32.totalorder %s22, 1
    %p145 = por %p143, %p144
    %p146 = scmp.ne.s32.totalorder %s137, %s138
    %p147 = scmp.eq.s32.totalorder %s22, 0
    %p148 = por %p146, %p147
    %p149 = scmp.ne.s32.totalorder %s137, %s138
    %p150 = scmp.eq.s32.totalorder %s23, 1
    %p151 = por %p149, %p150
    %p153 = scmp.ne.s32.totalorder %s138, %s152
    %p154 = scmp.eq.s32.totalorder %s23, 0
    %p155 = por %p153, %p154
    %s157 = sadd.s32 %s156, 1
    %p160 = scmp.eq.s32.totalorder %s17, 1
    %p161 = scmp.ne.s32.totalorder %s156, %s158
    %p162 = scmp.eq.s32.totalorder %s17, 0
    %p163 = por %p161, %p162
    %p164 = scmp.ne.s32.totalorder %s156, %s158
    %p165 = scmp.eq.s32.totalorder %s22, 1
    %p166 = por %p164, %p165
    %p167 = scmp.ne.s32.totalorder %s158, %s159
    %p168 = scmp.eq.s32.totalorder %s22, 0
    %p169 = por %p167, %p168
    %p170 = scmp.ne.s32.totalorder %s158, %s159
    %p171 = scmp.eq.s32.totalorder %s23, 1
    %p172 = por %p170, %p171
    %p174 = scmp.ne.s32.totalorder %s159, %s173
    %p175 = scmp.eq.s32.totalorder %s23, 0
    %p176 = por %p174, %p175
    %s178 = sadd.s32 %s177, 1
    %p181 = scmp.eq.s32.totalorder %s17, 1
    %p182 = scmp.ne.s32.totalorder %s177, %s179
    %p183 = scmp.eq.s32.totalorder %s17, 0
    %p184 = por %p182, %p183
    %p185 = scmp.ne.s32.totalorder %s177, %s179
    %p186 = scmp.eq.s32.totalorder %s22, 1
    %p187 = por %p185, %p186
    %p188 = scmp.ne.s32.totalorder %s179, %s180
    %p189 = scmp.eq.s32.totalorder %s22, 0
    %p190 = por %p188, %p189
    %p191 = scmp.ne.s32.totalorder %s179, %s180
    %p192 = scmp.eq.s32.totalorder %s23, 1
    %p193 = por %p191, %p192
    %p195 = scmp.ne.s32.totalorder %s180, %s194
    %p196 = scmp.eq.s32.totalorder %s23, 0
    %p197 = por %p195, %p196
    %s199 = sadd.s32 %s198, 1
    %p202 = scmp.eq.s32.totalorder %s17, 1
    %p203 = scmp.ne.s32.totalorder %s198, %s200
    %p204 = scmp.eq.s32.totalorder %s17, 0
    %p205 = por %p203, %p204
    %p206 = scmp.ne.s32.totalorder %s198, %s200
    %p207 = scmp.eq.s32.totalorder %s22, 1
    %p208 = por %p206, %p207
    %p209 = scmp.ne.s32.totalorder %s200, %s201
    %p210 = scmp.eq.s32.totalorder %s22, 0
    %p211 = por %p209, %p210
    %p212 = scmp.ne.s32.totalorder %s200, %s201
    %p213 = scmp.eq.s32.totalorder %s23, 1
    %p214 = por %p212, %p213
    %p216 = scmp.ne.s32.totalorder %s201, %s215
    %p217 = scmp.eq.s32.totalorder %s23, 0
    %p218 = por %p216, %p217
    %s220 = sadd.s32 %s219, 1
    %p223 = scmp.eq.s32.totalorder %s17, 1
    %p224 = scmp.ne.s32.totalorder %s219, %s221
    %p225 = scmp.eq.s32.totalorder %s17, 0
    %p226 = por %p224, %p225
    %p227 = scmp.ne.s32.totalorder %s219, %s221
    %p228 = scmp.eq.s32.totalorder %s22, 1
    %p229 = por %p227, %p228
    %p230 = scmp.ne.s32.totalorder %s221, %s222
    %p231 = scmp.eq.s32.totalorder %s22, 0
    %p232 = por %p230, %p231
    %p233 = scmp.ne.s32.totalorder %s221, %s222
    %p234 = scmp.eq.s32.totalorder %s23, 1
    %p235 = por %p233, %p234
    %p237 = scmp.ne.s32.totalorder %s222, %s236
    %p238 = scmp.eq.s32.totalorder %s23, 0
    %p239 = por %p237, %p238
    %s241 = sadd.s32 %s240, 1
    %p244 = scmp.eq.s32.totalorder %s17, 1
    %p245 = scmp.ne.s32.totalorder %s240, %s242
    %p246 = scmp.eq.s32.totalorder %s17, 0
    %p247 = por %p245, %p246
    %p248 = scmp.ne.s32.totalorder %s240, %s242
    %p249 = scmp.eq.s32.totalorder %s22, 1
    %p250 = por %p248, %p249
    %p251 = scmp.ne.s32.totalorder %s242, %s243
    %p252 = scmp.eq.s32.totalorder %s22, 0
    %p253 = por %p251, %p252
    %p254 = scmp.ne.s32.totalorder %s242, %s243
    %p255 = scmp.eq.s32.totalorder %s23, 1
    %p256 = por %p254, %p255
    %p258 = scmp.ne.s32.totalorder %s243, %s257
    %p259 = scmp.eq.s32.totalorder %s23, 0
    %p260 = por %p258, %p259
    %s261 = ssub.s32 %s17, %s24
    %p262 = scmp.eq.s32.totalorder %s261, 0
    %s264 = sadd.s32 %s263, 1
    %s265 = scalar_select %p262, %s263, %s264
    %p268 = pneg %p262
    %p269 = scmp.eq.s32.totalorder %s17, 1
    %p270 = por %p268, %p269
    %p271 = scmp.ne.s32.totalorder %s263, %s266
    %p272 = scmp.eq.s32.totalorder %s17, 0
    %p273 = por %p271, %p272
    %p274 = scmp.ne.s32.totalorder %s263, %s266
    %p275 = scmp.eq.s32.totalorder %s22, 1
    %p276 = por %p274, %p275
    %p277 = scmp.ne.s32.totalorder %s266, %s267
    %p278 = scmp.eq.s32.totalorder %s22, 0
    %p279 = por %p277, %p278
    %p280 = scmp.ne.s32.totalorder %s266, %s267
    %p281 = scmp.eq.s32.totalorder %s23, 1
    %p282 = por %p280, %p281
    %p284 = scmp.ne.s32.totalorder %s267, %s283
    %p285 = scmp.eq.s32.totalorder %s23, 0
    %p286 = por %p284, %p285
    %p287 = scmp.le.s32.totalorder 1, %s17
    %p288 = scmp.lt.s32.totalorder %s17, 3
    %p289 = pnand %p287, %p288
    %p290 = pneg %p289
    // Predicated region
    $region9: #{simple_fcn_forward.1} parent=5 // pred_check
      _
    $region10: #{simple_fcn_forward.1} parent=5 // pred_check_branch
      %292 = sbr.rel (%p289) target = $region12
    $region11: #{simple_fcn_forward.1} parent=5 // pred_region
      %s293 = ssub.s32 %s17, 1
      // Predicated region
      $region13: #{simple_fcn_forward.1} parent=11 // pred_check
        %p294 = pneg %p64
      $region14: #{simple_fcn_forward.1} parent=11 // pred_check_branch
        %296 = sbr.rel (%p294) target = $region16
      $region15: #{simple_fcn_forward.1} parent=11 // pred_region
        _
      $region16: #{simple_fcn_forward.1} parent=11 // pred_fallthru
        _
      // Predicated region
      $region17: #{simple_fcn_forward.1} parent=11 // pred_check
        %p297 = pneg %p85
      $region18: #{simple_fcn_forward.1} parent=11 // pred_check_branch
        %299 = sbr.rel (%p297) target = $region20
      $region19: #{simple_fcn_forward.1} parent=11 // pred_region
        _
      $region20: #{simple_fcn_forward.1} parent=11 // pred_fallthru
        _
      // Predicated region
      $region21: #{simple_fcn_forward.1} parent=11 // pred_check
        %p300 = pneg %p106
      $region22: #{simple_fcn_forward.1} parent=11 // pred_check_branch
        %302 = sbr.rel (%p300) target = $region24
      $region23: #{simple_fcn_forward.1} parent=11 // pred_region
        _
      $region24: #{simple_fcn_forward.1} parent=11 // pred_fallthru
        _
      // Predicated region
      $region25: #{simple_fcn_forward.1} parent=11 // pred_check
        %p303 = pneg %p127
      $region26: #{simple_fcn_forward.1} parent=11 // pred_check_branch
        %305 = sbr.rel (%p303) target = $region28
      $region27: #{simple_fcn_forward.1} parent=11 // pred_region
        _
      $region28: #{simple_fcn_forward.1} parent=11 // pred_fallthru
        _
      // Predicated region
      $region29: #{simple_fcn_forward.1} parent=11 // pred_check
        %p306 = pneg %p148
      $region30: #{simple_fcn_forward.1} parent=11 // pred_check_branch
        %308 = sbr.rel (%p306) target = $region32
      $region31: #{simple_fcn_forward.1} parent=11 // pred_region
        _
      $region32: #{simple_fcn_forward.1} parent=11 // pred_fallthru
        _
      // Predicated region
      $region33: #{simple_fcn_forward.1} parent=11 // pred_check
        %p309 = pneg %p169
      $region34: #{simple_fcn_forward.1} parent=11 // pred_check_branch
        %311 = sbr.rel (%p309) target = $region36
      $region35: #{simple_fcn_forward.1} parent=11 // pred_region
        _
      $region36: #{simple_fcn_forward.1} parent=11 // pred_fallthru
        _
      // Predicated region
      $region37: #{simple_fcn_forward.1} parent=11 // pred_check
        %p312 = pneg %p190
      $region38: #{simple_fcn_forward.1} parent=11 // pred_check_branch
        %314 = sbr.rel (%p312) target = $region40
      $region39: #{simple_fcn_forward.1} parent=11 // pred_region
        _
      $region40: #{simple_fcn_forward.1} parent=11 // pred_fallthru
        _
      // Predicated region
      $region41: #{simple_fcn_forward.1} parent=11 // pred_check
        %p315 = pneg %p211
      $region42: #{simple_fcn_forward.1} parent=11 // pred_check_branch
        %317 = sbr.rel (%p315) target = $region44
      $region43: #{simple_fcn_forward.1} parent=11 // pred_region
        _
      $region44: #{simple_fcn_forward.1} parent=11 // pred_fallthru
        _
      // Predicated region
      $region45: #{simple_fcn_forward.1} parent=11 // pred_check
        %p318 = pneg %p232
      $region46: #{simple_fcn_forward.1} parent=11 // pred_check_branch
        %320 = sbr.rel (%p318) target = $region48
      $region47: #{simple_fcn_forward.1} parent=11 // pred_region
        _
      $region48: #{simple_fcn_forward.1} parent=11 // pred_fallthru
        _
      // Predicated region
      $region49: #{simple_fcn_forward.1} parent=11 // pred_check
        %p321 = pneg %p253
      $region50: #{simple_fcn_forward.1} parent=11 // pred_check_branch
        %323 = sbr.rel (%p321) target = $region52
      $region51: #{simple_fcn_forward.1} parent=11 // pred_region
        _
      $region52: #{simple_fcn_forward.1} parent=11 // pred_fallthru
        _
    $region12: #{simple_fcn_forward.1} parent=5 // pred_fallthru
      _
    %p324 = scmp.lt.s32.totalorder %s17, 2
    // Predicated region
    $region53: #{simple_fcn_forward.1} parent=5 // pred_check
      %p325 = pneg %p324
    $region54: #{simple_fcn_forward.1} parent=5 // pred_check_branch
      %327 = sbr.rel (%p325) target = $region56
    $region55: #{simple_fcn_forward.1} parent=5 // pred_region
      // Predicated region
      $region57: #{simple_fcn_forward.1} parent=55 // pred_check
        %p328 = pneg %p37
      $region58: #{simple_fcn_forward.1} parent=55 // pred_check_branch
        %330 = sbr.rel (%p328) target = $region60
      $region59: #{simple_fcn_forward.1} parent=55 // pred_region
        %p331 = scmp.lt.s32.totalorder %s17, 1
        %s332 = scalar_select %p331, %s17, 1
        %s333 = smul.addr %s332, 32
        %s334 = smul.addr %s333, 8
        %s335 = scalar_lea.vmem %s0, %s334
      $region60: #{simple_fcn_forward.1} parent=55 // pred_fallthru
        _
    $region56: #{simple_fcn_forward.1} parent=5 // pred_fallthru
      _
    %p336 = scmp.le.s32.totalorder 1, %s17
    %p337 = scmp.lt.s32.totalorder %s17, 3
    %p338 = pnand %p336, %p337
    %p339 = pneg %p338
    // Predicated region
    $region61: #{simple_fcn_forward.1} parent=5 // pred_check
      _
    $region62: #{simple_fcn_forward.1} parent=5 // pred_check_branch
      %341 = sbr.rel (%p338) target = $region64
    $region63: #{simple_fcn_forward.1} parent=5 // pred_region
      %s342 = ssub.s32 %s17, 1
      %p343 = scmp.lt.s32.totalorder %s22, 1
      %s344 = scalar_select %p343, %s22, 1
      %s345 = smul.addr %s344, 32
      %s346 = smul.addr %s345, 8
      %s347 = scalar_lea.vmem %s0, %s346
      %p348 = pneg %p43
      %p349 = pneg %p40
      %p350 = pneg %p64
      %p351 = pneg %p61
      %p352 = pneg %p85
      %p353 = pneg %p82
      %p354 = pneg %p106
      %p355 = pneg %p103
      %p356 = pneg %p127
      %p357 = pneg %p124
      %p358 = pneg %p148
      %p359 = pneg %p145
      %p360 = pneg %p169
      %p361 = pneg %p166
      %p362 = pneg %p190
      %p363 = pneg %p187
      %p364 = pneg %p211
      %p365 = pneg %p208
      %p366 = pneg %p232
      %p367 = pneg %p229
      %p368 = pneg %p253
      %p369 = pneg %p250
      %p370 = pneg %p279
      %p371 = pneg %p276
      %p372 = scmp.lt.s32.totalorder %s22, 1
      %s373 = scalar_select %p372, %s22, 1
      %s374 = smul.addr %s373, 2
      %s375 = smul.addr %s374, 4
      %s376 = scalar_lea.vmem %s11, %s375
      %p377 = scmp.lt.s32.totalorder %s22, 1
      %s378 = scalar_select %p377, %s22, 1
      %s379 = smul.addr %s378, 32
      %s380 = smul.addr %s379, 8
      %s381 = scalar_lea.vmem %s0, %s380
      %p382 = scmp.lt.s32.totalorder %s22, 1
      %s383 = scalar_select %p382, %s22, 1
      %s384 = smul.addr %s383, 2
      %s385 = smul.addr %s384, 4
      %s386 = scalar_lea.vmem %s11, %s385
      %vm388 = vcmask 23552
      %389 = vst.msk [vmem:[#allocation2] sm:$0xff] %vm388, 0.0
      %390 = vst.msk [vmem:[#allocation2 + $0x8] sm:$0xff] %vm388, 0.0
      %vm391 = vcmask 17408
      %392 = vst.msk [vmem:[#allocation2 + $0x10] sm:$0x3] %vm391, 0.0
      %s393 = scalar_lea.vmem [#allocation2], 408
      %394 = vst.msk [vmem:[%s393] sm:$0xff] %vm388, 0.0
      %395 = vst.msk [vmem:[%s393 + $0x8] sm:$0xff] %vm388, 0.0
      %396 = vst.msk [vmem:[%s393 + $0x10] sm:$0x3] %vm391, 0.0
      %vm397 = vcmask 16384
      %398 = vst.msk [vmem:[#allocation2] sm:$0x1] %vm397, 0.0
      %399 = vst.msk [vmem:[#allocation2 + $0x18] sm:$0x1] %vm397, 0.0
      %400 = vst.msk [vmem:[#allocation2 + $0x30] sm:$0x1] %vm397, 0.0
      %401 = vst.msk [vmem:[#allocation2 + $0x48] sm:$0x1] %vm397, 0.0
      %402 = vst.msk [vmem:[#allocation2 + $0x60] sm:$0x1] %vm397, 0.0
      %403 = vst.msk [vmem:[#allocation2 + $0x78] sm:$0x1] %vm397, 0.0
      %404 = vst.msk [vmem:[#allocation2 + $0x90] sm:$0x1] %vm397, 0.0
      %405 = vst.msk [vmem:[#allocation2 + $0xa8] sm:$0x1] %vm397, 0.0
      %406 = vst.msk [vmem:[#allocation2 + $0xc0] sm:$0x1] %vm397, 0.0
      %407 = vst.msk [vmem:[#allocation2 + $0xd8] sm:$0x1] %vm397, 0.0
      %408 = vst.msk [vmem:[#allocation2 + $0xf0] sm:$0x1] %vm397, 0.0
      %409 = vst.msk [vmem:[#allocation2 + $0x108] sm:$0x1] %vm397, 0.0
      %410 = vst.msk [vmem:[#allocation2 + $0x120] sm:$0x1] %vm397, 0.0
      %411 = vst.msk [vmem:[#allocation2 + $0x138] sm:$0x1] %vm397, 0.0
      %412 = vst.msk [vmem:[#allocation2 + $0x150] sm:$0x1] %vm397, 0.0
      %413 = vst.msk [vmem:[#allocation2 + $0x168] sm:$0x1] %vm397, 0.0
      %414 = vst.msk [vmem:[#allocation2 + $0x180] sm:$0x1] %vm397, 0.0
      %415 = vst.msk [vmem:[#allocation2 + $0x198] sm:$0x1] %vm397, 0.0
      %416 = vst.msk [vmem:[#allocation2 + $0x11] sm:$0x1] %vm397, 0.0
      %417 = vst.msk [vmem:[#allocation2 + $0x29] sm:$0x1] %vm397, 0.0
      %418 = vst.msk [vmem:[#allocation2 + $0x41] sm:$0x1] %vm397, 0.0
      %419 = vst.msk [vmem:[#allocation2 + $0x59] sm:$0x1] %vm397, 0.0
      %420 = vst.msk [vmem:[#allocation2 + $0x71] sm:$0x1] %vm397, 0.0
      %421 = vst.msk [vmem:[#allocation2 + $0x89] sm:$0x1] %vm397, 0.0
      %422 = vst.msk [vmem:[#allocation2 + $0xa1] sm:$0x1] %vm397, 0.0
      %423 = vst.msk [vmem:[#allocation2 + $0xb9] sm:$0x1] %vm397, 0.0
      %424 = vst.msk [vmem:[#allocation2 + $0xd1] sm:$0x1] %vm397, 0.0
      %425 = vst.msk [vmem:[#allocation2 + $0xe9] sm:$0x1] %vm397, 0.0
      %426 = vst.msk [vmem:[#allocation2 + $0x101] sm:$0x1] %vm397, 0.0
      %427 = vst.msk [vmem:[#allocation2 + $0x119] sm:$0x1] %vm397, 0.0
      %428 = vst.msk [vmem:[#allocation2 + $0x131] sm:$0x1] %vm397, 0.0
      %429 = vst.msk [vmem:[#allocation2 + $0x149] sm:$0x1] %vm397, 0.0
      %430 = vst.msk [vmem:[#allocation2 + $0x161] sm:$0x1] %vm397, 0.0
      %431 = vst.msk [vmem:[#allocation2 + $0x179] sm:$0x1] %vm397, 0.0
      %432 = vst.msk [vmem:[#allocation2 + $0x191] sm:$0x1] %vm397, 0.0
      %433 = vst.msk [vmem:[#allocation2 + $0x1a9] sm:$0x1] %vm397, 0.0
      %v434 = vld [vmem:[%s381] sm:$0xff]
      %v435 = vld [vmem:[%s381 + $0x8] sm:$0xff]
      %v436 = vld [vmem:[%s381 + $0x10] sm:$0xff]
      %v437 = vld [vmem:[%s381 + $0x18] sm:$0xff]
      %v438 = vld [vmem:[%s381 + $0x20] sm:$0xff]
      %v439 = vld [vmem:[%s381 + $0x28] sm:$0xff]
      %v440 = vld [vmem:[%s381 + $0x30] sm:$0xff]
      %v441 = vld [vmem:[%s381 + $0x38] sm:$0xff]
      %v442 = vld [vmem:[%s381 + $0x40] sm:$0xff]
      %v443 = vld [vmem:[%s381 + $0x48] sm:$0xff]
      %v444 = vld [vmem:[%s381 + $0x50] sm:$0xff]
      %v445 = vld [vmem:[%s381 + $0x58] sm:$0xff]
      %v446 = vld [vmem:[%s381 + $0x60] sm:$0xff]
      %v447 = vld [vmem:[%s381 + $0x68] sm:$0xff]
      %v448 = vld [vmem:[%s381 + $0x70] sm:$0xff]
      %v449 = vld [vmem:[%s381 + $0x78] sm:$0xff]
      %v450 = vld [vmem:[%s381 + $0x80] sm:$0xff]
      %v451 = vld [vmem:[%s381 + $0x88] sm:$0xff]
      %v452 = vld [vmem:[%s381 + $0x90] sm:$0xff]
      %v453 = vld [vmem:[%s381 + $0x98] sm:$0xff]
      %v454 = vld [vmem:[%s381 + $0xa0] sm:$0xff]
      %v455 = vld [vmem:[%s381 + $0xa8] sm:$0xff]
      %v456 = vld [vmem:[%s381 + $0xb0] sm:$0xff]
      %v457 = vld [vmem:[%s381 + $0xb8] sm:$0xff]
      %v458 = vld [vmem:[%s381 + $0xc0] sm:$0xff]
      %v459 = vld [vmem:[%s381 + $0xc8] sm:$0xff]
      %v460 = vld [vmem:[%s381 + $0xd0] sm:$0xff]
      %v461 = vld [vmem:[%s381 + $0xd8] sm:$0xff]
      %v462 = vld [vmem:[%s381 + $0xe0] sm:$0xff]
      %v463 = vld [vmem:[%s381 + $0xe8] sm:$0xff]
      %v464 = vld [vmem:[%s381 + $0xf0] sm:$0xff]
      %v465 = vld [vmem:[%s381 + $0xf8] sm:$0xff]
      %s466 = scalar_lea.vmem [#allocation2], 24
      %467 = vst.msk [vmem:[%s466 + $0x1] sm:$0xff] %vm388, %v434
      %468 = vst.msk [vmem:[%s466 + $0x9] sm:$0xff] %vm388, %v435
      %469 = vst.msk [vmem:[%s466 + $0x19] sm:$0xff] %vm388, %v436
      %470 = vst.msk [vmem:[%s466 + $0x21] sm:$0xff] %vm388, %v437
      %471 = vst.msk [vmem:[%s466 + $0x31] sm:$0xff] %vm388, %v438
      %472 = vst.msk [vmem:[%s466 + $0x39] sm:$0xff] %vm388, %v439
      %473 = vst.msk [vmem:[%s466 + $0x49] sm:$0xff] %vm388, %v440
      %474 = vst.msk [vmem:[%s466 + $0x51] sm:$0xff] %vm388, %v441
      %475 = vst.msk [vmem:[%s466 + $0x61] sm:$0xff] %vm388, %v442
      %476 = vst.msk [vmem:[%s466 + $0x69] sm:$0xff] %vm388, %v443
      %477 = vst.msk [vmem:[%s466 + $0x79] sm:$0xff] %vm388, %v444
      %478 = vst.msk [vmem:[%s466 + $0x81] sm:$0xff] %vm388, %v445
      %479 = vst.msk [vmem:[%s466 + $0x91] sm:$0xff] %vm388, %v446
      %480 = vst.msk [vmem:[%s466 + $0x99] sm:$0xff] %vm388, %v447
      %481 = vst.msk [vmem:[%s466 + $0xa9] sm:$0xff] %vm388, %v448
      %482 = vst.msk [vmem:[%s466 + $0xb1] sm:$0xff] %vm388, %v449
      %483 = vst.msk [vmem:[%s466 + $0xc1] sm:$0xff] %vm388, %v450
      %484 = vst.msk [vmem:[%s466 + $0xc9] sm:$0xff] %vm388, %v451
      %485 = vst.msk [vmem:[%s466 + $0xd9] sm:$0xff] %vm388, %v452
      %486 = vst.msk [vmem:[%s466 + $0xe1] sm:$0xff] %vm388, %v453
      %487 = vst.msk [vmem:[%s466 + $0xf1] sm:$0xff] %vm388, %v454
      %488 = vst.msk [vmem:[%s466 + $0xf9] sm:$0xff] %vm388, %v455
      %489 = vst.msk [vmem:[%s466 + $0x109] sm:$0xff] %vm388, %v456
      %490 = vst.msk [vmem:[%s466 + $0x111] sm:$0xff] %vm388, %v457
      %491 = vst.msk [vmem:[%s466 + $0x121] sm:$0xff] %vm388, %v458
      %492 = vst.msk [vmem:[%s466 + $0x129] sm:$0xff] %vm388, %v459
      %493 = vst.msk [vmem:[%s466 + $0x139] sm:$0xff] %vm388, %v460
      %494 = vst.msk [vmem:[%s466 + $0x141] sm:$0xff] %vm388, %v461
      %495 = vst.msk [vmem:[%s466 + $0x151] sm:$0xff] %vm388, %v462
      %496 = vst.msk [vmem:[%s466 + $0x159] sm:$0xff] %vm388, %v463
      %497 = vst.msk [vmem:[%s466 + $0x169] sm:$0xff] %vm388, %v464
      %498 = vst.msk [vmem:[%s466 + $0x171] sm:$0xff] %vm388, %v465
      %v499 = vld [vmem:[#allocation2] sm:$0xff]
      %v500 = vld [vmem:[#allocation2 + $0x8] sm:$0xff]
      %v501 = vld [vmem:[#allocation2 + $0x18] sm:$0xff]
      %v502 = vld [vmem:[#allocation2 + $0x20] sm:$0xff]
      %v503 = vld [vmem:[#allocation2 + $0x30] sm:$0xff]
      %v504 = vld [vmem:[#allocation2 + $0x38] sm:$0xff]
      %v505 = vld [vmem:[#allocation2 + $0x48] sm:$0xff]
      %v506 = vld [vmem:[#allocation2 + $0x50] sm:$0xff]
      %v507 = vld [vmem:[#allocation2 + $0x60] sm:$0xff]
      %v508 = vld [vmem:[#allocation2 + $0x68] sm:$0xff]
      %v509 = vld [vmem:[#allocation2 + $0x78] sm:$0xff]
      %v510 = vld [vmem:[#allocation2 + $0x80] sm:$0xff]
      %v511 = vld [vmem:[#allocation2 + $0x90] sm:$0xff]
      %v512 = vld [vmem:[#allocation2 + $0x98] sm:$0xff]
      %v513 = vld [vmem:[#allocation2 + $0xa8] sm:$0xff]
      %v514 = vld [vmem:[#allocation2 + $0xb0] sm:$0xff]
      %v515 = vld [vmem:[#allocation2 + $0xc0] sm:$0xff]
      %v516 = vld [vmem:[#allocation2 + $0xc8] sm:$0xff]
      %v517 = vld [vmem:[#allocation2 + $0xd8] sm:$0xff]
      %v518 = vld [vmem:[#allocation2 + $0xe0] sm:$0xff]
      %v519 = vld [vmem:[#allocation2 + $0xf0] sm:$0xff]
      %v520 = vld [vmem:[#allocation2 + $0xf8] sm:$0xff]
      %v521 = vld [vmem:[#allocation2 + $0x108] sm:$0xff]
      %v522 = vld [vmem:[#allocation2 + $0x110] sm:$0xff]
      %v523 = vld [vmem:[#allocation2 + $0x120] sm:$0xff]
      %v524 = vld [vmem:[#allocation2 + $0x128] sm:$0xff]
      %v525 = vld [vmem:[#allocation2 + $0x138] sm:$0xff]
      %v526 = vld [vmem:[#allocation2 + $0x140] sm:$0xff]
      %v527 = vld [vmem:[#allocation2 + $0x150] sm:$0xff]
      %v528 = vld [vmem:[#allocation2 + $0x158] sm:$0xff]
      %v529 = vld [vmem:[#allocation2 + $0x168] sm:$0xff]
      %v530 = vld [vmem:[#allocation2 + $0x170] sm:$0xff]
      %v531 = vld [vmem:[#allocation2 + $0x180] sm:$0xff]
      %v532 = vld [vmem:[#allocation2 + $0x188] sm:$0xff]
      %v533 = vld [vmem:[#allocation2 + $0x198] sm:$0xff]
      %v534 = vld [vmem:[#allocation2 + $0x1a0] sm:$0xff]
      %v535 = vpack.c.bf16 %v500, %v499
      %v536 = vpack.c.bf16 %v502, %v501
      %v537 = vpack.c.bf16 %v504, %v503
      %v538 = vpack.c.bf16 %v506, %v505
      %v539 = vpack.c.bf16 %v508, %v507
      %v540 = vpack.c.bf16 %v510, %v509
      %v541 = vpack.c.bf16 %v512, %v511
      %v542 = vpack.c.bf16 %v514, %v513
      %v543 = vpack.c.bf16 %v516, %v515
      %v544 = vpack.c.bf16 %v518, %v517
      %v545 = vpack.c.bf16 %v520, %v519
      %v546 = vpack.c.bf16 %v522, %v521
      %v547 = vpack.c.bf16 %v524, %v523
      %v548 = vpack.c.bf16 %v526, %v525
      %v549 = vpack.c.bf16 %v528, %v527
      %v550 = vpack.c.bf16 %v530, %v529
      %v551 = vpack.c.bf16 %v532, %v531
      %v552 = vpack.c.bf16 %v534, %v533
      %v553 = vld [vmem:[%s1] sm:$0x3]
      %s554 = scalar_lea.vmem %s1, 6
      %v555 = vld [vmem:[%s554] sm:$0x3]
      %v557 = vsel %vm388, %v536, 0
      %v560 = vsel %vm388, %v537, 0
      %v563 = vsel %vm388, %v538, 0
      %v566 = vsel %vm388, %v539, 0
      %v569 = vsel %vm388, %v540, 0
      %v572 = vsel %vm388, %v541, 0
      %v575 = vsel %vm388, %v542, 0
      %v578 = vsel %vm388, %v543, 0
      %v581 = vsel %vm388, %v544, 0
      %v584 = vsel %vm388, %v545, 0
      %v587 = vsel %vm388, %v546, 0
      %v590 = vsel %vm388, %v547, 0
      %v593 = vsel %vm388, %v548, 0
      %v596 = vsel %vm388, %v549, 0
      %v599 = vsel %vm388, %v550, 0
      %v602 = vsel %vm388, %v551, 0
      %vm604 = vcmask 1040384
      %vm605 = vcmask 1041408
      %v606 = vsel %vm604, 4294967295, 65535
      %v607 = vsel %vm605, %v606, 0
      %v609 = vand.u32 %v555, %v607
      %611 = vmatprep.subr.bf16.mxu0 0
      %612 = vmatpush1.bf16.msra.mxu0 0
      %613 = vmatprep.subr.bf16.mxu0 0
      %614 = vmatpush1.bf16.msra.mxu0 0
      %615 = vmatprep.subr.bf16.mxu0 0
      %616 = vmatpush1.bf16.msra.mxu0 0
      %617 = vmatprep.subr.bf16.mxu0 0
      %618 = vmatpush1.bf16.msra.mxu0 0
      %619 = vmatprep.subr.bf16.mxu0 0
      %620 = vmatpush1.bf16.msra.mxu0 0
      %621 = vmatprep.subr.bf16.mxu0 0
      %622 = vmatpush1.bf16.msra.mxu0 0
      %623 = vmatprep.subr.bf16.mxu0 0
      %624 = vmatpush1.bf16.msra.mxu0 0
      %625 = vmatprep.subr.bf16.mxu0 0
      %626 = vmatpush1.bf16.msra.mxu0 %v609
      %627 = vmatprep.subr.bf16.mxu0 0
      %628 = vmatpush2.bf16.msra.mxu0 0
      %629 = vmatprep.subr.bf16.mxu0 0
      %630 = vmatpush2.bf16.msra.mxu0 0
      %631 = vmatprep.subr.bf16.mxu0 0
      %632 = vmatpush2.bf16.msra.mxu0 0
      %633 = vmatprep.subr.bf16.mxu0 0
      %634 = vmatpush2.bf16.msra.mxu0 0
      %635 = vmatprep.subr.bf16.mxu0 0
      %636 = vmatpush2.bf16.msra.mxu0 0
      %637 = vmatprep.subr.bf16.mxu0 0
      %638 = vmatpush2.bf16.msra.mxu0 0
      %639 = vmatprep.subr.bf16.mxu0 0
      %640 = vmatpush2.bf16.msra.mxu0 0
      %641 = vmatprep.subr.bf16.mxu0 0
      %642 = vmatpush2.bf16.msra.mxu0 0
      %643 = vmatprep.mubr.bf16.mxu0 0
      %644 = vmatmul.mubr.bf16.gmra.mxu0 %v557
      %v645 = vpop.f32.mrf.mxu0
      %v646 = vadd.f32 0.0, %v645
      %v647 = vpop.f32.mrf.mxu0
      %v648 = vpop.f32.mrf.mxu0
      %v649 = vadd.f32 0.0, %v648
      %v650 = vpop.f32.mrf.mxu0
      %651 = vmatprep.mubr.bf16.mxu0 0
      %652 = vmatmul.mubr.bf16.gmra.mxu0 %v560
      %v653 = vpop.f32.mrf.mxu0
      %v654 = vadd.f32 0.0, %v653
      %v655 = vpop.f32.mrf.mxu0
      %v656 = vpop.f32.mrf.mxu0
      %v657 = vadd.f32 0.0, %v656
      %v658 = vpop.f32.mrf.mxu0
      %659 = vmatprep.mubr.bf16.mxu0 0
      %660 = vmatmul.mubr.bf16.gmra.mxu0 %v563
      %v661 = vpop.f32.mrf.mxu0
      %v662 = vadd.f32 0.0, %v661
      %v663 = vpop.f32.mrf.mxu0
      %v664 = vpop.f32.mrf.mxu0
      %v665 = vadd.f32 0.0, %v664
      %v666 = vpop.f32.mrf.mxu0
      %667 = vmatprep.mubr.bf16.mxu0 0
      %668 = vmatmul.mubr.bf16.gmra.mxu0 %v566
      %v669 = vpop.f32.mrf.mxu0
      %v670 = vadd.f32 0.0, %v669
      %v671 = vpop.f32.mrf.mxu0
      %v672 = vpop.f32.mrf.mxu0
      %v673 = vadd.f32 0.0, %v672
      %v674 = vpop.f32.mrf.mxu0
      %675 = vmatprep.mubr.bf16.mxu0 0
      %676 = vmatmul.mubr.bf16.gmra.mxu0 %v569
      %v677 = vpop.f32.mrf.mxu0
      %v678 = vadd.f32 0.0, %v677
      %v679 = vpop.f32.mrf.mxu0
      %v680 = vpop.f32.mrf.mxu0
      %v681 = vadd.f32 0.0, %v680
      %v682 = vpop.f32.mrf.mxu0
      %683 = vmatprep.mubr.bf16.mxu0 0
      %684 = vmatmul.mubr.bf16.gmra.mxu0 %v572
      %v685 = vpop.f32.mrf.mxu0
      %v686 = vadd.f32 0.0, %v685
      %v687 = vpop.f32.mrf.mxu0
      %v688 = vpop.f32.mrf.mxu0
      %v689 = vadd.f32 0.0, %v688
      %v690 = vpop.f32.mrf.mxu0
      %691 = vmatprep.mubr.bf16.mxu0 0
      %692 = vmatmul.mubr.bf16.gmra.mxu0 %v575
      %v693 = vpop.f32.mrf.mxu0
      %v694 = vadd.f32 0.0, %v693
      %v695 = vpop.f32.mrf.mxu0
      %v696 = vpop.f32.mrf.mxu0
      %v697 = vadd.f32 0.0, %v696
      %v698 = vpop.f32.mrf.mxu0
      %699 = vmatprep.mubr.bf16.mxu0 0
      %700 = vmatmul.mubr.bf16.gmra.mxu0 %v578
      %v701 = vpop.f32.mrf.mxu0
      %v702 = vadd.f32 0.0, %v701
      %v703 = vpop.f32.mrf.mxu0
      %v704 = vpop.f32.mrf.mxu0
      %v705 = vadd.f32 0.0, %v704
      %v706 = vpop.f32.mrf.mxu0
      %707 = vmatprep.mubr.bf16.mxu0 0
      %708 = vmatmul.mubr.bf16.gmra.mxu0 %v581
      %v709 = vpop.f32.mrf.mxu0
      %v710 = vadd.f32 0.0, %v709
      %v711 = vpop.f32.mrf.mxu0
      %v712 = vpop.f32.mrf.mxu0
      %v713 = vadd.f32 0.0, %v712
      %v714 = vpop.f32.mrf.mxu0
      %715 = vmatprep.mubr.bf16.mxu0 0
      %716 = vmatmul.mubr.bf16.gmra.mxu0 %v584
      %v717 = vpop.f32.mrf.mxu0
      %v718 = vadd.f32 0.0, %v717
      %v719 = vpop.f32.mrf.mxu0
      %v720 = vpop.f32.mrf.mxu0
      %v721 = vadd.f32 0.0, %v720
      %v722 = vpop.f32.mrf.mxu0
      %723 = vmatprep.mubr.bf16.mxu0 0
      %724 = vmatmul.mubr.bf16.gmra.mxu0 %v587
      %v725 = vpop.f32.mrf.mxu0
      %v726 = vadd.f32 0.0, %v725
      %v727 = vpop.f32.mrf.mxu0
      %v728 = vpop.f32.mrf.mxu0
      %v729 = vadd.f32 0.0, %v728
      %v730 = vpop.f32.mrf.mxu0
      %731 = vmatprep.mubr.bf16.mxu0 0
      %732 = vmatmul.mubr.bf16.gmra.mxu0 %v590
      %v733 = vpop.f32.mrf.mxu0
      %v734 = vadd.f32 0.0, %v733
      %v735 = vpop.f32.mrf.mxu0
      %v736 = vpop.f32.mrf.mxu0
      %v737 = vadd.f32 0.0, %v736
      %v738 = vpop.f32.mrf.mxu0
      %739 = vmatprep.mubr.bf16.mxu0 0
      %740 = vmatmul.mubr.bf16.gmra.mxu0 %v593
      %v741 = vpop.f32.mrf.mxu0
      %v742 = vadd.f32 0.0, %v741
      %v743 = vpop.f32.mrf.mxu0
      %v744 = vpop.f32.mrf.mxu0
      %v745 = vadd.f32 0.0, %v744
      %v746 = vpop.f32.mrf.mxu0
      %747 = vmatprep.mubr.bf16.mxu0 0
      %748 = vmatmul.mubr.bf16.gmra.mxu0 %v596
      %v749 = vpop.f32.mrf.mxu0
      %v750 = vadd.f32 0.0, %v749
      %v751 = vpop.f32.mrf.mxu0
      %v752 = vpop.f32.mrf.mxu0
      %v753 = vadd.f32 0.0, %v752
      %v754 = vpop.f32.mrf.mxu0
      %755 = vmatprep.mubr.bf16.mxu0 0
      %756 = vmatmul.mubr.bf16.gmra.mxu0 %v599
      %v757 = vpop.f32.mrf.mxu0
      %v758 = vadd.f32 0.0, %v757
      %v759 = vpop.f32.mrf.mxu0
      %v760 = vpop.f32.mrf.mxu0
      %v761 = vadd.f32 0.0, %v760
      %v762 = vpop.f32.mrf.mxu0
      %763 = vmatprep.mubr.bf16.mxu0 0
      %764 = vmatmul.mubr.bf16.gmra.mxu0 %v602
      %v765 = vpop.f32.mrf.mxu0
      %v766 = vadd.f32 0.0, %v765
      %v767 = vpop.f32.mrf.mxu0
      %v768 = vpop.f32.mrf.mxu0
      %v769 = vadd.f32 0.0, %v768
      %v770 = vpop.f32.mrf.mxu0
      %771 = vdwg.mxu0
      %v773 = vsel %vm388, %v535, 0
      %v776 = vand.u32 %v553, %v607
      %778 = vmatprep.subr.bf16.mxu0 0
      %779 = vmatpush1.bf16.msra.mxu0 0
      %780 = vmatprep.subr.bf16.mxu0 0
      %781 = vmatpush1.bf16.msra.mxu0 0
      %782 = vmatprep.subr.bf16.mxu0 0
      %783 = vmatpush1.bf16.msra.mxu0 0
      %784 = vmatprep.subr.bf16.mxu0 0
      %785 = vmatpush1.bf16.msra.mxu0 0
      %786 = vmatprep.subr.bf16.mxu0 0
      %787 = vmatpush1.bf16.msra.mxu0 0
      %788 = vmatprep.subr.bf16.mxu0 0
      %789 = vmatpush1.bf16.msra.mxu0 0
      %790 = vmatprep.subr.bf16.mxu0 0
      %791 = vmatpush1.bf16.msra.mxu0 0
      %792 = vmatprep.subr.bf16.mxu0 0
      %793 = vmatpush1.bf16.msra.mxu0 %v776
      %794 = vmatprep.subr.bf16.mxu0 0
      %795 = vmatpush2.bf16.msra.mxu0 0
      %796 = vmatprep.subr.bf16.mxu0 0
      %797 = vmatpush2.bf16.msra.mxu0 0
      %798 = vmatprep.subr.bf16.mxu0 0
      %799 = vmatpush2.bf16.msra.mxu0 0
      %800 = vmatprep.subr.bf16.mxu0 0
      %801 = vmatpush2.bf16.msra.mxu0 0
      %802 = vmatprep.subr.bf16.mxu0 0
      %803 = vmatpush2.bf16.msra.mxu0 0
      %804 = vmatprep.subr.bf16.mxu0 0
      %805 = vmatpush2.bf16.msra.mxu0 0
      %806 = vmatprep.subr.bf16.mxu0 0
      %807 = vmatpush2.bf16.msra.mxu0 0
      %808 = vmatprep.subr.bf16.mxu0 0
      %809 = vmatpush2.bf16.msra.mxu0 0
      %810 = vmatprep.mubr.bf16.mxu0 0
      %811 = vmatmul.mubr.bf16.gmra.mxu0 %v773
      %v812 = vpop.f32.mrf.mxu0
      %v813 = vadd.f32 %v646, %v812
      %v814 = vpop.f32.mrf.mxu0
      %v815 = vpop.f32.mrf.mxu0
      %v816 = vadd.f32 %v649, %v815
      %v817 = vpop.f32.mrf.mxu0
      %818 = vmatprep.mubr.bf16.mxu0 0
      %819 = vmatmul.mubr.bf16.gmra.mxu0 %v557
      %v820 = vpop.f32.mrf.mxu0
      %v821 = vadd.f32 %v654, %v820
      %v822 = vpop.f32.mrf.mxu0
      %v823 = vpop.f32.mrf.mxu0
      %v824 = vadd.f32 %v657, %v823
      %v825 = vpop.f32.mrf.mxu0
      %826 = vmatprep.mubr.bf16.mxu0 0
      %827 = vmatmul.mubr.bf16.gmra.mxu0 %v560
      %v828 = vpop.f32.mrf.mxu0
      %v829 = vadd.f32 %v662, %v828
      %v830 = vpop.f32.mrf.mxu0
      %v831 = vpop.f32.mrf.mxu0
      %v832 = vadd.f32 %v665, %v831
      %v833 = vpop.f32.mrf.mxu0
      %834 = vmatprep.mubr.bf16.mxu0 0
      %835 = vmatmul.mubr.bf16.gmra.mxu0 %v563
      %v836 = vpop.f32.mrf.mxu0
      %v837 = vadd.f32 %v670, %v836
      %v838 = vpop.f32.mrf.mxu0
      %v839 = vpop.f32.mrf.mxu0
      %v840 = vadd.f32 %v673, %v839
      %v841 = vpop.f32.mrf.mxu0
      %842 = vmatprep.mubr.bf16.mxu0 0
      %843 = vmatmul.mubr.bf16.gmra.mxu0 %v566
      %v844 = vpop.f32.mrf.mxu0
      %v845 = vadd.f32 %v678, %v844
      %v846 = vpop.f32.mrf.mxu0
      %v847 = vpop.f32.mrf.mxu0
      %v848 = vadd.f32 %v681, %v847
      %v849 = vpop.f32.mrf.mxu0
      %850 = vmatprep.mubr.bf16.mxu0 0
      %851 = vmatmul.mubr.bf16.gmra.mxu0 %v569
      %v852 = vpop.f32.mrf.mxu0
      %v853 = vadd.f32 %v686, %v852
      %v854 = vpop.f32.mrf.mxu0
      %v855 = vpop.f32.mrf.mxu0
      %v856 = vadd.f32 %v689, %v855
      %v857 = vpop.f32.mrf.mxu0
      %858 = vmatprep.mubr.bf16.mxu0 0
      %859 = vmatmul.mubr.bf16.gmra.mxu0 %v572
      %v860 = vpop.f32.mrf.mxu0
      %v861 = vadd.f32 %v694, %v860
      %v862 = vpop.f32.mrf.mxu0
      %v863 = vpop.f32.mrf.mxu0
      %v864 = vadd.f32 %v697, %v863
      %v865 = vpop.f32.mrf.mxu0
      %866 = vmatprep.mubr.bf16.mxu0 0
      %867 = vmatmul.mubr.bf16.gmra.mxu0 %v575
      %v868 = vpop.f32.mrf.mxu0
      %v869 = vadd.f32 %v702, %v868
      %v870 = vpop.f32.mrf.mxu0
      %v871 = vpop.f32.mrf.mxu0
      %v872 = vadd.f32 %v705, %v871
      %v873 = vpop.f32.mrf.mxu0
      %874 = vmatprep.mubr.bf16.mxu0 0
      %875 = vmatmul.mubr.bf16.gmra.mxu0 %v578
      %v876 = vpop.f32.mrf.mxu0
      %v877 = vadd.f32 %v710, %v876
      %v878 = vpop.f32.mrf.mxu0
      %v879 = vpop.f32.mrf.mxu0
      %v880 = vadd.f32 %v713, %v879
      %v881 = vpop.f32.mrf.mxu0
      %882 = vmatprep.mubr.bf16.mxu0 0
      %883 = vmatmul.mubr.bf16.gmra.mxu0 %v581
      %v884 = vpop.f32.mrf.mxu0
      %v885 = vadd.f32 %v718, %v884
      %v886 = vpop.f32.mrf.mxu0
      %v887 = vpop.f32.mrf.mxu0
      %v888 = vadd.f32 %v721, %v887
      %v889 = vpop.f32.mrf.mxu0
      %890 = vmatprep.mubr.bf16.mxu0 0
      %891 = vmatmul.mubr.bf16.gmra.mxu0 %v584
      %v892 = vpop.f32.mrf.mxu0
      %v893 = vadd.f32 %v726, %v892
      %v894 = vpop.f32.mrf.mxu0
      %v895 = vpop.f32.mrf.mxu0
      %v896 = vadd.f32 %v729, %v895
      %v897 = vpop.f32.mrf.mxu0
      %898 = vmatprep.mubr.bf16.mxu0 0
      %899 = vmatmul.mubr.bf16.gmra.mxu0 %v587
      %v900 = vpop.f32.mrf.mxu0
      %v901 = vadd.f32 %v734, %v900
      %v902 = vpop.f32.mrf.mxu0
      %v903 = vpop.f32.mrf.mxu0
      %v904 = vadd.f32 %v737, %v903
      %v905 = vpop.f32.mrf.mxu0
      %906 = vmatprep.mubr.bf16.mxu0 0
      %907 = vmatmul.mubr.bf16.gmra.mxu0 %v590
      %v908 = vpop.f32.mrf.mxu0
      %v909 = vadd.f32 %v742, %v908
      %v910 = vpop.f32.mrf.mxu0
      %v911 = vpop.f32.mrf.mxu0
      %v912 = vadd.f32 %v745, %v911
      %v913 = vpop.f32.mrf.mxu0
      %914 = vmatprep.mubr.bf16.mxu0 0
      %915 = vmatmul.mubr.bf16.gmra.mxu0 %v593
      %v916 = vpop.f32.mrf.mxu0
      %v917 = vadd.f32 %v750, %v916
      %v918 = vpop.f32.mrf.mxu0
      %v919 = vpop.f32.mrf.mxu0
      %v920 = vadd.f32 %v753, %v919
      %v921 = vpop.f32.mrf.mxu0
      %922 = vmatprep.mubr.bf16.mxu0 0
      %923 = vmatmul.mubr.bf16.gmra.mxu0 %v596
      %v924 = vpop.f32.mrf.mxu0
      %v925 = vadd.f32 %v758, %v924
      %v926 = vpop.f32.mrf.mxu0
      %v927 = vpop.f32.mrf.mxu0
      %v928 = vadd.f32 %v761, %v927
      %v929 = vpop.f32.mrf.mxu0
      %930 = vmatprep.mubr.bf16.mxu0 0
      %931 = vmatmul.mubr.bf16.gmra.mxu0 %v599
      %v932 = vpop.f32.mrf.mxu0
      %v933 = vadd.f32 %v766, %v932
      %v934 = vpop.f32.mrf.mxu0
      %v935 = vpop.f32.mrf.mxu0
      %v936 = vadd.f32 %v769, %v935
      %v937 = vpop.f32.mrf.mxu0
      %938 = vdwg.mxu0
      %s939 = scalar_lea.vmem %s1, 12
      %v940 = vld [vmem:[%s939] sm:$0x3]
      %v942 = vsel %vm388, %v552, 0
      %v945 = vand.u32 %v940, %v607
      %947 = vmatprep.subr.bf16.mxu0 0
      %948 = vmatpush1.bf16.msra.mxu0 0
      %949 = vmatprep.subr.bf16.mxu0 0
      %950 = vmatpush1.bf16.msra.mxu0 0
      %951 = vmatprep.subr.bf16.mxu0 0
      %952 = vmatpush1.bf16.msra.mxu0 0
      %953 = vmatprep.subr.bf16.mxu0 0
      %954 = vmatpush1.bf16.msra.mxu0 0
      %955 = vmatprep.subr.bf16.mxu0 0
      %956 = vmatpush1.bf16.msra.mxu0 0
      %957 = vmatprep.subr.bf16.mxu0 0
      %958 = vmatpush1.bf16.msra.mxu0 0
      %959 = vmatprep.subr.bf16.mxu0 0
      %960 = vmatpush1.bf16.msra.mxu0 0
      %961 = vmatprep.subr.bf16.mxu0 0
      %962 = vmatpush1.bf16.msra.mxu0 %v945
      %963 = vmatprep.subr.bf16.mxu0 0
      %964 = vmatpush2.bf16.msra.mxu0 0
      %965 = vmatprep.subr.bf16.mxu0 0
      %966 = vmatpush2.bf16.msra.mxu0 0
      %967 = vmatprep.subr.bf16.mxu0 0
      %968 = vmatpush2.bf16.msra.mxu0 0
      %969 = vmatprep.subr.bf16.mxu0 0
      %970 = vmatpush2.bf16.msra.mxu0 0
      %971 = vmatprep.subr.bf16.mxu0 0
      %972 = vmatpush2.bf16.msra.mxu0 0
      %973 = vmatprep.subr.bf16.mxu0 0
      %974 = vmatpush2.bf16.msra.mxu0 0
      %975 = vmatprep.subr.bf16.mxu0 0
      %976 = vmatpush2.bf16.msra.mxu0 0
      %977 = vmatprep.subr.bf16.mxu0 0
      %978 = vmatpush2.bf16.msra.mxu0 0
      %979 = vmatprep.mubr.bf16.mxu0 0
      %980 = vmatmul.mubr.bf16.gmra.mxu0 %v560
      %v981 = vpop.f32.mrf.mxu0
      %v982 = vadd.f32 0.0, %v981
      %v983 = vpop.f32.mrf.mxu0
      %v984 = vpop.f32.mrf.mxu0
      %v985 = vadd.f32 0.0, %v984
      %v986 = vpop.f32.mrf.mxu0
      %987 = vmatprep.mubr.bf16.mxu0 0
      %988 = vmatmul.mubr.bf16.gmra.mxu0 %v563
      %v989 = vpop.f32.mrf.mxu0
      %v990 = vadd.f32 0.0, %v989
      %v991 = vpop.f32.mrf.mxu0
      %v992 = vpop.f32.mrf.mxu0
      %v993 = vadd.f32 0.0, %v992
      %v994 = vpop.f32.mrf.mxu0
      %995 = vmatprep.mubr.bf16.mxu0 0
      %996 = vmatmul.mubr.bf16.gmra.mxu0 %v566
      %v997 = vpop.f32.mrf.mxu0
      %v998 = vadd.f32 0.0, %v997
      %v999 = vpop.f32.mrf.mxu0
      %v1000 = vpop.f32.mrf.mxu0
      %v1001 = vadd.f32 0.0, %v1000
      %v1002 = vpop.f32.mrf.mxu0
      %1003 = vmatprep.mubr.bf16.mxu0 0
      %1004 = vmatmul.mubr.bf16.gmra.mxu0 %v569
      %v1005 = vpop.f32.mrf.mxu0
      %v1006 = vadd.f32 0.0, %v1005
      %v1007 = vpop.f32.mrf.mxu0
      %v1008 = vpop.f32.mrf.mxu0
      %v1009 = vadd.f32 0.0, %v1008
      %v1010 = vpop.f32.mrf.mxu0
      %1011 = vmatprep.mubr.bf16.mxu0 0
      %1012 = vmatmul.mubr.bf16.gmra.mxu0 %v572
      %v1013 = vpop.f32.mrf.mxu0
      %v1014 = vadd.f32 0.0, %v1013
      %v1015 = vpop.f32.mrf.mxu0
      %v1016 = vpop.f32.mrf.mxu0
      %v1017 = vadd.f32 0.0, %v1016
      %v1018 = vpop.f32.mrf.mxu0
      %1019 = vmatprep.mubr.bf16.mxu0 0
      %1020 = vmatmul.mubr.bf16.gmra.mxu0 %v575
      %v1021 = vpop.f32.mrf.mxu0
      %v1022 = vadd.f32 0.0, %v1021
      %v1023 = vpop.f32.mrf.mxu0
      %v1024 = vpop.f32.mrf.mxu0
      %v1025 = vadd.f32 0.0, %v1024
      %v1026 = vpop.f32.mrf.mxu0
      %1027 = vmatprep.mubr.bf16.mxu0 0
      %1028 = vmatmul.mubr.bf16.gmra.mxu0 %v578
      %v1029 = vpop.f32.mrf.mxu0
      %v1030 = vadd.f32 0.0, %v1029
      %v1031 = vpop.f32.mrf.mxu0
      %v1032 = vpop.f32.mrf.mxu0
      %v1033 = vadd.f32 0.0, %v1032
      %v1034 = vpop.f32.mrf.mxu0
      %1035 = vmatprep.mubr.bf16.mxu0 0
      %1036 = vmatmul.mubr.bf16.gmra.mxu0 %v581
      %v1037 = vpop.f32.mrf.mxu0
      %v1038 = vadd.f32 0.0, %v1037
      %v1039 = vpop.f32.mrf.mxu0
      %v1040 = vpop.f32.mrf.mxu0
      %v1041 = vadd.f32 0.0, %v1040
      %v1042 = vpop.f32.mrf.mxu0
      %1043 = vmatprep.mubr.bf16.mxu0 0
      %1044 = vmatmul.mubr.bf16.gmra.mxu0 %v584
      %v1045 = vpop.f32.mrf.mxu0
      %v1046 = vadd.f32 0.0, %v1045
      %v1047 = vpop.f32.mrf.mxu0
      %v1048 = vpop.f32.mrf.mxu0
      %v1049 = vadd.f32 0.0, %v1048
      %v1050 = vpop.f32.mrf.mxu0
      %1051 = vmatprep.mubr.bf16.mxu0 0
      %1052 = vmatmul.mubr.bf16.gmra.mxu0 %v587
      %v1053 = vpop.f32.mrf.mxu0
      %v1054 = vadd.f32 0.0, %v1053
      %v1055 = vpop.f32.mrf.mxu0
      %v1056 = vpop.f32.mrf.mxu0
      %v1057 = vadd.f32 0.0, %v1056
      %v1058 = vpop.f32.mrf.mxu0
      %1059 = vmatprep.mubr.bf16.mxu0 0
      %1060 = vmatmul.mubr.bf16.gmra.mxu0 %v590
      %v1061 = vpop.f32.mrf.mxu0
      %v1062 = vadd.f32 0.0, %v1061
      %v1063 = vpop.f32.mrf.mxu0
      %v1064 = vpop.f32.mrf.mxu0
      %v1065 = vadd.f32 0.0, %v1064
      %v1066 = vpop.f32.mrf.mxu0
      %1067 = vmatprep.mubr.bf16.mxu0 0
      %1068 = vmatmul.mubr.bf16.gmra.mxu0 %v593
      %v1069 = vpop.f32.mrf.mxu0
      %v1070 = vadd.f32 0.0, %v1069
      %v1071 = vpop.f32.mrf.mxu0
      %v1072 = vpop.f32.mrf.mxu0
      %v1073 = vadd.f32 0.0, %v1072
      %v1074 = vpop.f32.mrf.mxu0
      %1075 = vmatprep.mubr.bf16.mxu0 0
      %1076 = vmatmul.mubr.bf16.gmra.mxu0 %v596
      %v1077 = vpop.f32.mrf.mxu0
      %v1078 = vadd.f32 0.0, %v1077
      %v1079 = vpop.f32.mrf.mxu0
      %v1080 = vpop.f32.mrf.mxu0
      %v1081 = vadd.f32 0.0, %v1080
      %v1082 = vpop.f32.mrf.mxu0
      %1083 = vmatprep.mubr.bf16.mxu0 0
      %1084 = vmatmul.mubr.bf16.gmra.mxu0 %v599
      %v1085 = vpop.f32.mrf.mxu0
      %v1086 = vadd.f32 0.0, %v1085
      %v1087 = vpop.f32.mrf.mxu0
      %v1088 = vpop.f32.mrf.mxu0
      %v1089 = vadd.f32 0.0, %v1088
      %v1090 = vpop.f32.mrf.mxu0
      %1091 = vmatprep.mubr.bf16.mxu0 0
      %1092 = vmatmul.mubr.bf16.gmra.mxu0 %v602
      %v1093 = vpop.f32.mrf.mxu0
      %v1094 = vadd.f32 0.0, %v1093
      %v1095 = vpop.f32.mrf.mxu0
      %v1096 = vpop.f32.mrf.mxu0
      %v1097 = vadd.f32 0.0, %v1096
      %v1098 = vpop.f32.mrf.mxu0
      %1099 = vmatprep.mubr.bf16.mxu0 0
      %1100 = vmatmul.mubr.bf16.gmra.mxu0 %v942
      %v1101 = vpop.f32.mrf.mxu0
      %v1102 = vadd.f32 0.0, %v1101
      %v1103 = vpop.f32.mrf.mxu0
      %v1104 = vpop.f32.mrf.mxu0
      %v1105 = vadd.f32 0.0, %v1104
      %v1106 = vpop.f32.mrf.mxu0
      %1107 = vdwg.mxu0
      %v1108 = vadd.f32 %v813, %v982
      %v1109 = vadd.f32 %v816, %v985
      %v1110 = vadd.f32 %v821, %v990
      %v1111 = vadd.f32 %v824, %v993
      %v1112 = vadd.f32 %v829, %v998
      %v1113 = vadd.f32 %v832, %v1001
      %v1114 = vadd.f32 %v837, %v1006
      %v1115 = vadd.f32 %v840, %v1009
      %v1116 = vadd.f32 %v845, %v1014
      %v1117 = vadd.f32 %v848, %v1017
      %v1118 = vadd.f32 %v853, %v1022
      %v1119 = vadd.f32 %v856, %v1025
      %v1120 = vadd.f32 %v861, %v1030
      %v1121 = vadd.f32 %v864, %v1033
      %v1122 = vadd.f32 %v869, %v1038
      %v1123 = vadd.f32 %v872, %v1041
      %v1124 = vadd.f32 %v877, %v1046
      %v1125 = vadd.f32 %v880, %v1049
      %v1126 = vadd.f32 %v885, %v1054
      %v1127 = vadd.f32 %v888, %v1057
      %v1128 = vadd.f32 %v893, %v1062
      %v1129 = vadd.f32 %v896, %v1065
      %v1130 = vadd.f32 %v901, %v1070
      %v1131 = vadd.f32 %v904, %v1073
      %v1132 = vadd.f32 %v909, %v1078
      %v1133 = vadd.f32 %v912, %v1081
      %v1134 = vadd.f32 %v917, %v1086
      %v1135 = vadd.f32 %v920, %v1089
      %v1136 = vadd.f32 %v925, %v1094
      %v1137 = vadd.f32 %v928, %v1097
      %v1138 = vadd.f32 %v933, %v1102
      %v1139 = vadd.f32 %v936, %v1105
      %v1140 = vld [vmem:[#allocation2 + $0x1] sm:$0xff]
      %v1141 = vld [vmem:[#allocation2 + $0x9] sm:$0xff]
      %v1142 = vld [vmem:[#allocation2 + $0x19] sm:$0xff]
      %v1143 = vld [vmem:[#allocation2 + $0x21] sm:$0xff]
      %v1144 = vld [vmem:[#allocation2 + $0x31] sm:$0xff]
      %v1145 = vld [vmem:[#allocation2 + $0x39] sm:$0xff]
      %v1146 = vld [vmem:[#allocation2 + $0x49] sm:$0xff]
      %v1147 = vld [vmem:[#allocation2 + $0x51] sm:$0xff]
      %v1148 = vld [vmem:[#allocation2 + $0x61] sm:$0xff]
      %v1149 = vld [vmem:[#allocation2 + $0x69] sm:$0xff]
      %v1150 = vld [vmem:[#allocation2 + $0x79] sm:$0xff]
      %v1151 = vld [vmem:[#allocation2 + $0x81] sm:$0xff]
      %v1152 = vld [vmem:[#allocation2 + $0x91] sm:$0xff]
      %v1153 = vld [vmem:[#allocation2 + $0x99] sm:$0xff]
      %v1154 = vld [vmem:[#allocation2 + $0xa9] sm:$0xff]
      %v1155 = vld [vmem:[#allocation2 + $0xb1] sm:$0xff]
      %v1156 = vld [vmem:[#allocation2 + $0xc1] sm:$0xff]
      %v1157 = vld [vmem:[#allocation2 + $0xc9] sm:$0xff]
      %v1158 = vld [vmem:[#allocation2 + $0xd9] sm:$0xff]
      %v1159 = vld [vmem:[#allocation2 + $0xe1] sm:$0xff]
      %v1160 = vld [vmem:[#allocation2 + $0xf1] sm:$0xff]
      %v1161 = vld [vmem:[#allocation2 + $0xf9] sm:$0xff]
      %v1162 = vld [vmem:[#allocation2 + $0x109] sm:$0xff]
      %v1163 = vld [vmem:[#allocation2 + $0x111] sm:$0xff]
      %v1164 = vld [vmem:[#allocation2 + $0x121] sm:$0xff]
      %v1165 = vld [vmem:[#allocation2 + $0x129] sm:$0xff]
      %v1166 = vld [vmem:[#allocation2 + $0x139] sm:$0xff]
      %v1167 = vld [vmem:[#allocation2 + $0x141] sm:$0xff]
      %v1168 = vld [vmem:[#allocation2 + $0x151] sm:$0xff]
      %v1169 = vld [vmem:[#allocation2 + $0x159] sm:$0xff]
      %v1170 = vld [vmem:[#allocation2 + $0x169] sm:$0xff]
      %v1171 = vld [vmem:[#allocation2 + $0x171] sm:$0xff]
      %v1172 = vld [vmem:[#allocation2 + $0x181] sm:$0xff]
      %v1173 = vld [vmem:[#allocation2 + $0x189] sm:$0xff]
      %v1174 = vld [vmem:[#allocation2 + $0x199] sm:$0xff]
      %v1175 = vld [vmem:[#allocation2 + $0x1a1] sm:$0xff]
      %v1176 = vpack.c.bf16 %v1141, %v1140
      %v1177 = vpack.c.bf16 %v1143, %v1142
      %v1178 = vpack.c.bf16 %v1145, %v1144
      %v1179 = vpack.c.bf16 %v1147, %v1146
      %v1180 = vpack.c.bf16 %v1149, %v1148
      %v1181 = vpack.c.bf16 %v1151, %v1150
      %v1182 = vpack.c.bf16 %v1153, %v1152
      %v1183 = vpack.c.bf16 %v1155, %v1154
      %v1184 = vpack.c.bf16 %v1157, %v1156
      %v1185 = vpack.c.bf16 %v1159, %v1158
      %v1186 = vpack.c.bf16 %v1161, %v1160
      %v1187 = vpack.c.bf16 %v1163, %v1162
      %v1188 = vpack.c.bf16 %v1165, %v1164
      %v1189 = vpack.c.bf16 %v1167, %v1166
      %v1190 = vpack.c.bf16 %v1169, %v1168
      %v1191 = vpack.c.bf16 %v1171, %v1170
      %v1192 = vpack.c.bf16 %v1173, %v1172
      %v1193 = vpack.c.bf16 %v1175, %v1174
      %s1194 = scalar_lea.vmem %s1, 2
      %v1195 = vld [vmem:[%s1194] sm:$0x3]
      %v1197 = vsel %vm388, %v1176, 0
      %v1200 = vsel %vm388, %v1177, 0
      %v1203 = vsel %vm388, %v1178, 0
      %v1206 = vsel %vm388, %v1179, 0
      %v1209 = vsel %vm388, %v1180, 0
      %v1212 = vsel %vm388, %v1181, 0
      %v1215 = vsel %vm388, %v1182, 0
      %v1218 = vsel %vm388, %v1183, 0
      %v1221 = vsel %vm388, %v1184, 0
      %v1224 = vsel %vm388, %v1185, 0
      %v1227 = vsel %vm388, %v1186, 0
      %v1230 = vsel %vm388, %v1187, 0
      %v1233 = vsel %vm388, %v1188, 0
      %v1236 = vsel %vm388, %v1189, 0
      %v1239 = vsel %vm388, %v1190, 0
      %v1242 = vsel %vm388, %v1191, 0
      %v1245 = vand.u32 %v1195, %v607
      %1247 = vmatprep.subr.bf16.mxu0 0
      %1248 = vmatpush1.bf16.msra.mxu0 0
      %1249 = vmatprep.subr.bf16.mxu0 0
      %1250 = vmatpush1.bf16.msra.mxu0 0
      %1251 = vmatprep.subr.bf16.mxu0 0
      %1252 = vmatpush1.bf16.msra.mxu0 0
      %1253 = vmatprep.subr.bf16.mxu0 0
      %1254 = vmatpush1.bf16.msra.mxu0 0
      %1255 = vmatprep.subr.bf16.mxu0 0
      %1256 = vmatpush1.bf16.msra.mxu0 0
      %1257 = vmatprep.subr.bf16.mxu0 0
      %1258 = vmatpush1.bf16.msra.mxu0 0
      %1259 = vmatprep.subr.bf16.mxu0 0
      %1260 = vmatpush1.bf16.msra.mxu0 0
      %1261 = vmatprep.subr.bf16.mxu0 0
      %1262 = vmatpush1.bf16.msra.mxu0 %v1245
      %1263 = vmatprep.subr.bf16.mxu0 0
      %1264 = vmatpush2.bf16.msra.mxu0 0
      %1265 = vmatprep.subr.bf16.mxu0 0
      %1266 = vmatpush2.bf16.msra.mxu0 0
      %1267 = vmatprep.subr.bf16.mxu0 0
      %1268 = vmatpush2.bf16.msra.mxu0 0
      %1269 = vmatprep.subr.bf16.mxu0 0
      %1270 = vmatpush2.bf16.msra.mxu0 0
      %1271 = vmatprep.subr.bf16.mxu0 0
      %1272 = vmatpush2.bf16.msra.mxu0 0
      %1273 = vmatprep.subr.bf16.mxu0 0
      %1274 = vmatpush2.bf16.msra.mxu0 0
      %1275 = vmatprep.subr.bf16.mxu0 0
      %1276 = vmatpush2.bf16.msra.mxu0 0
      %1277 = vmatprep.subr.bf16.mxu0 0
      %1278 = vmatpush2.bf16.msra.mxu0 0
      %1279 = vmatprep.mubr.bf16.mxu0 0
      %1280 = vmatmul.mubr.bf16.gmra.mxu0 %v1197
      %v1281 = vpop.f32.mrf.mxu0
      %v1282 = vadd.f32 0.0, %v1281
      %v1283 = vpop.f32.mrf.mxu0
      %v1284 = vpop.f32.mrf.mxu0
      %v1285 = vadd.f32 0.0, %v1284
      %v1286 = vpop.f32.mrf.mxu0
      %1287 = vmatprep.mubr.bf16.mxu0 0
      %1288 = vmatmul.mubr.bf16.gmra.mxu0 %v1200
      %v1289 = vpop.f32.mrf.mxu0
      %v1290 = vadd.f32 0.0, %v1289
      %v1291 = vpop.f32.mrf.mxu0
      %v1292 = vpop.f32.mrf.mxu0
      %v1293 = vadd.f32 0.0, %v1292
      %v1294 = vpop.f32.mrf.mxu0
      %1295 = vmatprep.mubr.bf16.mxu0 0
      %1296 = vmatmul.mubr.bf16.gmra.mxu0 %v1203
      %v1297 = vpop.f32.mrf.mxu0
      %v1298 = vadd.f32 0.0, %v1297
      %v1299 = vpop.f32.mrf.mxu0
      %v1300 = vpop.f32.mrf.mxu0
      %v1301 = vadd.f32 0.0, %v1300
      %v1302 = vpop.f32.mrf.mxu0
      %1303 = vmatprep.mubr.bf16.mxu0 0
      %1304 = vmatmul.mubr.bf16.gmra.mxu0 %v1206
      %v1305 = vpop.f32.mrf.mxu0
      %v1306 = vadd.f32 0.0, %v1305
      %v1307 = vpop.f32.mrf.mxu0
      %v1308 = vpop.f32.mrf.mxu0
      %v1309 = vadd.f32 0.0, %v1308
      %v1310 = vpop.f32.mrf.mxu0
      %1311 = vmatprep.mubr.bf16.mxu0 0
      %1312 = vmatmul.mubr.bf16.gmra.mxu0 %v1209
      %v1313 = vpop.f32.mrf.mxu0
      %v1314 = vadd.f32 0.0, %v1313
      %v1315 = vpop.f32.mrf.mxu0
      %v1316 = vpop.f32.mrf.mxu0
      %v1317 = vadd.f32 0.0, %v1316
      %v1318 = vpop.f32.mrf.mxu0
      %1319 = vmatprep.mubr.bf16.mxu0 0
      %1320 = vmatmul.mubr.bf16.gmra.mxu0 %v1212
      %v1321 = vpop.f32.mrf.mxu0
      %v1322 = vadd.f32 0.0, %v1321
      %v1323 = vpop.f32.mrf.mxu0
      %v1324 = vpop.f32.mrf.mxu0
      %v1325 = vadd.f32 0.0, %v1324
      %v1326 = vpop.f32.mrf.mxu0
      %1327 = vmatprep.mubr.bf16.mxu0 0
      %1328 = vmatmul.mubr.bf16.gmra.mxu0 %v1215
      %v1329 = vpop.f32.mrf.mxu0
      %v1330 = vadd.f32 0.0, %v1329
      %v1331 = vpop.f32.mrf.mxu0
      %v1332 = vpop.f32.mrf.mxu0
      %v1333 = vadd.f32 0.0, %v1332
      %v1334 = vpop.f32.mrf.mxu0
      %1335 = vmatprep.mubr.bf16.mxu0 0
      %1336 = vmatmul.mubr.bf16.gmra.mxu0 %v1218
      %v1337 = vpop.f32.mrf.mxu0
      %v1338 = vadd.f32 0.0, %v1337
      %v1339 = vpop.f32.mrf.mxu0
      %v1340 = vpop.f32.mrf.mxu0
      %v1341 = vadd.f32 0.0, %v1340
      %v1342 = vpop.f32.mrf.mxu0
      %1343 = vmatprep.mubr.bf16.mxu0 0
      %1344 = vmatmul.mubr.bf16.gmra.mxu0 %v1221
      %v1345 = vpop.f32.mrf.mxu0
      %v1346 = vadd.f32 0.0, %v1345
      %v1347 = vpop.f32.mrf.mxu0
      %v1348 = vpop.f32.mrf.mxu0
      %v1349 = vadd.f32 0.0, %v1348
      %v1350 = vpop.f32.mrf.mxu0
      %1351 = vmatprep.mubr.bf16.mxu0 0
      %1352 = vmatmul.mubr.bf16.gmra.mxu0 %v1224
      %v1353 = vpop.f32.mrf.mxu0
      %v1354 = vadd.f32 0.0, %v1353
      %v1355 = vpop.f32.mrf.mxu0
      %v1356 = vpop.f32.mrf.mxu0
      %v1357 = vadd.f32 0.0, %v1356
      %v1358 = vpop.f32.mrf.mxu0
      %1359 = vmatprep.mubr.bf16.mxu0 0
      %1360 = vmatmul.mubr.bf16.gmra.mxu0 %v1227
      %v1361 = vpop.f32.mrf.mxu0
      %v1362 = vadd.f32 0.0, %v1361
      %v1363 = vpop.f32.mrf.mxu0
      %v1364 = vpop.f32.mrf.mxu0
      %v1365 = vadd.f32 0.0, %v1364
      %v1366 = vpop.f32.mrf.mxu0
      %1367 = vmatprep.mubr.bf16.mxu0 0
      %1368 = vmatmul.mubr.bf16.gmra.mxu0 %v1230
      %v1369 = vpop.f32.mrf.mxu0
      %v1370 = vadd.f32 0.0, %v1369
      %v1371 = vpop.f32.mrf.mxu0
      %v1372 = vpop.f32.mrf.mxu0
      %v1373 = vadd.f32 0.0, %v1372
      %v1374 = vpop.f32.mrf.mxu0
      %1375 = vmatprep.mubr.bf16.mxu0 0
      %1376 = vmatmul.mubr.bf16.gmra.mxu0 %v1233
      %v1377 = vpop.f32.mrf.mxu0
      %v1378 = vadd.f32 0.0, %v1377
      %v1379 = vpop.f32.mrf.mxu0
      %v1380 = vpop.f32.mrf.mxu0
      %v1381 = vadd.f32 0.0, %v1380
      %v1382 = vpop.f32.mrf.mxu0
      %1383 = vmatprep.mubr.bf16.mxu0 0
      %1384 = vmatmul.mubr.bf16.gmra.mxu0 %v1236
      %v1385 = vpop.f32.mrf.mxu0
      %v1386 = vadd.f32 0.0, %v1385
      %v1387 = vpop.f32.mrf.mxu0
      %v1388 = vpop.f32.mrf.mxu0
      %v1389 = vadd.f32 0.0, %v1388
      %v1390 = vpop.f32.mrf.mxu0
      %1391 = vmatprep.mubr.bf16.mxu0 0
      %1392 = vmatmul.mubr.bf16.gmra.mxu0 %v1239
      %v1393 = vpop.f32.mrf.mxu0
      %v1394 = vadd.f32 0.0, %v1393
      %v1395 = vpop.f32.mrf.mxu0
      %v1396 = vpop.f32.mrf.mxu0
      %v1397 = vadd.f32 0.0, %v1396
      %v1398 = vpop.f32.mrf.mxu0
      %1399 = vmatprep.mubr.bf16.mxu0 0
      %1400 = vmatmul.mubr.bf16.gmra.mxu0 %v1242
      %v1401 = vpop.f32.mrf.mxu0
      %v1402 = vadd.f32 0.0, %v1401
      %v1403 = vpop.f32.mrf.mxu0
      %v1404 = vpop.f32.mrf.mxu0
      %v1405 = vadd.f32 0.0, %v1404
      %v1406 = vpop.f32.mrf.mxu0
      %1407 = vdwg.mxu0
      %v1408 = vadd.f32 %v1108, %v1282
      %v1409 = vadd.f32 %v1109, %v1285
      %v1410 = vadd.f32 %v1110, %v1290
      %v1411 = vadd.f32 %v1111, %v1293
      %v1412 = vadd.f32 %v1112, %v1298
      %v1413 = vadd.f32 %v1113, %v1301
      %v1414 = vadd.f32 %v1114, %v1306
      %v1415 = vadd.f32 %v1115, %v1309
      %v1416 = vadd.f32 %v1116, %v1314
      %v1417 = vadd.f32 %v1117, %v1317
      %v1418 = vadd.f32 %v1118, %v1322
      %v1419 = vadd.f32 %v1119, %v1325
      %v1420 = vadd.f32 %v1120, %v1330
      %v1421 = vadd.f32 %v1121, %v1333
      %v1422 = vadd.f32 %v1122, %v1338
      %v1423 = vadd.f32 %v1123, %v1341
      %v1424 = vadd.f32 %v1124, %v1346
      %v1425 = vadd.f32 %v1125, %v1349
      %v1426 = vadd.f32 %v1126, %v1354
      %v1427 = vadd.f32 %v1127, %v1357
      %v1428 = vadd.f32 %v1128, %v1362
      %v1429 = vadd.f32 %v1129, %v1365
      %v1430 = vadd.f32 %v1130, %v1370
      %v1431 = vadd.f32 %v1131, %v1373
      %v1432 = vadd.f32 %v1132, %v1378
      %v1433 = vadd.f32 %v1133, %v1381
      %v1434 = vadd.f32 %v1134, %v1386
      %v1435 = vadd.f32 %v1135, %v1389
      %v1436 = vadd.f32 %v1136, %v1394
      %v1437 = vadd.f32 %v1137, %v1397
      %v1438 = vadd.f32 %v1138, %v1402
      %v1439 = vadd.f32 %v1139, %v1405
      %s1440 = scalar_lea.vmem %s1, 8
      %v1441 = vld [vmem:[%s1440] sm:$0x3]
      %v1443 = vsel %vm388, %v1192, 0
      %v1446 = vand.u32 %v1441, %v607
      %1448 = vmatprep.subr.bf16.mxu0 0
      %1449 = vmatpush1.bf16.msra.mxu0 0
      %1450 = vmatprep.subr.bf16.mxu0 0
      %1451 = vmatpush1.bf16.msra.mxu0 0
      %1452 = vmatprep.subr.bf16.mxu0 0
      %1453 = vmatpush1.bf16.msra.mxu0 0
      %1454 = vmatprep.subr.bf16.mxu0 0
      %1455 = vmatpush1.bf16.msra.mxu0 0
      %1456 = vmatprep.subr.bf16.mxu0 0
      %1457 = vmatpush1.bf16.msra.mxu0 0
      %1458 = vmatprep.subr.bf16.mxu0 0
      %1459 = vmatpush1.bf16.msra.mxu0 0
      %1460 = vmatprep.subr.bf16.mxu0 0
      %1461 = vmatpush1.bf16.msra.mxu0 0
      %1462 = vmatprep.subr.bf16.mxu0 0
      %1463 = vmatpush1.bf16.msra.mxu0 %v1446
      %1464 = vmatprep.subr.bf16.mxu0 0
      %1465 = vmatpush2.bf16.msra.mxu0 0
      %1466 = vmatprep.subr.bf16.mxu0 0
      %1467 = vmatpush2.bf16.msra.mxu0 0
      %1468 = vmatprep.subr.bf16.mxu0 0
      %1469 = vmatpush2.bf16.msra.mxu0 0
      %1470 = vmatprep.subr.bf16.mxu0 0
      %1471 = vmatpush2.bf16.msra.mxu0 0
      %1472 = vmatprep.subr.bf16.mxu0 0
      %1473 = vmatpush2.bf16.msra.mxu0 0
      %1474 = vmatprep.subr.bf16.mxu0 0
      %1475 = vmatpush2.bf16.msra.mxu0 0
      %1476 = vmatprep.subr.bf16.mxu0 0
      %1477 = vmatpush2.bf16.msra.mxu0 0
      %1478 = vmatprep.subr.bf16.mxu0 0
      %1479 = vmatpush2.bf16.msra.mxu0 0
      %1480 = vmatprep.mubr.bf16.mxu0 0
      %1481 = vmatmul.mubr.bf16.gmra.mxu0 %v1200
      %v1482 = vpop.f32.mrf.mxu0
      %v1483 = vadd.f32 0.0, %v1482
      %v1484 = vpop.f32.mrf.mxu0
      %v1485 = vpop.f32.mrf.mxu0
      %v1486 = vadd.f32 0.0, %v1485
      %v1487 = vpop.f32.mrf.mxu0
      %1488 = vmatprep.mubr.bf16.mxu0 0
      %1489 = vmatmul.mubr.bf16.gmra.mxu0 %v1203
      %v1490 = vpop.f32.mrf.mxu0
      %v1491 = vadd.f32 0.0, %v1490
      %v1492 = vpop.f32.mrf.mxu0
      %v1493 = vpop.f32.mrf.mxu0
      %v1494 = vadd.f32 0.0, %v1493
      %v1495 = vpop.f32.mrf.mxu0
      %1496 = vmatprep.mubr.bf16.mxu0 0
      %1497 = vmatmul.mubr.bf16.gmra.mxu0 %v1206
      %v1498 = vpop.f32.mrf.mxu0
      %v1499 = vadd.f32 0.0, %v1498
      %v1500 = vpop.f32.mrf.mxu0
      %v1501 = vpop.f32.mrf.mxu0
      %v1502 = vadd.f32 0.0, %v1501
      %v1503 = vpop.f32.mrf.mxu0
      %1504 = vmatprep.mubr.bf16.mxu0 0
      %1505 = vmatmul.mubr.bf16.gmra.mxu0 %v1209
      %v1506 = vpop.f32.mrf.mxu0
      %v1507 = vadd.f32 0.0, %v1506
      %v1508 = vpop.f32.mrf.mxu0
      %v1509 = vpop.f32.mrf.mxu0
      %v1510 = vadd.f32 0.0, %v1509
      %v1511 = vpop.f32.mrf.mxu0
      %1512 = vmatprep.mubr.bf16.mxu0 0
      %1513 = vmatmul.mubr.bf16.gmra.mxu0 %v1212
      %v1514 = vpop.f32.mrf.mxu0
      %v1515 = vadd.f32 0.0, %v1514
      %v1516 = vpop.f32.mrf.mxu0
      %v1517 = vpop.f32.mrf.mxu0
      %v1518 = vadd.f32 0.0, %v1517
      %v1519 = vpop.f32.mrf.mxu0
      %1520 = vmatprep.mubr.bf16.mxu0 0
      %1521 = vmatmul.mubr.bf16.gmra.mxu0 %v1215
      %v1522 = vpop.f32.mrf.mxu0
      %v1523 = vadd.f32 0.0, %v1522
      %v1524 = vpop.f32.mrf.mxu0
      %v1525 = vpop.f32.mrf.mxu0
      %v1526 = vadd.f32 0.0, %v1525
      %v1527 = vpop.f32.mrf.mxu0
      %1528 = vmatprep.mubr.bf16.mxu0 0
      %1529 = vmatmul.mubr.bf16.gmra.mxu0 %v1218
      %v1530 = vpop.f32.mrf.mxu0
      %v1531 = vadd.f32 0.0, %v1530
      %v1532 = vpop.f32.mrf.mxu0
      %v1533 = vpop.f32.mrf.mxu0
      %v1534 = vadd.f32 0.0, %v1533
      %v1535 = vpop.f32.mrf.mxu0
      %1536 = vmatprep.mubr.bf16.mxu0 0
      %1537 = vmatmul.mubr.bf16.gmra.mxu0 %v1221
      %v1538 = vpop.f32.mrf.mxu0
      %v1539 = vadd.f32 0.0, %v1538
      %v1540 = vpop.f32.mrf.mxu0
      %v1541 = vpop.f32.mrf.mxu0
      %v1542 = vadd.f32 0.0, %v1541
      %v1543 = vpop.f32.mrf.mxu0
      %1544 = vmatprep.mubr.bf16.mxu0 0
      %1545 = vmatmul.mubr.bf16.gmra.mxu0 %v1224
      %v1546 = vpop.f32.mrf.mxu0
      %v1547 = vadd.f32 0.0, %v1546
      %v1548 = vpop.f32.mrf.mxu0
      %v1549 = vpop.f32.mrf.mxu0
      %v1550 = vadd.f32 0.0, %v1549
      %v1551 = vpop.f32.mrf.mxu0
      %1552 = vmatprep.mubr.bf16.mxu0 0
      %1553 = vmatmul.mubr.bf16.gmra.mxu0 %v1227
      %v1554 = vpop.f32.mrf.mxu0
      %v1555 = vadd.f32 0.0, %v1554
      %v1556 = vpop.f32.mrf.mxu0
      %v1557 = vpop.f32.mrf.mxu0
      %v1558 = vadd.f32 0.0, %v1557
      %v1559 = vpop.f32.mrf.mxu0
      %1560 = vmatprep.mubr.bf16.mxu0 0
      %1561 = vmatmul.mubr.bf16.gmra.mxu0 %v1230
      %v1562 = vpop.f32.mrf.mxu0
      %v1563 = vadd.f32 0.0, %v1562
      %v1564 = vpop.f32.mrf.mxu0
      %v1565 = vpop.f32.mrf.mxu0
      %v1566 = vadd.f32 0.0, %v1565
      %v1567 = vpop.f32.mrf.mxu0
      %1568 = vmatprep.mubr.bf16.mxu0 0
      %1569 = vmatmul.mubr.bf16.gmra.mxu0 %v1233
      %v1570 = vpop.f32.mrf.mxu0
      %v1571 = vadd.f32 0.0, %v1570
      %v1572 = vpop.f32.mrf.mxu0
      %v1573 = vpop.f32.mrf.mxu0
      %v1574 = vadd.f32 0.0, %v1573
      %v1575 = vpop.f32.mrf.mxu0
      %1576 = vmatprep.mubr.bf16.mxu0 0
      %1577 = vmatmul.mubr.bf16.gmra.mxu0 %v1236
      %v1578 = vpop.f32.mrf.mxu0
      %v1579 = vadd.f32 0.0, %v1578
      %v1580 = vpop.f32.mrf.mxu0
      %v1581 = vpop.f32.mrf.mxu0
      %v1582 = vadd.f32 0.0, %v1581
      %v1583 = vpop.f32.mrf.mxu0
      %1584 = vmatprep.mubr.bf16.mxu0 0
      %1585 = vmatmul.mubr.bf16.gmra.mxu0 %v1239
      %v1586 = vpop.f32.mrf.mxu0
      %v1587 = vadd.f32 0.0, %v1586
      %v1588 = vpop.f32.mrf.mxu0
      %v1589 = vpop.f32.mrf.mxu0
      %v1590 = vadd.f32 0.0, %v1589
      %v1591 = vpop.f32.mrf.mxu0
      %1592 = vmatprep.mubr.bf16.mxu0 0
      %1593 = vmatmul.mubr.bf16.gmra.mxu0 %v1242
      %v1594 = vpop.f32.mrf.mxu0
      %v1595 = vadd.f32 0.0, %v1594
      %v1596 = vpop.f32.mrf.mxu0
      %v1597 = vpop.f32.mrf.mxu0
      %v1598 = vadd.f32 0.0, %v1597
      %v1599 = vpop.f32.mrf.mxu0
      %1600 = vmatprep.mubr.bf16.mxu0 0
      %1601 = vmatmul.mubr.bf16.gmra.mxu0 %v1443
      %v1602 = vpop.f32.mrf.mxu0
      %v1603 = vadd.f32 0.0, %v1602
      %v1604 = vpop.f32.mrf.mxu0
      %v1605 = vpop.f32.mrf.mxu0
      %v1606 = vadd.f32 0.0, %v1605
      %v1607 = vpop.f32.mrf.mxu0
      %1608 = vdwg.mxu0
      %v1609 = vadd.f32 %v1408, %v1483
      %v1610 = vadd.f32 %v1409, %v1486
      %v1611 = vadd.f32 %v1410, %v1491
      %v1612 = vadd.f32 %v1411, %v1494
      %v1613 = vadd.f32 %v1412, %v1499
      %v1614 = vadd.f32 %v1413, %v1502
      %v1615 = vadd.f32 %v1414, %v1507
      %v1616 = vadd.f32 %v1415, %v1510
      %v1617 = vadd.f32 %v1416, %v1515
      %v1618 = vadd.f32 %v1417, %v1518
      %v1619 = vadd.f32 %v1418, %v1523
      %v1620 = vadd.f32 %v1419, %v1526
      %v1621 = vadd.f32 %v1420, %v1531
      %v1622 = vadd.f32 %v1421, %v1534
      %v1623 = vadd.f32 %v1422, %v1539
      %v1624 = vadd.f32 %v1423, %v1542
      %v1625 = vadd.f32 %v1424, %v1547
      %v1626 = vadd.f32 %v1425, %v1550
      %v1627 = vadd.f32 %v1426, %v1555
      %v1628 = vadd.f32 %v1427, %v1558
      %v1629 = vadd.f32 %v1428, %v1563
      %v1630 = vadd.f32 %v1429, %v1566
      %v1631 = vadd.f32 %v1430, %v1571
      %v1632 = vadd.f32 %v1431, %v1574
      %v1633 = vadd.f32 %v1432, %v1579
      %v1634 = vadd.f32 %v1433, %v1582
      %v1635 = vadd.f32 %v1434, %v1587
      %v1636 = vadd.f32 %v1435, %v1590
      %v1637 = vadd.f32 %v1436, %v1595
      %v1638 = vadd.f32 %v1437, %v1598
      %v1639 = vadd.f32 %v1438, %v1603
      %v1640 = vadd.f32 %v1439, %v1606
      %s1641 = scalar_lea.vmem %s1, 14
      %v1642 = vld [vmem:[%s1641] sm:$0x3]
      %v1644 = vsel %vm388, %v1193, 0
      %v1647 = vand.u32 %v1642, %v607
      %1649 = vmatprep.subr.bf16.mxu0 0
      %1650 = vmatpush1.bf16.msra.mxu0 0
      %1651 = vmatprep.subr.bf16.mxu0 0
      %1652 = vmatpush1.bf16.msra.mxu0 0
      %1653 = vmatprep.subr.bf16.mxu0 0
      %1654 = vmatpush1.bf16.msra.mxu0 0
      %1655 = vmatprep.subr.bf16.mxu0 0
      %1656 = vmatpush1.bf16.msra.mxu0 0
      %1657 = vmatprep.subr.bf16.mxu0 0
      %1658 = vmatpush1.bf16.msra.mxu0 0
      %1659 = vmatprep.subr.bf16.mxu0 0
      %1660 = vmatpush1.bf16.msra.mxu0 0
      %1661 = vmatprep.subr.bf16.mxu0 0
      %1662 = vmatpush1.bf16.msra.mxu0 0
      %1663 = vmatprep.subr.bf16.mxu0 0
      %1664 = vmatpush1.bf16.msra.mxu0 %v1647
      %1665 = vmatprep.subr.bf16.mxu0 0
      %1666 = vmatpush2.bf16.msra.mxu0 0
      %1667 = vmatprep.subr.bf16.mxu0 0
      %1668 = vmatpush2.bf16.msra.mxu0 0
      %1669 = vmatprep.subr.bf16.mxu0 0
      %1670 = vmatpush2.bf16.msra.mxu0 0
      %1671 = vmatprep.subr.bf16.mxu0 0
      %1672 = vmatpush2.bf16.msra.mxu0 0
      %1673 = vmatprep.subr.bf16.mxu0 0
      %1674 = vmatpush2.bf16.msra.mxu0 0
      %1675 = vmatprep.subr.bf16.mxu0 0
      %1676 = vmatpush2.bf16.msra.mxu0 0
      %1677 = vmatprep.subr.bf16.mxu0 0
      %1678 = vmatpush2.bf16.msra.mxu0 0
      %1679 = vmatprep.subr.bf16.mxu0 0
      %1680 = vmatpush2.bf16.msra.mxu0 0
      %1681 = vmatprep.mubr.bf16.mxu0 0
      %1682 = vmatmul.mubr.bf16.gmra.mxu0 %v1203
      %v1683 = vpop.f32.mrf.mxu0
      %v1684 = vadd.f32 0.0, %v1683
      %v1685 = vpop.f32.mrf.mxu0
      %v1686 = vpop.f32.mrf.mxu0
      %v1687 = vadd.f32 0.0, %v1686
      %v1688 = vpop.f32.mrf.mxu0
      %1689 = vmatprep.mubr.bf16.mxu0 0
      %1690 = vmatmul.mubr.bf16.gmra.mxu0 %v1206
      %v1691 = vpop.f32.mrf.mxu0
      %v1692 = vadd.f32 0.0, %v1691
      %v1693 = vpop.f32.mrf.mxu0
      %v1694 = vpop.f32.mrf.mxu0
      %v1695 = vadd.f32 0.0, %v1694
      %v1696 = vpop.f32.mrf.mxu0
      %1697 = vmatprep.mubr.bf16.mxu0 0
      %1698 = vmatmul.mubr.bf16.gmra.mxu0 %v1209
      %v1699 = vpop.f32.mrf.mxu0
      %v1700 = vadd.f32 0.0, %v1699
      %v1701 = vpop.f32.mrf.mxu0
      %v1702 = vpop.f32.mrf.mxu0
      %v1703 = vadd.f32 0.0, %v1702
      %v1704 = vpop.f32.mrf.mxu0
      %1705 = vmatprep.mubr.bf16.mxu0 0
      %1706 = vmatmul.mubr.bf16.gmra.mxu0 %v1212
      %v1707 = vpop.f32.mrf.mxu0
      %v1708 = vadd.f32 0.0, %v1707
      %v1709 = vpop.f32.mrf.mxu0
      %v1710 = vpop.f32.mrf.mxu0
      %v1711 = vadd.f32 0.0, %v1710
      %v1712 = vpop.f32.mrf.mxu0
      %1713 = vmatprep.mubr.bf16.mxu0 0
      %1714 = vmatmul.mubr.bf16.gmra.mxu0 %v1215
      %v1715 = vpop.f32.mrf.mxu0
      %v1716 = vadd.f32 0.0, %v1715
      %v1717 = vpop.f32.mrf.mxu0
      %v1718 = vpop.f32.mrf.mxu0
      %v1719 = vadd.f32 0.0, %v1718
      %v1720 = vpop.f32.mrf.mxu0
      %1721 = vmatprep.mubr.bf16.mxu0 0
      %1722 = vmatmul.mubr.bf16.gmra.mxu0 %v1218
      %v1723 = vpop.f32.mrf.mxu0
      %v1724 = vadd.f32 0.0, %v1723
      %v1725 = vpop.f32.mrf.mxu0
      %v1726 = vpop.f32.mrf.mxu0
      %v1727 = vadd.f32 0.0, %v1726
      %v1728 = vpop.f32.mrf.mxu0
      %1729 = vmatprep.mubr.bf16.mxu0 0
      %1730 = vmatmul.mubr.bf16.gmra.mxu0 %v1221
      %v1731 = vpop.f32.mrf.mxu0
      %v1732 = vadd.f32 0.0, %v1731
      %v1733 = vpop.f32.mrf.mxu0
      %v1734 = vpop.f32.mrf.mxu0
      %v1735 = vadd.f32 0.0, %v1734
      %v1736 = vpop.f32.mrf.mxu0
      %1737 = vmatprep.mubr.bf16.mxu0 0
      %1738 = vmatmul.mubr.bf16.gmra.mxu0 %v1224
      %v1739 = vpop.f32.mrf.mxu0
      %v1740 = vadd.f32 0.0, %v1739
      %v1741 = vpop.f32.mrf.mxu0
      %v1742 = vpop.f32.mrf.mxu0
      %v1743 = vadd.f32 0.0, %v1742
      %v1744 = vpop.f32.mrf.mxu0
      %1745 = vmatprep.mubr.bf16.mxu0 0
      %1746 = vmatmul.mubr.bf16.gmra.mxu0 %v1227
      %v1747 = vpop.f32.mrf.mxu0
      %v1748 = vadd.f32 0.0, %v1747
      %v1749 = vpop.f32.mrf.mxu0
      %v1750 = vpop.f32.mrf.mxu0
      %v1751 = vadd.f32 0.0, %v1750
      %v1752 = vpop.f32.mrf.mxu0
      %1753 = vmatprep.mubr.bf16.mxu0 0
      %1754 = vmatmul.mubr.bf16.gmra.mxu0 %v1230
      %v1755 = vpop.f32.mrf.mxu0
      %v1756 = vadd.f32 0.0, %v1755
      %v1757 = vpop.f32.mrf.mxu0
      %v1758 = vpop.f32.mrf.mxu0
      %v1759 = vadd.f32 0.0, %v1758
      %v1760 = vpop.f32.mrf.mxu0
      %1761 = vmatprep.mubr.bf16.mxu0 0
      %1762 = vmatmul.mubr.bf16.gmra.mxu0 %v1233
      %v1763 = vpop.f32.mrf.mxu0
      %v1764 = vadd.f32 0.0, %v1763
      %v1765 = vpop.f32.mrf.mxu0
      %v1766 = vpop.f32.mrf.mxu0
      %v1767 = vadd.f32 0.0, %v1766
      %v1768 = vpop.f32.mrf.mxu0
      %1769 = vmatprep.mubr.bf16.mxu0 0
      %1770 = vmatmul.mubr.bf16.gmra.mxu0 %v1236
      %v1771 = vpop.f32.mrf.mxu0
      %v1772 = vadd.f32 0.0, %v1771
      %v1773 = vpop.f32.mrf.mxu0
      %v1774 = vpop.f32.mrf.mxu0
      %v1775 = vadd.f32 0.0, %v1774
      %v1776 = vpop.f32.mrf.mxu0
      %1777 = vmatprep.mubr.bf16.mxu0 0
      %1778 = vmatmul.mubr.bf16.gmra.mxu0 %v1239
      %v1779 = vpop.f32.mrf.mxu0
      %v1780 = vadd.f32 0.0, %v1779
      %v1781 = vpop.f32.mrf.mxu0
      %v1782 = vpop.f32.mrf.mxu0
      %v1783 = vadd.f32 0.0, %v1782
      %v1784 = vpop.f32.mrf.mxu0
      %1785 = vmatprep.mubr.bf16.mxu0 0
      %1786 = vmatmul.mubr.bf16.gmra.mxu0 %v1242
      %v1787 = vpop.f32.mrf.mxu0
      %v1788 = vadd.f32 0.0, %v1787
      %v1789 = vpop.f32.mrf.mxu0
      %v1790 = vpop.f32.mrf.mxu0
      %v1791 = vadd.f32 0.0, %v1790
      %v1792 = vpop.f32.mrf.mxu0
      %1793 = vmatprep.mubr.bf16.mxu0 0
      %1794 = vmatmul.mubr.bf16.gmra.mxu0 %v1443
      %v1795 = vpop.f32.mrf.mxu0
      %v1796 = vadd.f32 0.0, %v1795
      %v1797 = vpop.f32.mrf.mxu0
      %v1798 = vpop.f32.mrf.mxu0
      %v1799 = vadd.f32 0.0, %v1798
      %v1800 = vpop.f32.mrf.mxu0
      %1801 = vmatprep.mubr.bf16.mxu0 0
      %1802 = vmatmul.mubr.bf16.gmra.mxu0 %v1644
      %v1803 = vpop.f32.mrf.mxu0
      %v1804 = vadd.f32 0.0, %v1803
      %v1805 = vpop.f32.mrf.mxu0
      %v1806 = vpop.f32.mrf.mxu0
      %v1807 = vadd.f32 0.0, %v1806
      %v1808 = vpop.f32.mrf.mxu0
      %1809 = vdwg.mxu0
      %v1810 = vadd.f32 %v1609, %v1684
      %v1811 = vadd.f32 %v1610, %v1687
      %v1812 = vadd.f32 %v1611, %v1692
      %v1813 = vadd.f32 %v1612, %v1695
      %v1814 = vadd.f32 %v1613, %v1700
      %v1815 = vadd.f32 %v1614, %v1703
      %v1816 = vadd.f32 %v1615, %v1708
      %v1817 = vadd.f32 %v1616, %v1711
      %v1818 = vadd.f32 %v1617, %v1716
      %v1819 = vadd.f32 %v1618, %v1719
      %v1820 = vadd.f32 %v1619, %v1724
      %v1821 = vadd.f32 %v1620, %v1727
      %v1822 = vadd.f32 %v1621, %v1732
      %v1823 = vadd.f32 %v1622, %v1735
      %v1824 = vadd.f32 %v1623, %v1740
      %v1825 = vadd.f32 %v1624, %v1743
      %v1826 = vadd.f32 %v1625, %v1748
      %v1827 = vadd.f32 %v1626, %v1751
      %v1828 = vadd.f32 %v1627, %v1756
      %v1829 = vadd.f32 %v1628, %v1759
      %v1830 = vadd.f32 %v1629, %v1764
      %v1831 = vadd.f32 %v1630, %v1767
      %v1832 = vadd.f32 %v1631, %v1772
      %v1833 = vadd.f32 %v1632, %v1775
      %v1834 = vadd.f32 %v1633, %v1780
      %v1835 = vadd.f32 %v1634, %v1783
      %v1836 = vadd.f32 %v1635, %v1788
      %v1837 = vadd.f32 %v1636, %v1791
      %v1838 = vadd.f32 %v1637, %v1796
      %v1839 = vadd.f32 %v1638, %v1799
      %v1840 = vadd.f32 %v1639, %v1804
      %v1841 = vadd.f32 %v1640, %v1807
      %v1842 = vld [vmem:[#allocation2 + $0x2] sm:$0xff]
      %v1843 = vld [vmem:[#allocation2 + $0xa] sm:$0xff]
      %v1844 = vld [vmem:[#allocation2 + $0x1a] sm:$0xff]
      %v1845 = vld [vmem:[#allocation2 + $0x22] sm:$0xff]
      %v1846 = vld [vmem:[#allocation2 + $0x32] sm:$0xff]
      %v1847 = vld [vmem:[#allocation2 + $0x3a] sm:$0xff]
      %v1848 = vld [vmem:[#allocation2 + $0x4a] sm:$0xff]
      %v1849 = vld [vmem:[#allocation2 + $0x52] sm:$0xff]
      %v1850 = vld [vmem:[#allocation2 + $0x62] sm:$0xff]
      %v1851 = vld [vmem:[#allocation2 + $0x6a] sm:$0xff]
      %v1852 = vld [vmem:[#allocation2 + $0x7a] sm:$0xff]
      %v1853 = vld [vmem:[#allocation2 + $0x82] sm:$0xff]
      %v1854 = vld [vmem:[#allocation2 + $0x92] sm:$0xff]
      %v1855 = vld [vmem:[#allocation2 + $0x9a] sm:$0xff]
      %v1856 = vld [vmem:[#allocation2 + $0xaa] sm:$0xff]
      %v1857 = vld [vmem:[#allocation2 + $0xb2] sm:$0xff]
      %v1858 = vld [vmem:[#allocation2 + $0xc2] sm:$0xff]
      %v1859 = vld [vmem:[#allocation2 + $0xca] sm:$0xff]
      %v1860 = vld [vmem:[#allocation2 + $0xda] sm:$0xff]
      %v1861 = vld [vmem:[#allocation2 + $0xe2] sm:$0xff]
      %v1862 = vld [vmem:[#allocation2 + $0xf2] sm:$0xff]
      %v1863 = vld [vmem:[#allocation2 + $0xfa] sm:$0xff]
      %v1864 = vld [vmem:[#allocation2 + $0x10a] sm:$0xff]
      %v1865 = vld [vmem:[#allocation2 + $0x112] sm:$0xff]
      %v1866 = vld [vmem:[#allocation2 + $0x122] sm:$0xff]
      %v1867 = vld [vmem:[#allocation2 + $0x12a] sm:$0xff]
      %v1868 = vld [vmem:[#allocation2 + $0x13a] sm:$0xff]
      %v1869 = vld [vmem:[#allocation2 + $0x142] sm:$0xff]
      %v1870 = vld [vmem:[#allocation2 + $0x152] sm:$0xff]
      %v1871 = vld [vmem:[#allocation2 + $0x15a] sm:$0xff]
      %v1872 = vld [vmem:[#allocation2 + $0x16a] sm:$0xff]
      %v1873 = vld [vmem:[#allocation2 + $0x172] sm:$0xff]
      %v1874 = vld [vmem:[#allocation2 + $0x182] sm:$0xff]
      %v1875 = vld [vmem:[#allocation2 + $0x18a] sm:$0xff]
      %v1876 = vld [vmem:[#allocation2 + $0x19a] sm:$0xff]
      %v1877 = vld [vmem:[#allocation2 + $0x1a2] sm:$0xff]
      %v1878 = vpack.c.bf16 %v1843, %v1842
      %v1879 = vpack.c.bf16 %v1845, %v1844
      %v1880 = vpack.c.bf16 %v1847, %v1846
      %v1881 = vpack.c.bf16 %v1849, %v1848
      %v1882 = vpack.c.bf16 %v1851, %v1850
      %v1883 = vpack.c.bf16 %v1853, %v1852
      %v1884 = vpack.c.bf16 %v1855, %v1854
      %v1885 = vpack.c.bf16 %v1857, %v1856
      %v1886 = vpack.c.bf16 %v1859, %v1858
      %v1887 = vpack.c.bf16 %v1861, %v1860
      %v1888 = vpack.c.bf16 %v1863, %v1862
      %v1889 = vpack.c.bf16 %v1865, %v1864
      %v1890 = vpack.c.bf16 %v1867, %v1866
      %v1891 = vpack.c.bf16 %v1869, %v1868
      %v1892 = vpack.c.bf16 %v1871, %v1870
      %v1893 = vpack.c.bf16 %v1873, %v1872
      %v1894 = vpack.c.bf16 %v1875, %v1874
      %v1895 = vpack.c.bf16 %v1877, %v1876
      %s1896 = scalar_lea.vmem %s1, 4
      %v1897 = vld [vmem:[%s1896] sm:$0x3]
      %v1899 = vsel %vm388, %v1878, 0
      %v1902 = vsel %vm388, %v1879, 0
      %v1905 = vsel %vm388, %v1880, 0
      %v1908 = vsel %vm388, %v1881, 0
      %v1911 = vsel %vm388, %v1882, 0
      %v1914 = vsel %vm388, %v1883, 0
      %v1917 = vsel %vm388, %v1884, 0
      %v1920 = vsel %vm388, %v1885, 0
      %v1923 = vsel %vm388, %v1886, 0
      %v1926 = vsel %vm388, %v1887, 0
      %v1929 = vsel %vm388, %v1888, 0
      %v1932 = vsel %vm388, %v1889, 0
      %v1935 = vsel %vm388, %v1890, 0
      %v1938 = vsel %vm388, %v1891, 0
      %v1941 = vsel %vm388, %v1892, 0
      %v1944 = vsel %vm388, %v1893, 0
      %v1947 = vand.u32 %v1897, %v607
      %1949 = vmatprep.subr.bf16.mxu0 0
      %1950 = vmatpush1.bf16.msra.mxu0 0
      %1951 = vmatprep.subr.bf16.mxu0 0
      %1952 = vmatpush1.bf16.msra.mxu0 0
      %1953 = vmatprep.subr.bf16.mxu0 0
      %1954 = vmatpush1.bf16.msra.mxu0 0
      %1955 = vmatprep.subr.bf16.mxu0 0
      %1956 = vmatpush1.bf16.msra.mxu0 0
      %1957 = vmatprep.subr.bf16.mxu0 0
      %1958 = vmatpush1.bf16.msra.mxu0 0
      %1959 = vmatprep.subr.bf16.mxu0 0
      %1960 = vmatpush1.bf16.msra.mxu0 0
      %1961 = vmatprep.subr.bf16.mxu0 0
      %1962 = vmatpush1.bf16.msra.mxu0 0
      %1963 = vmatprep.subr.bf16.mxu0 0
      %1964 = vmatpush1.bf16.msra.mxu0 %v1947
      %1965 = vmatprep.subr.bf16.mxu0 0
      %1966 = vmatpush2.bf16.msra.mxu0 0
      %1967 = vmatprep.subr.bf16.mxu0 0
      %1968 = vmatpush2.bf16.msra.mxu0 0
      %1969 = vmatprep.subr.bf16.mxu0 0
      %1970 = vmatpush2.bf16.msra.mxu0 0
      %1971 = vmatprep.subr.bf16.mxu0 0
      %1972 = vmatpush2.bf16.msra.mxu0 0
      %1973 = vmatprep.subr.bf16.mxu0 0
      %1974 = vmatpush2.bf16.msra.mxu0 0
      %1975 = vmatprep.subr.bf16.mxu0 0
      %1976 = vmatpush2.bf16.msra.mxu0 0
      %1977 = vmatprep.subr.bf16.mxu0 0
      %1978 = vmatpush2.bf16.msra.mxu0 0
      %1979 = vmatprep.subr.bf16.mxu0 0
      %1980 = vmatpush2.bf16.msra.mxu0 0
      %1981 = vmatprep.mubr.bf16.mxu0 0
      %1982 = vmatmul.mubr.bf16.gmra.mxu0 %v1899
      %v1983 = vpop.f32.mrf.mxu0
      %v1984 = vadd.f32 0.0, %v1983
      %v1985 = vpop.f32.mrf.mxu0
      %v1986 = vpop.f32.mrf.mxu0
      %v1987 = vadd.f32 0.0, %v1986
      %v1988 = vpop.f32.mrf.mxu0
      %1989 = vmatprep.mubr.bf16.mxu0 0
      %1990 = vmatmul.mubr.bf16.gmra.mxu0 %v1902
      %v1991 = vpop.f32.mrf.mxu0
      %v1992 = vadd.f32 0.0, %v1991
      %v1993 = vpop.f32.mrf.mxu0
      %v1994 = vpop.f32.mrf.mxu0
      %v1995 = vadd.f32 0.0, %v1994
      %v1996 = vpop.f32.mrf.mxu0
      %1997 = vmatprep.mubr.bf16.mxu0 0
      %1998 = vmatmul.mubr.bf16.gmra.mxu0 %v1905
      %v1999 = vpop.f32.mrf.mxu0
      %v2000 = vadd.f32 0.0, %v1999
      %v2001 = vpop.f32.mrf.mxu0
      %v2002 = vpop.f32.mrf.mxu0
      %v2003 = vadd.f32 0.0, %v2002
      %v2004 = vpop.f32.mrf.mxu0
      %2005 = vmatprep.mubr.bf16.mxu0 0
      %2006 = vmatmul.mubr.bf16.gmra.mxu0 %v1908
      %v2007 = vpop.f32.mrf.mxu0
      %v2008 = vadd.f32 0.0, %v2007
      %v2009 = vpop.f32.mrf.mxu0
      %v2010 = vpop.f32.mrf.mxu0
      %v2011 = vadd.f32 0.0, %v2010
      %v2012 = vpop.f32.mrf.mxu0
      %2013 = vmatprep.mubr.bf16.mxu0 0
      %2014 = vmatmul.mubr.bf16.gmra.mxu0 %v1911
      %v2015 = vpop.f32.mrf.mxu0
      %v2016 = vadd.f32 0.0, %v2015
      %v2017 = vpop.f32.mrf.mxu0
      %v2018 = vpop.f32.mrf.mxu0
      %v2019 = vadd.f32 0.0, %v2018
      %v2020 = vpop.f32.mrf.mxu0
      %2021 = vmatprep.mubr.bf16.mxu0 0
      %2022 = vmatmul.mubr.bf16.gmra.mxu0 %v1914
      %v2023 = vpop.f32.mrf.mxu0
      %v2024 = vadd.f32 0.0, %v2023
      %v2025 = vpop.f32.mrf.mxu0
      %v2026 = vpop.f32.mrf.mxu0
      %v2027 = vadd.f32 0.0, %v2026
      %v2028 = vpop.f32.mrf.mxu0
      %2029 = vmatprep.mubr.bf16.mxu0 0
      %2030 = vmatmul.mubr.bf16.gmra.mxu0 %v1917
      %v2031 = vpop.f32.mrf.mxu0
      %v2032 = vadd.f32 0.0, %v2031
      %v2033 = vpop.f32.mrf.mxu0
      %v2034 = vpop.f32.mrf.mxu0
      %v2035 = vadd.f32 0.0, %v2034
      %v2036 = vpop.f32.mrf.mxu0
      %2037 = vmatprep.mubr.bf16.mxu0 0
      %2038 = vmatmul.mubr.bf16.gmra.mxu0 %v1920
      %v2039 = vpop.f32.mrf.mxu0
      %v2040 = vadd.f32 0.0, %v2039
      %v2041 = vpop.f32.mrf.mxu0
      %v2042 = vpop.f32.mrf.mxu0
      %v2043 = vadd.f32 0.0, %v2042
      %v2044 = vpop.f32.mrf.mxu0
      %2045 = vmatprep.mubr.bf16.mxu0 0
      %2046 = vmatmul.mubr.bf16.gmra.mxu0 %v1923
      %v2047 = vpop.f32.mrf.mxu0
      %v2048 = vadd.f32 0.0, %v2047
      %v2049 = vpop.f32.mrf.mxu0
      %v2050 = vpop.f32.mrf.mxu0
      %v2051 = vadd.f32 0.0, %v2050
      %v2052 = vpop.f32.mrf.mxu0
      %2053 = vmatprep.mubr.bf16.mxu0 0
      %2054 = vmatmul.mubr.bf16.gmra.mxu0 %v1926
      %v2055 = vpop.f32.mrf.mxu0
      %v2056 = vadd.f32 0.0, %v2055
      %v2057 = vpop.f32.mrf.mxu0
      %v2058 = vpop.f32.mrf.mxu0
      %v2059 = vadd.f32 0.0, %v2058
      %v2060 = vpop.f32.mrf.mxu0
      %2061 = vmatprep.mubr.bf16.mxu0 0
      %2062 = vmatmul.mubr.bf16.gmra.mxu0 %v1929
      %v2063 = vpop.f32.mrf.mxu0
      %v2064 = vadd.f32 0.0, %v2063
      %v2065 = vpop.f32.mrf.mxu0
      %v2066 = vpop.f32.mrf.mxu0
      %v2067 = vadd.f32 0.0, %v2066
      %v2068 = vpop.f32.mrf.mxu0
      %2069 = vmatprep.mubr.bf16.mxu0 0
      %2070 = vmatmul.mubr.bf16.gmra.mxu0 %v1932
      %v2071 = vpop.f32.mrf.mxu0
      %v2072 = vadd.f32 0.0, %v2071
      %v2073 = vpop.f32.mrf.mxu0
      %v2074 = vpop.f32.mrf.mxu0
      %v2075 = vadd.f32 0.0, %v2074
      %v2076 = vpop.f32.mrf.mxu0
      %2077 = vmatprep.mubr.bf16.mxu0 0
      %2078 = vmatmul.mubr.bf16.gmra.mxu0 %v1935
      %v2079 = vpop.f32.mrf.mxu0
      %v2080 = vadd.f32 0.0, %v2079
      %v2081 = vpop.f32.mrf.mxu0
      %v2082 = vpop.f32.mrf.mxu0
      %v2083 = vadd.f32 0.0, %v2082
      %v2084 = vpop.f32.mrf.mxu0
      %2085 = vmatprep.mubr.bf16.mxu0 0
      %2086 = vmatmul.mubr.bf16.gmra.mxu0 %v1938
      %v2087 = vpop.f32.mrf.mxu0
      %v2088 = vadd.f32 0.0, %v2087
      %v2089 = vpop.f32.mrf.mxu0
      %v2090 = vpop.f32.mrf.mxu0
      %v2091 = vadd.f32 0.0, %v2090
      %v2092 = vpop.f32.mrf.mxu0
      %2093 = vmatprep.mubr.bf16.mxu0 0
      %2094 = vmatmul.mubr.bf16.gmra.mxu0 %v1941
      %v2095 = vpop.f32.mrf.mxu0
      %v2096 = vadd.f32 0.0, %v2095
      %v2097 = vpop.f32.mrf.mxu0
      %v2098 = vpop.f32.mrf.mxu0
      %v2099 = vadd.f32 0.0, %v2098
      %v2100 = vpop.f32.mrf.mxu0
      %2101 = vmatprep.mubr.bf16.mxu0 0
      %2102 = vmatmul.mubr.bf16.gmra.mxu0 %v1944
      %v2103 = vpop.f32.mrf.mxu0
      %v2104 = vadd.f32 0.0, %v2103
      %v2105 = vpop.f32.mrf.mxu0
      %v2106 = vpop.f32.mrf.mxu0
      %v2107 = vadd.f32 0.0, %v2106
      %v2108 = vpop.f32.mrf.mxu0
      %2109 = vdwg.mxu0
      %v2110 = vadd.f32 %v1810, %v1984
      %v2111 = vadd.f32 %v1811, %v1987
      %v2112 = vadd.f32 %v1812, %v1992
      %v2113 = vadd.f32 %v1813, %v1995
      %v2114 = vadd.f32 %v1814, %v2000
      %v2115 = vadd.f32 %v1815, %v2003
      %v2116 = vadd.f32 %v1816, %v2008
      %v2117 = vadd.f32 %v1817, %v2011
      %v2118 = vadd.f32 %v1818, %v2016
      %v2119 = vadd.f32 %v1819, %v2019
      %v2120 = vadd.f32 %v1820, %v2024
      %v2121 = vadd.f32 %v1821, %v2027
      %v2122 = vadd.f32 %v1822, %v2032
      %v2123 = vadd.f32 %v1823, %v2035
      %v2124 = vadd.f32 %v1824, %v2040
      %v2125 = vadd.f32 %v1825, %v2043
      %v2126 = vadd.f32 %v1826, %v2048
      %v2127 = vadd.f32 %v1827, %v2051
      %v2128 = vadd.f32 %v1828, %v2056
      %v2129 = vadd.f32 %v1829, %v2059
      %v2130 = vadd.f32 %v1830, %v2064
      %v2131 = vadd.f32 %v1831, %v2067
      %v2132 = vadd.f32 %v1832, %v2072
      %v2133 = vadd.f32 %v1833, %v2075
      %v2134 = vadd.f32 %v1834, %v2080
      %v2135 = vadd.f32 %v1835, %v2083
      %v2136 = vadd.f32 %v1836, %v2088
      %v2137 = vadd.f32 %v1837, %v2091
      %v2138 = vadd.f32 %v1838, %v2096
      %v2139 = vadd.f32 %v1839, %v2099
      %v2140 = vadd.f32 %v1840, %v2104
      %v2141 = vadd.f32 %v1841, %v2107
      %s2142 = scalar_lea.vmem %s1, 10
      %v2143 = vld [vmem:[%s2142] sm:$0x3]
      %v2145 = vsel %vm388, %v1894, 0
      %v2148 = vand.u32 %v2143, %v607
      %2150 = vmatprep.subr.bf16.mxu0 0
      %2151 = vmatpush1.bf16.msra.mxu0 0
      %2152 = vmatprep.subr.bf16.mxu0 0
      %2153 = vmatpush1.bf16.msra.mxu0 0
      %2154 = vmatprep.subr.bf16.mxu0 0
      %2155 = vmatpush1.bf16.msra.mxu0 0
      %2156 = vmatprep.subr.bf16.mxu0 0
      %2157 = vmatpush1.bf16.msra.mxu0 0
      %2158 = vmatprep.subr.bf16.mxu0 0
      %2159 = vmatpush1.bf16.msra.mxu0 0
      %2160 = vmatprep.subr.bf16.mxu0 0
      %2161 = vmatpush1.bf16.msra.mxu0 0
      %2162 = vmatprep.subr.bf16.mxu0 0
      %2163 = vmatpush1.bf16.msra.mxu0 0
      %2164 = vmatprep.subr.bf16.mxu0 0
      %2165 = vmatpush1.bf16.msra.mxu0 %v2148
      %2166 = vmatprep.subr.bf16.mxu0 0
      %2167 = vmatpush2.bf16.msra.mxu0 0
      %2168 = vmatprep.subr.bf16.mxu0 0
      %2169 = vmatpush2.bf16.msra.mxu0 0
      %2170 = vmatprep.subr.bf16.mxu0 0
      %2171 = vmatpush2.bf16.msra.mxu0 0
      %2172 = vmatprep.subr.bf16.mxu0 0
      %2173 = vmatpush2.bf16.msra.mxu0 0
      %2174 = vmatprep.subr.bf16.mxu0 0
      %2175 = vmatpush2.bf16.msra.mxu0 0
      %2176 = vmatprep.subr.bf16.mxu0 0
      %2177 = vmatpush2.bf16.msra.mxu0 0
      %2178 = vmatprep.subr.bf16.mxu0 0
      %2179 = vmatpush2.bf16.msra.mxu0 0
      %2180 = vmatprep.subr.bf16.mxu0 0
      %2181 = vmatpush2.bf16.msra.mxu0 0
      %2182 = vmatprep.mubr.bf16.mxu0 0
      %2183 = vmatmul.mubr.bf16.gmra.mxu0 %v1902
      %v2184 = vpop.f32.mrf.mxu0
      %v2185 = vadd.f32 0.0, %v2184
      %v2186 = vpop.f32.mrf.mxu0
      %v2187 = vpop.f32.mrf.mxu0
      %v2188 = vadd.f32 0.0, %v2187
      %v2189 = vpop.f32.mrf.mxu0
      %2190 = vmatprep.mubr.bf16.mxu0 0
      %2191 = vmatmul.mubr.bf16.gmra.mxu0 %v1905
      %v2192 = vpop.f32.mrf.mxu0
      %v2193 = vadd.f32 0.0, %v2192
      %v2194 = vpop.f32.mrf.mxu0
      %v2195 = vpop.f32.mrf.mxu0
      %v2196 = vadd.f32 0.0, %v2195
      %v2197 = vpop.f32.mrf.mxu0
      %2198 = vmatprep.mubr.bf16.mxu0 0
      %2199 = vmatmul.mubr.bf16.gmra.mxu0 %v1908
      %v2200 = vpop.f32.mrf.mxu0
      %v2201 = vadd.f32 0.0, %v2200
      %v2202 = vpop.f32.mrf.mxu0
      %v2203 = vpop.f32.mrf.mxu0
      %v2204 = vadd.f32 0.0, %v2203
      %v2205 = vpop.f32.mrf.mxu0
      %2206 = vmatprep.mubr.bf16.mxu0 0
      %2207 = vmatmul.mubr.bf16.gmra.mxu0 %v1911
      %v2208 = vpop.f32.mrf.mxu0
      %v2209 = vadd.f32 0.0, %v2208
      %v2210 = vpop.f32.mrf.mxu0
      %v2211 = vpop.f32.mrf.mxu0
      %v2212 = vadd.f32 0.0, %v2211
      %v2213 = vpop.f32.mrf.mxu0
      %2214 = vmatprep.mubr.bf16.mxu0 0
      %2215 = vmatmul.mubr.bf16.gmra.mxu0 %v1914
      %v2216 = vpop.f32.mrf.mxu0
      %v2217 = vadd.f32 0.0, %v2216
      %v2218 = vpop.f32.mrf.mxu0
      %v2219 = vpop.f32.mrf.mxu0
      %v2220 = vadd.f32 0.0, %v2219
      %v2221 = vpop.f32.mrf.mxu0
      %2222 = vmatprep.mubr.bf16.mxu0 0
      %2223 = vmatmul.mubr.bf16.gmra.mxu0 %v1917
      %v2224 = vpop.f32.mrf.mxu0
      %v2225 = vadd.f32 0.0, %v2224
      %v2226 = vpop.f32.mrf.mxu0
      %v2227 = vpop.f32.mrf.mxu0
      %v2228 = vadd.f32 0.0, %v2227
      %v2229 = vpop.f32.mrf.mxu0
      %2230 = vmatprep.mubr.bf16.mxu0 0
      %2231 = vmatmul.mubr.bf16.gmra.mxu0 %v1920
      %v2232 = vpop.f32.mrf.mxu0
      %v2233 = vadd.f32 0.0, %v2232
      %v2234 = vpop.f32.mrf.mxu0
      %v2235 = vpop.f32.mrf.mxu0
      %v2236 = vadd.f32 0.0, %v2235
      %v2237 = vpop.f32.mrf.mxu0
      %2238 = vmatprep.mubr.bf16.mxu0 0
      %2239 = vmatmul.mubr.bf16.gmra.mxu0 %v1923
      %v2240 = vpop.f32.mrf.mxu0
      %v2241 = vadd.f32 0.0, %v2240
      %v2242 = vpop.f32.mrf.mxu0
      %v2243 = vpop.f32.mrf.mxu0
      %v2244 = vadd.f32 0.0, %v2243
      %v2245 = vpop.f32.mrf.mxu0
      %2246 = vmatprep.mubr.bf16.mxu0 0
      %2247 = vmatmul.mubr.bf16.gmra.mxu0 %v1926
      %v2248 = vpop.f32.mrf.mxu0
      %v2249 = vadd.f32 0.0, %v2248
      %v2250 = vpop.f32.mrf.mxu0
      %v2251 = vpop.f32.mrf.mxu0
      %v2252 = vadd.f32 0.0, %v2251
      %v2253 = vpop.f32.mrf.mxu0
      %2254 = vmatprep.mubr.bf16.mxu0 0
      %2255 = vmatmul.mubr.bf16.gmra.mxu0 %v1929
      %v2256 = vpop.f32.mrf.mxu0
      %v2257 = vadd.f32 0.0, %v2256
      %v2258 = vpop.f32.mrf.mxu0
      %v2259 = vpop.f32.mrf.mxu0
      %v2260 = vadd.f32 0.0, %v2259
      %v2261 = vpop.f32.mrf.mxu0
      %2262 = vmatprep.mubr.bf16.mxu0 0
      %2263 = vmatmul.mubr.bf16.gmra.mxu0 %v1932
      %v2264 = vpop.f32.mrf.mxu0
      %v2265 = vadd.f32 0.0, %v2264
      %v2266 = vpop.f32.mrf.mxu0
      %v2267 = vpop.f32.mrf.mxu0
      %v2268 = vadd.f32 0.0, %v2267
      %v2269 = vpop.f32.mrf.mxu0
      %2270 = vmatprep.mubr.bf16.mxu0 0
      %2271 = vmatmul.mubr.bf16.gmra.mxu0 %v1935
      %v2272 = vpop.f32.mrf.mxu0
      %v2273 = vadd.f32 0.0, %v2272
      %v2274 = vpop.f32.mrf.mxu0
      %v2275 = vpop.f32.mrf.mxu0
      %v2276 = vadd.f32 0.0, %v2275
      %v2277 = vpop.f32.mrf.mxu0
      %2278 = vmatprep.mubr.bf16.mxu0 0
      %2279 = vmatmul.mubr.bf16.gmra.mxu0 %v1938
      %v2280 = vpop.f32.mrf.mxu0
      %v2281 = vadd.f32 0.0, %v2280
      %v2282 = vpop.f32.mrf.mxu0
      %v2283 = vpop.f32.mrf.mxu0
      %v2284 = vadd.f32 0.0, %v2283
      %v2285 = vpop.f32.mrf.mxu0
      %2286 = vmatprep.mubr.bf16.mxu0 0
      %2287 = vmatmul.mubr.bf16.gmra.mxu0 %v1941
      %v2288 = vpop.f32.mrf.mxu0
      %v2289 = vadd.f32 0.0, %v2288
      %v2290 = vpop.f32.mrf.mxu0
      %v2291 = vpop.f32.mrf.mxu0
      %v2292 = vadd.f32 0.0, %v2291
      %v2293 = vpop.f32.mrf.mxu0
      %2294 = vmatprep.mubr.bf16.mxu0 0
      %2295 = vmatmul.mubr.bf16.gmra.mxu0 %v1944
      %v2296 = vpop.f32.mrf.mxu0
      %v2297 = vadd.f32 0.0, %v2296
      %v2298 = vpop.f32.mrf.mxu0
      %v2299 = vpop.f32.mrf.mxu0
      %v2300 = vadd.f32 0.0, %v2299
      %v2301 = vpop.f32.mrf.mxu0
      %2302 = vmatprep.mubr.bf16.mxu0 0
      %2303 = vmatmul.mubr.bf16.gmra.mxu0 %v2145
      %v2304 = vpop.f32.mrf.mxu0
      %v2305 = vadd.f32 0.0, %v2304
      %v2306 = vpop.f32.mrf.mxu0
      %v2307 = vpop.f32.mrf.mxu0
      %v2308 = vadd.f32 0.0, %v2307
      %v2309 = vpop.f32.mrf.mxu0
      %2310 = vdwg.mxu0
      %v2311 = vadd.f32 %v2110, %v2185
      %v2312 = vadd.f32 %v2111, %v2188
      %v2313 = vadd.f32 %v2112, %v2193
      %v2314 = vadd.f32 %v2113, %v2196
      %v2315 = vadd.f32 %v2114, %v2201
      %v2316 = vadd.f32 %v2115, %v2204
      %v2317 = vadd.f32 %v2116, %v2209
      %v2318 = vadd.f32 %v2117, %v2212
      %v2319 = vadd.f32 %v2118, %v2217
      %v2320 = vadd.f32 %v2119, %v2220
      %v2321 = vadd.f32 %v2120, %v2225
      %v2322 = vadd.f32 %v2121, %v2228
      %v2323 = vadd.f32 %v2122, %v2233
      %v2324 = vadd.f32 %v2123, %v2236
      %v2325 = vadd.f32 %v2124, %v2241
      %v2326 = vadd.f32 %v2125, %v2244
      %v2327 = vadd.f32 %v2126, %v2249
      %v2328 = vadd.f32 %v2127, %v2252
      %v2329 = vadd.f32 %v2128, %v2257
      %v2330 = vadd.f32 %v2129, %v2260
      %v2331 = vadd.f32 %v2130, %v2265
      %v2332 = vadd.f32 %v2131, %v2268
      %v2333 = vadd.f32 %v2132, %v2273
      %v2334 = vadd.f32 %v2133, %v2276
      %v2335 = vadd.f32 %v2134, %v2281
      %v2336 = vadd.f32 %v2135, %v2284
      %v2337 = vadd.f32 %v2136, %v2289
      %v2338 = vadd.f32 %v2137, %v2292
      %v2339 = vadd.f32 %v2138, %v2297
      %v2340 = vadd.f32 %v2139, %v2300
      %v2341 = vadd.f32 %v2140, %v2305
      %v2342 = vadd.f32 %v2141, %v2308
      %s2343 = scalar_lea.vmem %s1, 16
      %v2344 = vld [vmem:[%s2343] sm:$0x3]
      %v2346 = vsel %vm388, %v1895, 0
      %v2349 = vand.u32 %v2344, %v607
      %2351 = vmatprep.subr.bf16.mxu0 0
      %2352 = vmatpush1.bf16.msra.mxu0 0
      %2353 = vmatprep.subr.bf16.mxu0 0
      %2354 = vmatpush1.bf16.msra.mxu0 0
      %2355 = vmatprep.subr.bf16.mxu0 0
      %2356 = vmatpush1.bf16.msra.mxu0 0
      %2357 = vmatprep.subr.bf16.mxu0 0
      %2358 = vmatpush1.bf16.msra.mxu0 0
      %2359 = vmatprep.subr.bf16.mxu0 0
      %2360 = vmatpush1.bf16.msra.mxu0 0
      %2361 = vmatprep.subr.bf16.mxu0 0
      %2362 = vmatpush1.bf16.msra.mxu0 0
      %2363 = vmatprep.subr.bf16.mxu0 0
      %2364 = vmatpush1.bf16.msra.mxu0 0
      %2365 = vmatprep.subr.bf16.mxu0 0
      %2366 = vmatpush1.bf16.msra.mxu0 %v2349
      %2367 = vmatprep.subr.bf16.mxu0 0
      %2368 = vmatpush2.bf16.msra.mxu0 0
      %2369 = vmatprep.subr.bf16.mxu0 0
      %2370 = vmatpush2.bf16.msra.mxu0 0
      %2371 = vmatprep.subr.bf16.mxu0 0
      %2372 = vmatpush2.bf16.msra.mxu0 0
      %2373 = vmatprep.subr.bf16.mxu0 0
      %2374 = vmatpush2.bf16.msra.mxu0 0
      %2375 = vmatprep.subr.bf16.mxu0 0
      %2376 = vmatpush2.bf16.msra.mxu0 0
      %2377 = vmatprep.subr.bf16.mxu0 0
      %2378 = vmatpush2.bf16.msra.mxu0 0
      %2379 = vmatprep.subr.bf16.mxu0 0
      %2380 = vmatpush2.bf16.msra.mxu0 0
      %2381 = vmatprep.subr.bf16.mxu0 0
      %2382 = vmatpush2.bf16.msra.mxu0 0
      %2383 = vmatprep.mubr.bf16.mxu0 0
      %2384 = vmatmul.mubr.bf16.gmra.mxu0 %v1905
      %v2385 = vpop.f32.mrf.mxu0
      %v2386 = vadd.f32 0.0, %v2385
      %v2387 = vpop.f32.mrf.mxu0
      %v2388 = vpop.f32.mrf.mxu0
      %v2389 = vadd.f32 0.0, %v2388
      %v2390 = vpop.f32.mrf.mxu0
      %2391 = vmatprep.mubr.bf16.mxu0 0
      %2392 = vmatmul.mubr.bf16.gmra.mxu0 %v1908
      %v2393 = vpop.f32.mrf.mxu0
      %v2394 = vadd.f32 0.0, %v2393
      %v2395 = vpop.f32.mrf.mxu0
      %v2396 = vpop.f32.mrf.mxu0
      %v2397 = vadd.f32 0.0, %v2396
      %v2398 = vpop.f32.mrf.mxu0
      %2399 = vmatprep.mubr.bf16.mxu0 0
      %2400 = vmatmul.mubr.bf16.gmra.mxu0 %v1911
      %v2401 = vpop.f32.mrf.mxu0
      %v2402 = vadd.f32 0.0, %v2401
      %v2403 = vpop.f32.mrf.mxu0
      %v2404 = vpop.f32.mrf.mxu0
      %v2405 = vadd.f32 0.0, %v2404
      %v2406 = vpop.f32.mrf.mxu0
      %2407 = vmatprep.mubr.bf16.mxu0 0
      %2408 = vmatmul.mubr.bf16.gmra.mxu0 %v1914
      %v2409 = vpop.f32.mrf.mxu0
      %v2410 = vadd.f32 0.0, %v2409
      %v2411 = vpop.f32.mrf.mxu0
      %v2412 = vpop.f32.mrf.mxu0
      %v2413 = vadd.f32 0.0, %v2412
      %v2414 = vpop.f32.mrf.mxu0
      %2415 = vmatprep.mubr.bf16.mxu0 0
      %2416 = vmatmul.mubr.bf16.gmra.mxu0 %v1917
      %v2417 = vpop.f32.mrf.mxu0
      %v2418 = vadd.f32 0.0, %v2417
      %v2419 = vpop.f32.mrf.mxu0
      %v2420 = vpop.f32.mrf.mxu0
      %v2421 = vadd.f32 0.0, %v2420
      %v2422 = vpop.f32.mrf.mxu0
      %2423 = vmatprep.mubr.bf16.mxu0 0
      %2424 = vmatmul.mubr.bf16.gmra.mxu0 %v1920
      %v2425 = vpop.f32.mrf.mxu0
      %v2426 = vadd.f32 0.0, %v2425
      %v2427 = vpop.f32.mrf.mxu0
      %v2428 = vpop.f32.mrf.mxu0
      %v2429 = vadd.f32 0.0, %v2428
      %v2430 = vpop.f32.mrf.mxu0
      %2431 = vmatprep.mubr.bf16.mxu0 0
      %2432 = vmatmul.mubr.bf16.gmra.mxu0 %v1923
      %v2433 = vpop.f32.mrf.mxu0
      %v2434 = vadd.f32 0.0, %v2433
      %v2435 = vpop.f32.mrf.mxu0
      %v2436 = vpop.f32.mrf.mxu0
      %v2437 = vadd.f32 0.0, %v2436
      %v2438 = vpop.f32.mrf.mxu0
      %2439 = vmatprep.mubr.bf16.mxu0 0
      %2440 = vmatmul.mubr.bf16.gmra.mxu0 %v1926
      %v2441 = vpop.f32.mrf.mxu0
      %v2442 = vadd.f32 0.0, %v2441
      %v2443 = vpop.f32.mrf.mxu0
      %v2444 = vpop.f32.mrf.mxu0
      %v2445 = vadd.f32 0.0, %v2444
      %v2446 = vpop.f32.mrf.mxu0
      %2447 = vmatprep.mubr.bf16.mxu0 0
      %2448 = vmatmul.mubr.bf16.gmra.mxu0 %v1929
      %v2449 = vpop.f32.mrf.mxu0
      %v2450 = vadd.f32 0.0, %v2449
      %v2451 = vpop.f32.mrf.mxu0
      %v2452 = vpop.f32.mrf.mxu0
      %v2453 = vadd.f32 0.0, %v2452
      %v2454 = vpop.f32.mrf.mxu0
      %2455 = vmatprep.mubr.bf16.mxu0 0
      %2456 = vmatmul.mubr.bf16.gmra.mxu0 %v1932
      %v2457 = vpop.f32.mrf.mxu0
      %v2458 = vadd.f32 0.0, %v2457
      %v2459 = vpop.f32.mrf.mxu0
      %v2460 = vpop.f32.mrf.mxu0
      %v2461 = vadd.f32 0.0, %v2460
      %v2462 = vpop.f32.mrf.mxu0
      %2463 = vmatprep.mubr.bf16.mxu0 0
      %2464 = vmatmul.mubr.bf16.gmra.mxu0 %v1935
      %v2465 = vpop.f32.mrf.mxu0
      %v2466 = vadd.f32 0.0, %v2465
      %v2467 = vpop.f32.mrf.mxu0
      %v2468 = vpop.f32.mrf.mxu0
      %v2469 = vadd.f32 0.0, %v2468
      %v2470 = vpop.f32.mrf.mxu0
      %2471 = vmatprep.mubr.bf16.mxu0 0
      %2472 = vmatmul.mubr.bf16.gmra.mxu0 %v1938
      %v2473 = vpop.f32.mrf.mxu0
      %v2474 = vadd.f32 0.0, %v2473
      %v2475 = vpop.f32.mrf.mxu0
      %v2476 = vpop.f32.mrf.mxu0
      %v2477 = vadd.f32 0.0, %v2476
      %v2478 = vpop.f32.mrf.mxu0
      %2479 = vmatprep.mubr.bf16.mxu0 0
      %2480 = vmatmul.mubr.bf16.gmra.mxu0 %v1941
      %v2481 = vpop.f32.mrf.mxu0
      %v2482 = vadd.f32 0.0, %v2481
      %v2483 = vpop.f32.mrf.mxu0
      %v2484 = vpop.f32.mrf.mxu0
      %v2485 = vadd.f32 0.0, %v2484
      %v2486 = vpop.f32.mrf.mxu0
      %2487 = vmatprep.mubr.bf16.mxu0 0
      %2488 = vmatmul.mubr.bf16.gmra.mxu0 %v1944
      %v2489 = vpop.f32.mrf.mxu0
      %v2490 = vadd.f32 0.0, %v2489
      %v2491 = vpop.f32.mrf.mxu0
      %v2492 = vpop.f32.mrf.mxu0
      %v2493 = vadd.f32 0.0, %v2492
      %v2494 = vpop.f32.mrf.mxu0
      %2495 = vmatprep.mubr.bf16.mxu0 0
      %2496 = vmatmul.mubr.bf16.gmra.mxu0 %v2145
      %v2497 = vpop.f32.mrf.mxu0
      %v2498 = vadd.f32 0.0, %v2497
      %v2499 = vpop.f32.mrf.mxu0
      %v2500 = vpop.f32.mrf.mxu0
      %v2501 = vadd.f32 0.0, %v2500
      %v2502 = vpop.f32.mrf.mxu0
      %2503 = vmatprep.mubr.bf16.mxu0 0
      %2504 = vmatmul.mubr.bf16.gmra.mxu0 %v2346
      %v2505 = vpop.f32.mrf.mxu0
      %v2506 = vadd.f32 0.0, %v2505
      %v2507 = vpop.f32.mrf.mxu0
      %v2508 = vpop.f32.mrf.mxu0
      %v2509 = vadd.f32 0.0, %v2508
      %v2510 = vpop.f32.mrf.mxu0
      %2511 = vdwg.mxu0
      %v2512 = vadd.f32 %v2311, %v2386
      %v2513 = vadd.f32 %v2312, %v2389
      %v2514 = vadd.f32 %v2313, %v2394
      %v2515 = vadd.f32 %v2314, %v2397
      %v2516 = vadd.f32 %v2315, %v2402
      %v2517 = vadd.f32 %v2316, %v2405
      %v2518 = vadd.f32 %v2317, %v2410
      %v2519 = vadd.f32 %v2318, %v2413
      %v2520 = vadd.f32 %v2319, %v2418
      %v2521 = vadd.f32 %v2320, %v2421
      %v2522 = vadd.f32 %v2321, %v2426
      %v2523 = vadd.f32 %v2322, %v2429
      %v2524 = vadd.f32 %v2323, %v2434
      %v2525 = vadd.f32 %v2324, %v2437
      %v2526 = vadd.f32 %v2325, %v2442
      %v2527 = vadd.f32 %v2326, %v2445
      %v2528 = vadd.f32 %v2327, %v2450
      %v2529 = vadd.f32 %v2328, %v2453
      %v2530 = vadd.f32 %v2329, %v2458
      %v2531 = vadd.f32 %v2330, %v2461
      %v2532 = vadd.f32 %v2331, %v2466
      %v2533 = vadd.f32 %v2332, %v2469
      %v2534 = vadd.f32 %v2333, %v2474
      %v2535 = vadd.f32 %v2334, %v2477
      %v2536 = vadd.f32 %v2335, %v2482
      %v2537 = vadd.f32 %v2336, %v2485
      %v2538 = vadd.f32 %v2337, %v2490
      %v2539 = vadd.f32 %v2338, %v2493
      %v2540 = vadd.f32 %v2339, %v2498
      %v2541 = vadd.f32 %v2340, %v2501
      %v2542 = vadd.f32 %v2341, %v2506
      %v2543 = vadd.f32 %v2342, %v2509
      %v2544 = vld [vmem:[%s2] sm:$0x1]
      %v2546 = vlaneseq
      %v2547 = vshrl.u32 %v2546, 7
      %v2548 = vsub.s32 0, %v2547
      %v2549 = vrot.slane %v2544, %v2548
      %v2551 = vadd.f32 %v2512, %v2549
      %v2552 = vadd.f32 %v2513, %v2549
      %v2553 = vadd.f32 %v2514, %v2549
      %v2554 = vadd.f32 %v2515, %v2549
      %v2555 = vadd.f32 %v2516, %v2549
      %v2556 = vadd.f32 %v2517, %v2549
      %v2557 = vadd.f32 %v2518, %v2549
      %v2558 = vadd.f32 %v2519, %v2549
      %v2559 = vadd.f32 %v2520, %v2549
      %v2560 = vadd.f32 %v2521, %v2549
      %v2561 = vadd.f32 %v2522, %v2549
      %v2562 = vadd.f32 %v2523, %v2549
      %v2563 = vadd.f32 %v2524, %v2549
      %v2564 = vadd.f32 %v2525, %v2549
      %v2565 = vadd.f32 %v2526, %v2549
      %v2566 = vadd.f32 %v2527, %v2549
      %v2567 = vadd.f32 %v2528, %v2549
      %v2568 = vadd.f32 %v2529, %v2549
      %v2569 = vadd.f32 %v2530, %v2549
      %v2570 = vadd.f32 %v2531, %v2549
      %v2571 = vadd.f32 %v2532, %v2549
      %v2572 = vadd.f32 %v2533, %v2549
      %v2573 = vadd.f32 %v2534, %v2549
      %v2574 = vadd.f32 %v2535, %v2549
      %v2575 = vadd.f32 %v2536, %v2549
      %v2576 = vadd.f32 %v2537, %v2549
      %v2577 = vadd.f32 %v2538, %v2549
      %v2578 = vadd.f32 %v2539, %v2549
      %v2579 = vadd.f32 %v2540, %v2549
      %v2580 = vadd.f32 %v2541, %v2549
      %v2581 = vadd.f32 %v2542, %v2549
      %v2582 = vadd.f32 %v2543, %v2549
      %v2583 = vmax.f32 %v2551, 0.0
      %v2584 = vmax.f32 %v2552, 0.0
      %v2585 = vmax.f32 %v2553, 0.0
      %v2586 = vmax.f32 %v2554, 0.0
      %v2587 = vmax.f32 %v2555, 0.0
      %v2588 = vmax.f32 %v2556, 0.0
      %v2589 = vmax.f32 %v2557, 0.0
      %v2590 = vmax.f32 %v2558, 0.0
      %v2591 = vmax.f32 %v2559, 0.0
      %v2592 = vmax.f32 %v2560, 0.0
      %v2593 = vmax.f32 %v2561, 0.0
      %v2594 = vmax.f32 %v2562, 0.0
      %v2595 = vmax.f32 %v2563, 0.0
      %v2596 = vmax.f32 %v2564, 0.0
      %v2597 = vmax.f32 %v2565, 0.0
      %v2598 = vmax.f32 %v2566, 0.0
      %v2599 = vmax.f32 %v2567, 0.0
      %v2600 = vmax.f32 %v2568, 0.0
      %v2601 = vmax.f32 %v2569, 0.0
      %v2602 = vmax.f32 %v2570, 0.0
      %v2603 = vmax.f32 %v2571, 0.0
      %v2604 = vmax.f32 %v2572, 0.0
      %v2605 = vmax.f32 %v2573, 0.0
      %v2606 = vmax.f32 %v2574, 0.0
      %v2607 = vmax.f32 %v2575, 0.0
      %v2608 = vmax.f32 %v2576, 0.0
      %v2609 = vmax.f32 %v2577, 0.0
      %v2610 = vmax.f32 %v2578, 0.0
      %v2611 = vmax.f32 %v2579, 0.0
      %v2612 = vmax.f32 %v2580, 0.0
      %v2613 = vmax.f32 %v2581, 0.0
      %v2614 = vmax.f32 %v2582, 0.0
      %vm2615 = vcmask 130048
      %2616 = vst.msk [vmem:[#allocation3] sm:$0xff] %vm2615, %v2583
      %2617 = vst.msk [vmem:[#allocation3 + $0x8] sm:$0xff] %vm2615, %v2584
      %2618 = vst.msk [vmem:[#allocation3 + $0x10] sm:$0xff] %vm2615, %v2585
      %2619 = vst.msk [vmem:[#allocation3 + $0x18] sm:$0xff] %vm2615, %v2586
      %2620 = vst.msk [vmem:[#allocation3 + $0x20] sm:$0xff] %vm2615, %v2587
      %2621 = vst.msk [vmem:[#allocation3 + $0x28] sm:$0xff] %vm2615, %v2588
      %2622 = vst.msk [vmem:[#allocation3 + $0x30] sm:$0xff] %vm2615, %v2589
      %2623 = vst.msk [vmem:[#allocation3 + $0x38] sm:$0xff] %vm2615, %v2590
      %2624 = vst.msk [vmem:[#allocation3 + $0x40] sm:$0xff] %vm2615, %v2591
      %2625 = vst.msk [vmem:[#allocation3 + $0x48] sm:$0xff] %vm2615, %v2592
      %2626 = vst.msk [vmem:[#allocation3 + $0x50] sm:$0xff] %vm2615, %v2593
      %2627 = vst.msk [vmem:[#allocation3 + $0x58] sm:$0xff] %vm2615, %v2594
      %2628 = vst.msk [vmem:[#allocation3 + $0x60] sm:$0xff] %vm2615, %v2595
      %2629 = vst.msk [vmem:[#allocation3 + $0x68] sm:$0xff] %vm2615, %v2596
      %2630 = vst.msk [vmem:[#allocation3 + $0x70] sm:$0xff] %vm2615, %v2597
      %2631 = vst.msk [vmem:[#allocation3 + $0x78] sm:$0xff] %vm2615, %v2598
      %2632 = vst.msk [vmem:[#allocation3 + $0x80] sm:$0xff] %vm2615, %v2599
      %2633 = vst.msk [vmem:[#allocation3 + $0x88] sm:$0xff] %vm2615, %v2600
      %2634 = vst.msk [vmem:[#allocation3 + $0x90] sm:$0xff] %vm2615, %v2601
      %2635 = vst.msk [vmem:[#allocation3 + $0x98] sm:$0xff] %vm2615, %v2602
      %2636 = vst.msk [vmem:[#allocation3 + $0xa0] sm:$0xff] %vm2615, %v2603
      %2637 = vst.msk [vmem:[#allocation3 + $0xa8] sm:$0xff] %vm2615, %v2604
      %2638 = vst.msk [vmem:[#allocation3 + $0xb0] sm:$0xff] %vm2615, %v2605
      %2639 = vst.msk [vmem:[#allocation3 + $0xb8] sm:$0xff] %vm2615, %v2606
      %2640 = vst.msk [vmem:[#allocation3 + $0xc0] sm:$0xff] %vm2615, %v2607
      %2641 = vst.msk [vmem:[#allocation3 + $0xc8] sm:$0xff] %vm2615, %v2608
      %2642 = vst.msk [vmem:[#allocation3 + $0xd0] sm:$0xff] %vm2615, %v2609
      %2643 = vst.msk [vmem:[#allocation3 + $0xd8] sm:$0xff] %vm2615, %v2610
      %2644 = vst.msk [vmem:[#allocation3 + $0xe0] sm:$0xff] %vm2615, %v2611
      %2645 = vst.msk [vmem:[#allocation3 + $0xe8] sm:$0xff] %vm2615, %v2612
      %2646 = vst.msk [vmem:[#allocation3 + $0xf0] sm:$0xff] %vm2615, %v2613
      %2647 = vst.msk [vmem:[#allocation3 + $0xf8] sm:$0xff] %vm2615, %v2614
      %2648 = vst.msk [vmem:[#allocation4] sm:$0xff] %vm2615, 0.0
      %vm2649 = vcmask 123904
      %2650 = vst.msk [vmem:[#allocation4 + $0x8] sm:$0x3] %vm2649, 0.0
      %s2651 = scalar_lea.vmem [#allocation4], 144
      %2652 = vst.msk [vmem:[%s2651] sm:$0xff] %vm2615, 0.0
      %2653 = vst.msk [vmem:[%s2651 + $0x8] sm:$0x3] %vm2649, 0.0
      %vm2654 = vcmask 122880
      %2655 = vst.msk [vmem:[#allocation4] sm:$0x1] %vm2654, 0.0
      %2656 = vst.msk [vmem:[#allocation4 + $0x10] sm:$0x1] %vm2654, 0.0
      %2657 = vst.msk [vmem:[#allocation4 + $0x20] sm:$0x1] %vm2654, 0.0
      %2658 = vst.msk [vmem:[#allocation4 + $0x30] sm:$0x1] %vm2654, 0.0
      %2659 = vst.msk [vmem:[#allocation4 + $0x40] sm:$0x1] %vm2654, 0.0
      %2660 = vst.msk [vmem:[#allocation4 + $0x50] sm:$0x1] %vm2654, 0.0
      %2661 = vst.msk [vmem:[#allocation4 + $0x60] sm:$0x1] %vm2654, 0.0
      %2662 = vst.msk [vmem:[#allocation4 + $0x70] sm:$0x1] %vm2654, 0.0
      %2663 = vst.msk [vmem:[#allocation4 + $0x80] sm:$0x1] %vm2654, 0.0
      %2664 = vst.msk [vmem:[#allocation4 + $0x90] sm:$0x1] %vm2654, 0.0
      %2665 = vst.msk [vmem:[#allocation4 + $0x9] sm:$0x1] %vm2654, 0.0
      %2666 = vst.msk [vmem:[#allocation4 + $0x19] sm:$0x1] %vm2654, 0.0
      %2667 = vst.msk [vmem:[#allocation4 + $0x29] sm:$0x1] %vm2654, 0.0
      %2668 = vst.msk [vmem:[#allocation4 + $0x39] sm:$0x1] %vm2654, 0.0
      %2669 = vst.msk [vmem:[#allocation4 + $0x49] sm:$0x1] %vm2654, 0.0
      %2670 = vst.msk [vmem:[#allocation4 + $0x59] sm:$0x1] %vm2654, 0.0
      %2671 = vst.msk [vmem:[#allocation4 + $0x69] sm:$0x1] %vm2654, 0.0
      %2672 = vst.msk [vmem:[#allocation4 + $0x79] sm:$0x1] %vm2654, 0.0
      %2673 = vst.msk [vmem:[#allocation4 + $0x89] sm:$0x1] %vm2654, 0.0
      %2674 = vst.msk [vmem:[#allocation4 + $0x99] sm:$0x1] %vm2654, 0.0
      %v2675 = vld [vmem:[#allocation3] ss:$2 sm:$0xff]
      %s2676 = scalar_lea.vmem [#allocation3], 32
      %v2677 = vld [vmem:[%s2676] ss:$2 sm:$0xff]
      %s2678 = scalar_lea.vmem [#allocation3], 64
      %v2679 = vld [vmem:[%s2678] ss:$2 sm:$0xff]
      %s2680 = scalar_lea.vmem [#allocation3], 96
      %v2681 = vld [vmem:[%s2680] ss:$2 sm:$0xff]
      %s2682 = scalar_lea.vmem [#allocation3], 128
      %v2683 = vld [vmem:[%s2682] ss:$2 sm:$0xff]
      %s2684 = scalar_lea.vmem [#allocation3], 160
      %v2685 = vld [vmem:[%s2684] ss:$2 sm:$0xff]
      %s2686 = scalar_lea.vmem [#allocation3], 192
      %v2687 = vld [vmem:[%s2686] ss:$2 sm:$0xff]
      %s2688 = scalar_lea.vmem [#allocation3], 224
      %v2689 = vld [vmem:[%s2688] ss:$2 sm:$0xff]
      %s2690 = scalar_lea.vmem [#allocation3], 1
      %v2691 = vld [vmem:[%s2690] ss:$2 sm:$0xff]
      %s2692 = scalar_lea.vmem [#allocation3], 33
      %v2693 = vld [vmem:[%s2692] ss:$2 sm:$0xff]
      %s2694 = scalar_lea.vmem [#allocation3], 65
      %v2695 = vld [vmem:[%s2694] ss:$2 sm:$0xff]
      %s2696 = scalar_lea.vmem [#allocation3], 97
      %v2697 = vld [vmem:[%s2696] ss:$2 sm:$0xff]
      %s2698 = scalar_lea.vmem [#allocation3], 129
      %v2699 = vld [vmem:[%s2698] ss:$2 sm:$0xff]
      %s2700 = scalar_lea.vmem [#allocation3], 161
      %v2701 = vld [vmem:[%s2700] ss:$2 sm:$0xff]
      %s2702 = scalar_lea.vmem [#allocation3], 193
      %v2703 = vld [vmem:[%s2702] ss:$2 sm:$0xff]
      %s2704 = scalar_lea.vmem [#allocation3], 225
      %v2705 = vld [vmem:[%s2704] ss:$2 sm:$0xff]
      %s2706 = scalar_lea.vmem [#allocation3], 16
      %v2707 = vld [vmem:[%s2706] ss:$2 sm:$0xff]
      %s2708 = scalar_lea.vmem %s2706, 32 [#allocation3]
      %v2709 = vld [vmem:[%s2708] ss:$2 sm:$0xff]
      %s2710 = scalar_lea.vmem %s2706, 64 [#allocation3]
      %v2711 = vld [vmem:[%s2710] ss:$2 sm:$0xff]
      %s2712 = scalar_lea.vmem %s2706, 96 [#allocation3]
      %v2713 = vld [vmem:[%s2712] ss:$2 sm:$0xff]
      %s2714 = scalar_lea.vmem %s2706, 128 [#allocation3]
      %v2715 = vld [vmem:[%s2714] ss:$2 sm:$0xff]
      %s2716 = scalar_lea.vmem %s2706, 160 [#allocation3]
      %v2717 = vld [vmem:[%s2716] ss:$2 sm:$0xff]
      %s2718 = scalar_lea.vmem %s2706, 192 [#allocation3]
      %v2719 = vld [vmem:[%s2718] ss:$2 sm:$0xff]
      %s2720 = scalar_lea.vmem %s2706, 224 [#allocation3]
      %v2721 = vld [vmem:[%s2720] ss:$2 sm:$0xff]
      %s2722 = scalar_lea.vmem %s2706, 1 [#allocation3]
      %v2723 = vld [vmem:[%s2722] ss:$2 sm:$0xff]
      %s2724 = scalar_lea.vmem %s2706, 33 [#allocation3]
      %v2725 = vld [vmem:[%s2724] ss:$2 sm:$0xff]
      %s2726 = scalar_lea.vmem %s2706, 65 [#allocation3]
      %v2727 = vld [vmem:[%s2726] ss:$2 sm:$0xff]
      %s2728 = scalar_lea.vmem %s2706, 97 [#allocation3]
      %v2729 = vld [vmem:[%s2728] ss:$2 sm:$0xff]
      %s2730 = scalar_lea.vmem %s2706, 129 [#allocation3]
      %v2731 = vld [vmem:[%s2730] ss:$2 sm:$0xff]
      %s2732 = scalar_lea.vmem %s2706, 161 [#allocation3]
      %v2733 = vld [vmem:[%s2732] ss:$2 sm:$0xff]
      %s2734 = scalar_lea.vmem %s2706, 193 [#allocation3]
      %v2735 = vld [vmem:[%s2734] ss:$2 sm:$0xff]
      %s2736 = scalar_lea.vmem %s2706, 225 [#allocation3]
      %v2737 = vld [vmem:[%s2736] ss:$2 sm:$0xff]
      %v2738 = vmax.f32 %v2675, %v2691
      %v2739 = vmax.f32 %v2677, %v2693
      %v2740 = vmax.f32 %v2679, %v2695
      %v2741 = vmax.f32 %v2681, %v2697
      %v2742 = vmax.f32 %v2683, %v2699
      %v2743 = vmax.f32 %v2685, %v2701
      %v2744 = vmax.f32 %v2687, %v2703
      %v2745 = vmax.f32 %v2689, %v2705
      %v2746 = vmax.f32 %v2707, %v2723
      %v2747 = vmax.f32 %v2709, %v2725
      %v2748 = vmax.f32 %v2711, %v2727
      %v2749 = vmax.f32 %v2713, %v2729
      %v2750 = vmax.f32 %v2715, %v2731
      %v2751 = vmax.f32 %v2717, %v2733
      %v2752 = vmax.f32 %v2719, %v2735
      %v2753 = vmax.f32 %v2721, %v2737
      %v2754 = vmax.f32 %v2738, %v2746
      %v2755 = vmax.f32 %v2739, %v2747
      %v2756 = vmax.f32 %v2740, %v2748
      %v2757 = vmax.f32 %v2741, %v2749
      %v2758 = vmax.f32 %v2742, %v2750
      %v2759 = vmax.f32 %v2743, %v2751
      %v2760 = vmax.f32 %v2744, %v2752
      %v2761 = vmax.f32 %v2745, %v2753
      %s2762 = scalar_lea.vmem [#allocation4], 16
      %2763 = vst.msk [vmem:[%s2762 + $0x1] sm:$0xff] %vm2615, %v2754
      %2764 = vst.msk [vmem:[%s2762 + $0x11] sm:$0xff] %vm2615, %v2755
      %2765 = vst.msk [vmem:[%s2762 + $0x21] sm:$0xff] %vm2615, %v2756
      %2766 = vst.msk [vmem:[%s2762 + $0x31] sm:$0xff] %vm2615, %v2757
      %2767 = vst.msk [vmem:[%s2762 + $0x41] sm:$0xff] %vm2615, %v2758
      %2768 = vst.msk [vmem:[%s2762 + $0x51] sm:$0xff] %vm2615, %v2759
      %2769 = vst.msk [vmem:[%s2762 + $0x61] sm:$0xff] %vm2615, %v2760
      %2770 = vst.msk [vmem:[%s2762 + $0x71] sm:$0xff] %vm2615, %v2761
      %v2771 = vld [vmem:[#allocation4] sm:$0xff]
      %v2772 = vld [vmem:[#allocation4 + $0x10] sm:$0xff]
      %v2773 = vld [vmem:[#allocation4 + $0x20] sm:$0xff]
      %v2774 = vld [vmem:[#allocation4 + $0x30] sm:$0xff]
      %v2775 = vld [vmem:[#allocation4 + $0x40] sm:$0xff]
      %v2776 = vld [vmem:[#allocation4 + $0x50] sm:$0xff]
      %v2777 = vld [vmem:[#allocation4 + $0x60] sm:$0xff]
      %v2778 = vld [vmem:[#allocation4 + $0x70] sm:$0xff]
      %v2779 = vld [vmem:[#allocation4 + $0x80] sm:$0xff]
      %v2780 = vld [vmem:[#allocation4 + $0x90] sm:$0xff]
      %v2781 = vpack.c.bf16 %v2771, %v2771
      %v2782 = vpack.c.bf16 %v2772, %v2772
      %v2783 = vpack.c.bf16 %v2773, %v2773
      %v2784 = vpack.c.bf16 %v2774, %v2774
      %v2785 = vpack.c.bf16 %v2775, %v2775
      %v2786 = vpack.c.bf16 %v2776, %v2776
      %v2787 = vpack.c.bf16 %v2777, %v2777
      %v2788 = vpack.c.bf16 %v2778, %v2778
      %v2789 = vpack.c.bf16 %v2779, %v2779
      %v2790 = vpack.c.bf16 %v2780, %v2780
      %v2791 = vld [vmem:[%s3] sm:$0xf]
      %v2792 = vld [vmem:[%s3 + $0x4] sm:$0xf]
      %s2793 = scalar_lea.vmem %s3, 24
      %v2794 = vld [vmem:[%s2793] sm:$0xf]
      %v2795 = vld [vmem:[%s2793 + $0x4] sm:$0xf]
      %v2804 = vunpack.c.l.b16 %v2782
      %v2805 = vunpack.c.l.b16 %v2783
      %v2806 = vunpack.c.l.b16 %v2784
      %v2807 = vunpack.c.l.b16 %v2785
      %v2808 = vunpack.c.l.b16 %v2786
      %v2809 = vunpack.c.l.b16 %v2787
      %v2810 = vunpack.c.l.b16 %v2788
      %v2811 = vunpack.c.l.b16 %v2789
      %v2812 = vpack.c.b16 %v2805, %v2804
      %v2813 = vpack.c.b16 %v2807, %v2806
      %v2814 = vpack.c.b16 %v2809, %v2808
      %v2815 = vpack.c.b16 %v2811, %v2810
      %v2818 = vunpack.c.l.b16 %v2794
      %v2819 = vunpack.c.l.b16 %v2795
      %v2820 = vpack.c.b16 %v2819, %v2818
      %v2823 = vsel %vm2615, %v2812, 0
      %v2826 = vsel %vm2615, %v2813, 0
      %v2829 = vsel %vm2615, %v2814, 0
      %v2832 = vsel %vm2615, %v2815, 0
      %2834 = vmatprep.subr.bf16.mxu0 0
      %2835 = vmatpush1.bf16.msra.mxu0 0
      %2836 = vmatprep.subr.bf16.mxu0 0
      %2837 = vmatpush1.bf16.msra.mxu0 0
      %2838 = vmatprep.subr.bf16.mxu0 0
      %2839 = vmatpush1.bf16.msra.mxu0 0
      %2840 = vmatprep.subr.bf16.mxu0 0
      %2841 = vmatpush1.bf16.msra.mxu0 0
      %2842 = vmatprep.subr.bf16.mxu0 0
      %2843 = vmatpush1.bf16.msra.mxu0 0
      %2844 = vmatprep.subr.bf16.mxu0 0
      %2845 = vmatpush1.bf16.msra.mxu0 0
      %2846 = vmatprep.subr.bf16.mxu0 0
      %2847 = vmatpush1.bf16.msra.mxu0 0
      %2848 = vmatprep.subr.bf16.mxu0 0
      %2849 = vmatpush1.bf16.msra.mxu0 %v2820
      %2850 = vmatprep.subr.bf16.mxu0 0
      %2851 = vmatpush2.bf16.msra.mxu0 0
      %2852 = vmatprep.subr.bf16.mxu0 0
      %2853 = vmatpush2.bf16.msra.mxu0 0
      %2854 = vmatprep.subr.bf16.mxu0 0
      %2855 = vmatpush2.bf16.msra.mxu0 0
      %2856 = vmatprep.subr.bf16.mxu0 0
      %2857 = vmatpush2.bf16.msra.mxu0 0
      %2858 = vmatprep.subr.bf16.mxu0 0
      %2859 = vmatpush2.bf16.msra.mxu0 0
      %2860 = vmatprep.subr.bf16.mxu0 0
      %2861 = vmatpush2.bf16.msra.mxu0 0
      %2862 = vmatprep.subr.bf16.mxu0 0
      %2863 = vmatpush2.bf16.msra.mxu0 0
      %2864 = vmatprep.subr.bf16.mxu0 0
      %2865 = vmatpush2.bf16.msra.mxu0 0
      %2866 = vmatprep.mubr.bf16.mxu0 0
      %2867 = vmatmul.mubr.bf16.gmra.mxu0 %v2823
      %v2868 = vpop.f32.mrf.mxu0
      %v2869 = vadd.f32 0.0, %v2868
      %v2870 = vpop.f32.mrf.mxu0
      %v2871 = vpop.f32.mrf.mxu0
      %v2872 = vadd.f32 0.0, %v2871
      %v2873 = vpop.f32.mrf.mxu0
      %2874 = vmatprep.mubr.bf16.mxu0 0
      %2875 = vmatmul.mubr.bf16.gmra.mxu0 %v2826
      %v2876 = vpop.f32.mrf.mxu0
      %v2877 = vadd.f32 0.0, %v2876
      %v2878 = vpop.f32.mrf.mxu0
      %v2879 = vpop.f32.mrf.mxu0
      %v2880 = vadd.f32 0.0, %v2879
      %v2881 = vpop.f32.mrf.mxu0
      %2882 = vmatprep.mubr.bf16.mxu0 0
      %2883 = vmatmul.mubr.bf16.gmra.mxu0 %v2829
      %v2884 = vpop.f32.mrf.mxu0
      %v2885 = vadd.f32 0.0, %v2884
      %v2886 = vpop.f32.mrf.mxu0
      %v2887 = vpop.f32.mrf.mxu0
      %v2888 = vadd.f32 0.0, %v2887
      %v2889 = vpop.f32.mrf.mxu0
      %2890 = vmatprep.mubr.bf16.mxu0 0
      %2891 = vmatmul.mubr.bf16.gmra.mxu0 %v2832
      %v2892 = vpop.f32.mrf.mxu0
      %v2893 = vadd.f32 0.0, %v2892
      %v2894 = vpop.f32.mrf.mxu0
      %v2895 = vpop.f32.mrf.mxu0
      %v2896 = vadd.f32 0.0, %v2895
      %v2897 = vpop.f32.mrf.mxu0
      %2898 = vdwg.mxu0
      %v2900 = vunpack.c.l.b16 %v2781
      %v2901 = vpack.c.b16 %v2804, %v2900
      %v2902 = vpack.c.b16 %v2806, %v2805
      %v2903 = vpack.c.b16 %v2808, %v2807
      %v2904 = vpack.c.b16 %v2810, %v2809
      %v2907 = vunpack.c.l.b16 %v2791
      %v2908 = vunpack.c.l.b16 %v2792
      %v2909 = vpack.c.b16 %v2908, %v2907
      %v2912 = vsel %vm2615, %v2901, 0
      %v2915 = vsel %vm2615, %v2902, 0
      %v2918 = vsel %vm2615, %v2903, 0
      %v2921 = vsel %vm2615, %v2904, 0
      %2923 = vmatprep.subr.bf16.mxu0 0
      %2924 = vmatpush1.bf16.msra.mxu0 0
      %2925 = vmatprep.subr.bf16.mxu0 0
      %2926 = vmatpush1.bf16.msra.mxu0 0
      %2927 = vmatprep.subr.bf16.mxu0 0
      %2928 = vmatpush1.bf16.msra.mxu0 0
      %2929 = vmatprep.subr.bf16.mxu0 0
      %2930 = vmatpush1.bf16.msra.mxu0 0
      %2931 = vmatprep.subr.bf16.mxu0 0
      %2932 = vmatpush1.bf16.msra.mxu0 0
      %2933 = vmatprep.subr.bf16.mxu0 0
      %2934 = vmatpush1.bf16.msra.mxu0 0
      %2935 = vmatprep.subr.bf16.mxu0 0
      %2936 = vmatpush1.bf16.msra.mxu0 0
      %2937 = vmatprep.subr.bf16.mxu0 0
      %2938 = vmatpush1.bf16.msra.mxu0 %v2909
      %2939 = vmatprep.subr.bf16.mxu0 0
      %2940 = vmatpush2.bf16.msra.mxu0 0
      %2941 = vmatprep.subr.bf16.mxu0 0
      %2942 = vmatpush2.bf16.msra.mxu0 0
      %2943 = vmatprep.subr.bf16.mxu0 0
      %2944 = vmatpush2.bf16.msra.mxu0 0
      %2945 = vmatprep.subr.bf16.mxu0 0
      %2946 = vmatpush2.bf16.msra.mxu0 0
      %2947 = vmatprep.subr.bf16.mxu0 0
      %2948 = vmatpush2.bf16.msra.mxu0 0
      %2949 = vmatprep.subr.bf16.mxu0 0
      %2950 = vmatpush2.bf16.msra.mxu0 0
      %2951 = vmatprep.subr.bf16.mxu0 0
      %2952 = vmatpush2.bf16.msra.mxu0 0
      %2953 = vmatprep.subr.bf16.mxu0 0
      %2954 = vmatpush2.bf16.msra.mxu0 0
      %2955 = vmatprep.mubr.bf16.mxu0 0
      %2956 = vmatmul.mubr.bf16.gmra.mxu0 %v2912
      %v2957 = vpop.f32.mrf.mxu0
      %v2958 = vadd.f32 %v2869, %v2957
      %v2959 = vpop.f32.mrf.mxu0
      %v2960 = vpop.f32.mrf.mxu0
      %v2961 = vadd.f32 %v2872, %v2960
      %v2962 = vpop.f32.mrf.mxu0
      %2963 = vmatprep.mubr.bf16.mxu0 0
      %2964 = vmatmul.mubr.bf16.gmra.mxu0 %v2915
      %v2965 = vpop.f32.mrf.mxu0
      %v2966 = vadd.f32 %v2877, %v2965
      %v2967 = vpop.f32.mrf.mxu0
      %v2968 = vpop.f32.mrf.mxu0
      %v2969 = vadd.f32 %v2880, %v2968
      %v2970 = vpop.f32.mrf.mxu0
      %2971 = vmatprep.mubr.bf16.mxu0 0
      %2972 = vmatmul.mubr.bf16.gmra.mxu0 %v2918
      %v2973 = vpop.f32.mrf.mxu0
      %v2974 = vadd.f32 %v2885, %v2973
      %v2975 = vpop.f32.mrf.mxu0
      %v2976 = vpop.f32.mrf.mxu0
      %v2977 = vadd.f32 %v2888, %v2976
      %v2978 = vpop.f32.mrf.mxu0
      %2979 = vmatprep.mubr.bf16.mxu0 0
      %2980 = vmatmul.mubr.bf16.gmra.mxu0 %v2921
      %v2981 = vpop.f32.mrf.mxu0
      %v2982 = vadd.f32 %v2893, %v2981
      %v2983 = vpop.f32.mrf.mxu0
      %v2984 = vpop.f32.mrf.mxu0
      %v2985 = vadd.f32 %v2896, %v2984
      %v2986 = vpop.f32.mrf.mxu0
      %2987 = vdwg.mxu0
      %s2988 = scalar_lea.vmem %s3, 48
      %v2989 = vld [vmem:[%s2988] sm:$0xf]
      %v2990 = vld [vmem:[%s2988 + $0x4] sm:$0xf]
      %v2992 = vunpack.c.l.b16 %v2790
      %v2993 = vpack.c.b16 %v2992, %v2811
      %v2996 = vunpack.c.l.b16 %v2989
      %v2997 = vunpack.c.l.b16 %v2990
      %v2998 = vpack.c.b16 %v2997, %v2996
      %v3001 = vsel %vm2615, %v2993, 0
      %3003 = vmatprep.subr.bf16.mxu0 0
      %3004 = vmatpush1.bf16.msra.mxu0 0
      %3005 = vmatprep.subr.bf16.mxu0 0
      %3006 = vmatpush1.bf16.msra.mxu0 0
      %3007 = vmatprep.subr.bf16.mxu0 0
      %3008 = vmatpush1.bf16.msra.mxu0 0
      %3009 = vmatprep.subr.bf16.mxu0 0
      %3010 = vmatpush1.bf16.msra.mxu0 0
      %3011 = vmatprep.subr.bf16.mxu0 0
      %3012 = vmatpush1.bf16.msra.mxu0 0
      %3013 = vmatprep.subr.bf16.mxu0 0
      %3014 = vmatpush1.bf16.msra.mxu0 0
      %3015 = vmatprep.subr.bf16.mxu0 0
      %3016 = vmatpush1.bf16.msra.mxu0 0
      %3017 = vmatprep.subr.bf16.mxu0 0
      %3018 = vmatpush1.bf16.msra.mxu0 %v2998
      %3019 = vmatprep.subr.bf16.mxu0 0
      %3020 = vmatpush2.bf16.msra.mxu0 0
      %3021 = vmatprep.subr.bf16.mxu0 0
      %3022 = vmatpush2.bf16.msra.mxu0 0
      %3023 = vmatprep.subr.bf16.mxu0 0
      %3024 = vmatpush2.bf16.msra.mxu0 0
      %3025 = vmatprep.subr.bf16.mxu0 0
      %3026 = vmatpush2.bf16.msra.mxu0 0
      %3027 = vmatprep.subr.bf16.mxu0 0
      %3028 = vmatpush2.bf16.msra.mxu0 0
      %3029 = vmatprep.subr.bf16.mxu0 0
      %3030 = vmatpush2.bf16.msra.mxu0 0
      %3031 = vmatprep.subr.bf16.mxu0 0
      %3032 = vmatpush2.bf16.msra.mxu0 0
      %3033 = vmatprep.subr.bf16.mxu0 0
      %3034 = vmatpush2.bf16.msra.mxu0 0
      %3035 = vmatprep.mubr.bf16.mxu0 0
      %3036 = vmatmul.mubr.bf16.gmra.mxu0 %v2915
      %v3037 = vpop.f32.mrf.mxu0
      %v3038 = vadd.f32 0.0, %v3037
      %v3039 = vpop.f32.mrf.mxu0
      %v3040 = vpop.f32.mrf.mxu0
      %v3041 = vadd.f32 0.0, %v3040
      %v3042 = vpop.f32.mrf.mxu0
      %3043 = vmatprep.mubr.bf16.mxu0 0
      %3044 = vmatmul.mubr.bf16.gmra.mxu0 %v2918
      %v3045 = vpop.f32.mrf.mxu0
      %v3046 = vadd.f32 0.0, %v3045
      %v3047 = vpop.f32.mrf.mxu0
      %v3048 = vpop.f32.mrf.mxu0
      %v3049 = vadd.f32 0.0, %v3048
      %v3050 = vpop.f32.mrf.mxu0
      %3051 = vmatprep.mubr.bf16.mxu0 0
      %3052 = vmatmul.mubr.bf16.gmra.mxu0 %v2921
      %v3053 = vpop.f32.mrf.mxu0
      %v3054 = vadd.f32 0.0, %v3053
      %v3055 = vpop.f32.mrf.mxu0
      %v3056 = vpop.f32.mrf.mxu0
      %v3057 = vadd.f32 0.0, %v3056
      %v3058 = vpop.f32.mrf.mxu0
      %3059 = vmatprep.mubr.bf16.mxu0 0
      %3060 = vmatmul.mubr.bf16.gmra.mxu0 %v3001
      %v3061 = vpop.f32.mrf.mxu0
      %v3062 = vadd.f32 0.0, %v3061
      %v3063 = vpop.f32.mrf.mxu0
      %v3064 = vpop.f32.mrf.mxu0
      %v3065 = vadd.f32 0.0, %v3064
      %v3066 = vpop.f32.mrf.mxu0
      %3067 = vdwg.mxu0
      %v3068 = vadd.f32 %v2958, %v3038
      %v3069 = vadd.f32 %v2961, %v3041
      %v3070 = vadd.f32 %v2966, %v3046
      %v3071 = vadd.f32 %v2969, %v3049
      %v3072 = vadd.f32 %v2974, %v3054
      %v3073 = vadd.f32 %v2977, %v3057
      %v3074 = vadd.f32 %v2982, %v3062
      %v3075 = vadd.f32 %v2985, %v3065
      %v3076 = vld [vmem:[#allocation4 + $0x1] sm:$0xff]
      %v3077 = vld [vmem:[#allocation4 + $0x11] sm:$0xff]
      %v3078 = vld [vmem:[#allocation4 + $0x21] sm:$0xff]
      %v3079 = vld [vmem:[#allocation4 + $0x31] sm:$0xff]
      %v3080 = vld [vmem:[#allocation4 + $0x41] sm:$0xff]
      %v3081 = vld [vmem:[#allocation4 + $0x51] sm:$0xff]
      %v3082 = vld [vmem:[#allocation4 + $0x61] sm:$0xff]
      %v3083 = vld [vmem:[#allocation4 + $0x71] sm:$0xff]
      %v3084 = vld [vmem:[#allocation4 + $0x81] sm:$0xff]
      %v3085 = vld [vmem:[#allocation4 + $0x91] sm:$0xff]
      %v3086 = vpack.c.bf16 %v3076, %v3076
      %v3087 = vpack.c.bf16 %v3077, %v3077
      %v3088 = vpack.c.bf16 %v3078, %v3078
      %v3089 = vpack.c.bf16 %v3079, %v3079
      %v3090 = vpack.c.bf16 %v3080, %v3080
      %v3091 = vpack.c.bf16 %v3081, %v3081
      %v3092 = vpack.c.bf16 %v3082, %v3082
      %v3093 = vpack.c.bf16 %v3083, %v3083
      %v3094 = vpack.c.bf16 %v3084, %v3084
      %v3095 = vpack.c.bf16 %v3085, %v3085
      %s3096 = scalar_lea.vmem %s3, 8
      %v3097 = vld [vmem:[%s3096] sm:$0xf]
      %v3098 = vld [vmem:[%s3096 + $0x4] sm:$0xf]
      %v3107 = vunpack.c.l.b16 %v3086
      %v3108 = vunpack.c.l.b16 %v3087
      %v3109 = vunpack.c.l.b16 %v3088
      %v3110 = vunpack.c.l.b16 %v3089
      %v3111 = vunpack.c.l.b16 %v3090
      %v3112 = vunpack.c.l.b16 %v3091
      %v3113 = vunpack.c.l.b16 %v3092
      %v3114 = vunpack.c.l.b16 %v3093
      %v3115 = vpack.c.b16 %v3108, %v3107
      %v3116 = vpack.c.b16 %v3110, %v3109
      %v3117 = vpack.c.b16 %v3112, %v3111
      %v3118 = vpack.c.b16 %v3114, %v3113
      %v3121 = vunpack.c.l.b16 %v3097
      %v3122 = vunpack.c.l.b16 %v3098
      %v3123 = vpack.c.b16 %v3122, %v3121
      %v3126 = vsel %vm2615, %v3115, 0
      %v3129 = vsel %vm2615, %v3116, 0
      %v3132 = vsel %vm2615, %v3117, 0
      %v3135 = vsel %vm2615, %v3118, 0
      %3137 = vmatprep.subr.bf16.mxu0 0
      %3138 = vmatpush1.bf16.msra.mxu0 0
      %3139 = vmatprep.subr.bf16.mxu0 0
      %3140 = vmatpush1.bf16.msra.mxu0 0
      %3141 = vmatprep.subr.bf16.mxu0 0
      %3142 = vmatpush1.bf16.msra.mxu0 0
      %3143 = vmatprep.subr.bf16.mxu0 0
      %3144 = vmatpush1.bf16.msra.mxu0 0
      %3145 = vmatprep.subr.bf16.mxu0 0
      %3146 = vmatpush1.bf16.msra.mxu0 0
      %3147 = vmatprep.subr.bf16.mxu0 0
      %3148 = vmatpush1.bf16.msra.mxu0 0
      %3149 = vmatprep.subr.bf16.mxu0 0
      %3150 = vmatpush1.bf16.msra.mxu0 0
      %3151 = vmatprep.subr.bf16.mxu0 0
      %3152 = vmatpush1.bf16.msra.mxu0 %v3123
      %3153 = vmatprep.subr.bf16.mxu0 0
      %3154 = vmatpush2.bf16.msra.mxu0 0
      %3155 = vmatprep.subr.bf16.mxu0 0
      %3156 = vmatpush2.bf16.msra.mxu0 0
      %3157 = vmatprep.subr.bf16.mxu0 0
      %3158 = vmatpush2.bf16.msra.mxu0 0
      %3159 = vmatprep.subr.bf16.mxu0 0
      %3160 = vmatpush2.bf16.msra.mxu0 0
      %3161 = vmatprep.subr.bf16.mxu0 0
      %3162 = vmatpush2.bf16.msra.mxu0 0
      %3163 = vmatprep.subr.bf16.mxu0 0
      %3164 = vmatpush2.bf16.msra.mxu0 0
      %3165 = vmatprep.subr.bf16.mxu0 0
      %3166 = vmatpush2.bf16.msra.mxu0 0
      %3167 = vmatprep.subr.bf16.mxu0 0
      %3168 = vmatpush2.bf16.msra.mxu0 0
      %3169 = vmatprep.mubr.bf16.mxu0 0
      %3170 = vmatmul.mubr.bf16.gmra.mxu0 %v3126
      %v3171 = vpop.f32.mrf.mxu0
      %v3172 = vadd.f32 0.0, %v3171
      %v3173 = vpop.f32.mrf.mxu0
      %v3174 = vpop.f32.mrf.mxu0
      %v3175 = vadd.f32 0.0, %v3174
      %v3176 = vpop.f32.mrf.mxu0
      %3177 = vmatprep.mubr.bf16.mxu0 0
      %3178 = vmatmul.mubr.bf16.gmra.mxu0 %v3129
      %v3179 = vpop.f32.mrf.mxu0
      %v3180 = vadd.f32 0.0, %v3179
      %v3181 = vpop.f32.mrf.mxu0
      %v3182 = vpop.f32.mrf.mxu0
      %v3183 = vadd.f32 0.0, %v3182
      %v3184 = vpop.f32.mrf.mxu0
      %3185 = vmatprep.mubr.bf16.mxu0 0
      %3186 = vmatmul.mubr.bf16.gmra.mxu0 %v3132
      %v3187 = vpop.f32.mrf.mxu0
      %v3188 = vadd.f32 0.0, %v3187
      %v3189 = vpop.f32.mrf.mxu0
      %v3190 = vpop.f32.mrf.mxu0
      %v3191 = vadd.f32 0.0, %v3190
      %v3192 = vpop.f32.mrf.mxu0
      %3193 = vmatprep.mubr.bf16.mxu0 0
      %3194 = vmatmul.mubr.bf16.gmra.mxu0 %v3135
      %v3195 = vpop.f32.mrf.mxu0
      %v3196 = vadd.f32 0.0, %v3195
      %v3197 = vpop.f32.mrf.mxu0
      %v3198 = vpop.f32.mrf.mxu0
      %v3199 = vadd.f32 0.0, %v3198
      %v3200 = vpop.f32.mrf.mxu0
      %3201 = vdwg.mxu0
      %v3202 = vadd.f32 %v3068, %v3172
      %v3203 = vadd.f32 %v3069, %v3175
      %v3204 = vadd.f32 %v3070, %v3180
      %v3205 = vadd.f32 %v3071, %v3183
      %v3206 = vadd.f32 %v3072, %v3188
      %v3207 = vadd.f32 %v3073, %v3191
      %v3208 = vadd.f32 %v3074, %v3196
      %v3209 = vadd.f32 %v3075, %v3199
      %s3210 = scalar_lea.vmem %s3, 32
      %v3211 = vld [vmem:[%s3210] sm:$0xf]
      %v3212 = vld [vmem:[%s3210 + $0x4] sm:$0xf]
      %v3214 = vunpack.c.l.b16 %v3094
      %v3215 = vpack.c.b16 %v3109, %v3108
      %v3216 = vpack.c.b16 %v3111, %v3110
      %v3217 = vpack.c.b16 %v3113, %v3112
      %v3218 = vpack.c.b16 %v3214, %v3114
      %v3221 = vunpack.c.l.b16 %v3211
      %v3222 = vunpack.c.l.b16 %v3212
      %v3223 = vpack.c.b16 %v3222, %v3221
      %v3226 = vsel %vm2615, %v3215, 0
      %v3229 = vsel %vm2615, %v3216, 0
      %v3232 = vsel %vm2615, %v3217, 0
      %v3235 = vsel %vm2615, %v3218, 0
      %3237 = vmatprep.subr.bf16.mxu0 0
      %3238 = vmatpush1.bf16.msra.mxu0 0
      %3239 = vmatprep.subr.bf16.mxu0 0
      %3240 = vmatpush1.bf16.msra.mxu0 0
      %3241 = vmatprep.subr.bf16.mxu0 0
      %3242 = vmatpush1.bf16.msra.mxu0 0
      %3243 = vmatprep.subr.bf16.mxu0 0
      %3244 = vmatpush1.bf16.msra.mxu0 0
      %3245 = vmatprep.subr.bf16.mxu0 0
      %3246 = vmatpush1.bf16.msra.mxu0 0
      %3247 = vmatprep.subr.bf16.mxu0 0
      %3248 = vmatpush1.bf16.msra.mxu0 0
      %3249 = vmatprep.subr.bf16.mxu0 0
      %3250 = vmatpush1.bf16.msra.mxu0 0
      %3251 = vmatprep.subr.bf16.mxu0 0
      %3252 = vmatpush1.bf16.msra.mxu0 %v3223
      %3253 = vmatprep.subr.bf16.mxu0 0
      %3254 = vmatpush2.bf16.msra.mxu0 0
      %3255 = vmatprep.subr.bf16.mxu0 0
      %3256 = vmatpush2.bf16.msra.mxu0 0
      %3257 = vmatprep.subr.bf16.mxu0 0
      %3258 = vmatpush2.bf16.msra.mxu0 0
      %3259 = vmatprep.subr.bf16.mxu0 0
      %3260 = vmatpush2.bf16.msra.mxu0 0
      %3261 = vmatprep.subr.bf16.mxu0 0
      %3262 = vmatpush2.bf16.msra.mxu0 0
      %3263 = vmatprep.subr.bf16.mxu0 0
      %3264 = vmatpush2.bf16.msra.mxu0 0
      %3265 = vmatprep.subr.bf16.mxu0 0
      %3266 = vmatpush2.bf16.msra.mxu0 0
      %3267 = vmatprep.subr.bf16.mxu0 0
      %3268 = vmatpush2.bf16.msra.mxu0 0
      %3269 = vmatprep.mubr.bf16.mxu0 0
      %3270 = vmatmul.mubr.bf16.gmra.mxu0 %v3226
      %v3271 = vpop.f32.mrf.mxu0
      %v3272 = vadd.f32 0.0, %v3271
      %v3273 = vpop.f32.mrf.mxu0
      %v3274 = vpop.f32.mrf.mxu0
      %v3275 = vadd.f32 0.0, %v3274
      %v3276 = vpop.f32.mrf.mxu0
      %3277 = vmatprep.mubr.bf16.mxu0 0
      %3278 = vmatmul.mubr.bf16.gmra.mxu0 %v3229
      %v3279 = vpop.f32.mrf.mxu0
      %v3280 = vadd.f32 0.0, %v3279
      %v3281 = vpop.f32.mrf.mxu0
      %v3282 = vpop.f32.mrf.mxu0
      %v3283 = vadd.f32 0.0, %v3282
      %v3284 = vpop.f32.mrf.mxu0
      %3285 = vmatprep.mubr.bf16.mxu0 0
      %3286 = vmatmul.mubr.bf16.gmra.mxu0 %v3232
      %v3287 = vpop.f32.mrf.mxu0
      %v3288 = vadd.f32 0.0, %v3287
      %v3289 = vpop.f32.mrf.mxu0
      %v3290 = vpop.f32.mrf.mxu0
      %v3291 = vadd.f32 0.0, %v3290
      %v3292 = vpop.f32.mrf.mxu0
      %3293 = vmatprep.mubr.bf16.mxu0 0
      %3294 = vmatmul.mubr.bf16.gmra.mxu0 %v3235
      %v3295 = vpop.f32.mrf.mxu0
      %v3296 = vadd.f32 0.0, %v3295
      %v3297 = vpop.f32.mrf.mxu0
      %v3298 = vpop.f32.mrf.mxu0
      %v3299 = vadd.f32 0.0, %v3298
      %v3300 = vpop.f32.mrf.mxu0
      %3301 = vdwg.mxu0
      %v3302 = vadd.f32 %v3202, %v3272
      %v3303 = vadd.f32 %v3203, %v3275
      %v3304 = vadd.f32 %v3204, %v3280
      %v3305 = vadd.f32 %v3205, %v3283
      %v3306 = vadd.f32 %v3206, %v3288
      %v3307 = vadd.f32 %v3207, %v3291
      %v3308 = vadd.f32 %v3208, %v3296
      %v3309 = vadd.f32 %v3209, %v3299
      %s3310 = scalar_lea.vmem %s3, 56
      %v3311 = vld [vmem:[%s3310] sm:$0xf]
      %v3312 = vld [vmem:[%s3310 + $0x4] sm:$0xf]
      %v3314 = vunpack.c.l.b16 %v3095
      %v3315 = vpack.c.b16 %v3314, %v3214
      %v3318 = vunpack.c.l.b16 %v3311
      %v3319 = vunpack.c.l.b16 %v3312
      %v3320 = vpack.c.b16 %v3319, %v3318
      %v3323 = vsel %vm2615, %v3315, 0
      %3325 = vmatprep.subr.bf16.mxu0 0
      %3326 = vmatpush1.bf16.msra.mxu0 0
      %3327 = vmatprep.subr.bf16.mxu0 0
      %3328 = vmatpush1.bf16.msra.mxu0 0
      %3329 = vmatprep.subr.bf16.mxu0 0
      %3330 = vmatpush1.bf16.msra.mxu0 0
      %3331 = vmatprep.subr.bf16.mxu0 0
      %3332 = vmatpush1.bf16.msra.mxu0 0
      %3333 = vmatprep.subr.bf16.mxu0 0
      %3334 = vmatpush1.bf16.msra.mxu0 0
      %3335 = vmatprep.subr.bf16.mxu0 0
      %3336 = vmatpush1.bf16.msra.mxu0 0
      %3337 = vmatprep.subr.bf16.mxu0 0
      %3338 = vmatpush1.bf16.msra.mxu0 0
      %3339 = vmatprep.subr.bf16.mxu0 0
      %3340 = vmatpush1.bf16.msra.mxu0 %v3320
      %3341 = vmatprep.subr.bf16.mxu0 0
      %3342 = vmatpush2.bf16.msra.mxu0 0
      %3343 = vmatprep.subr.bf16.mxu0 0
      %3344 = vmatpush2.bf16.msra.mxu0 0
      %3345 = vmatprep.subr.bf16.mxu0 0
      %3346 = vmatpush2.bf16.msra.mxu0 0
      %3347 = vmatprep.subr.bf16.mxu0 0
      %3348 = vmatpush2.bf16.msra.mxu0 0
      %3349 = vmatprep.subr.bf16.mxu0 0
      %3350 = vmatpush2.bf16.msra.mxu0 0
      %3351 = vmatprep.subr.bf16.mxu0 0
      %3352 = vmatpush2.bf16.msra.mxu0 0
      %3353 = vmatprep.subr.bf16.mxu0 0
      %3354 = vmatpush2.bf16.msra.mxu0 0
      %3355 = vmatprep.subr.bf16.mxu0 0
      %3356 = vmatpush2.bf16.msra.mxu0 0
      %3357 = vmatprep.mubr.bf16.mxu0 0
      %3358 = vmatmul.mubr.bf16.gmra.mxu0 %v3129
      %v3359 = vpop.f32.mrf.mxu0
      %v3360 = vadd.f32 0.0, %v3359
      %v3361 = vpop.f32.mrf.mxu0
      %v3362 = vpop.f32.mrf.mxu0
      %v3363 = vadd.f32 0.0, %v3362
      %v3364 = vpop.f32.mrf.mxu0
      %3365 = vmatprep.mubr.bf16.mxu0 0
      %3366 = vmatmul.mubr.bf16.gmra.mxu0 %v3132
      %v3367 = vpop.f32.mrf.mxu0
      %v3368 = vadd.f32 0.0, %v3367
      %v3369 = vpop.f32.mrf.mxu0
      %v3370 = vpop.f32.mrf.mxu0
      %v3371 = vadd.f32 0.0, %v3370
      %v3372 = vpop.f32.mrf.mxu0
      %3373 = vmatprep.mubr.bf16.mxu0 0
      %3374 = vmatmul.mubr.bf16.gmra.mxu0 %v3135
      %v3375 = vpop.f32.mrf.mxu0
      %v3376 = vadd.f32 0.0, %v3375
      %v3377 = vpop.f32.mrf.mxu0
      %v3378 = vpop.f32.mrf.mxu0
      %v3379 = vadd.f32 0.0, %v3378
      %v3380 = vpop.f32.mrf.mxu0
      %3381 = vmatprep.mubr.bf16.mxu0 0
      %3382 = vmatmul.mubr.bf16.gmra.mxu0 %v3323
      %v3383 = vpop.f32.mrf.mxu0
      %v3384 = vadd.f32 0.0, %v3383
      %v3385 = vpop.f32.mrf.mxu0
      %v3386 = vpop.f32.mrf.mxu0
      %v3387 = vadd.f32 0.0, %v3386
      %v3388 = vpop.f32.mrf.mxu0
      %3389 = vdwg.mxu0
      %v3390 = vadd.f32 %v3302, %v3360
      %v3391 = vadd.f32 %v3303, %v3363
      %v3392 = vadd.f32 %v3304, %v3368
      %v3393 = vadd.f32 %v3305, %v3371
      %v3394 = vadd.f32 %v3306, %v3376
      %v3395 = vadd.f32 %v3307, %v3379
      %v3396 = vadd.f32 %v3308, %v3384
      %v3397 = vadd.f32 %v3309, %v3387
      %v3398 = vld [vmem:[#allocation4 + $0x2] sm:$0xff]
      %v3399 = vld [vmem:[#allocation4 + $0x12] sm:$0xff]
      %v3400 = vld [vmem:[#allocation4 + $0x22] sm:$0xff]
      %v3401 = vld [vmem:[#allocation4 + $0x32] sm:$0xff]
      %v3402 = vld [vmem:[#allocation4 + $0x42] sm:$0xff]
      %v3403 = vld [vmem:[#allocation4 + $0x52] sm:$0xff]
      %v3404 = vld [vmem:[#allocation4 + $0x62] sm:$0xff]
      %v3405 = vld [vmem:[#allocation4 + $0x72] sm:$0xff]
      %v3406 = vld [vmem:[#allocation4 + $0x82] sm:$0xff]
      %v3407 = vld [vmem:[#allocation4 + $0x92] sm:$0xff]
      %v3408 = vpack.c.bf16 %v3398, %v3398
      %v3409 = vpack.c.bf16 %v3399, %v3399
      %v3410 = vpack.c.bf16 %v3400, %v3400
      %v3411 = vpack.c.bf16 %v3401, %v3401
      %v3412 = vpack.c.bf16 %v3402, %v3402
      %v3413 = vpack.c.bf16 %v3403, %v3403
      %v3414 = vpack.c.bf16 %v3404, %v3404
      %v3415 = vpack.c.bf16 %v3405, %v3405
      %v3416 = vpack.c.bf16 %v3406, %v3406
      %v3417 = vpack.c.bf16 %v3407, %v3407
      %s3418 = scalar_lea.vmem %s3, 16
      %v3419 = vld [vmem:[%s3418] sm:$0xf]
      %v3420 = vld [vmem:[%s3418 + $0x4] sm:$0xf]
      %v3429 = vunpack.c.l.b16 %v3408
      %v3430 = vunpack.c.l.b16 %v3409
      %v3431 = vunpack.c.l.b16 %v3410
      %v3432 = vunpack.c.l.b16 %v3411
      %v3433 = vunpack.c.l.b16 %v3412
      %v3434 = vunpack.c.l.b16 %v3413
      %v3435 = vunpack.c.l.b16 %v3414
      %v3436 = vunpack.c.l.b16 %v3415
      %v3437 = vpack.c.b16 %v3430, %v3429
      %v3438 = vpack.c.b16 %v3432, %v3431
      %v3439 = vpack.c.b16 %v3434, %v3433
      %v3440 = vpack.c.b16 %v3436, %v3435
      %v3443 = vunpack.c.l.b16 %v3419
      %v3444 = vunpack.c.l.b16 %v3420
      %v3445 = vpack.c.b16 %v3444, %v3443
      %v3448 = vsel %vm2615, %v3437, 0
      %v3451 = vsel %vm2615, %v3438, 0
      %v3454 = vsel %vm2615, %v3439, 0
      %v3457 = vsel %vm2615, %v3440, 0
      %3459 = vmatprep.subr.bf16.mxu0 0
      %3460 = vmatpush1.bf16.msra.mxu0 0
      %3461 = vmatprep.subr.bf16.mxu0 0
      %3462 = vmatpush1.bf16.msra.mxu0 0
      %3463 = vmatprep.subr.bf16.mxu0 0
      %3464 = vmatpush1.bf16.msra.mxu0 0
      %3465 = vmatprep.subr.bf16.mxu0 0
      %3466 = vmatpush1.bf16.msra.mxu0 0
      %3467 = vmatprep.subr.bf16.mxu0 0
      %3468 = vmatpush1.bf16.msra.mxu0 0
      %3469 = vmatprep.subr.bf16.mxu0 0
      %3470 = vmatpush1.bf16.msra.mxu0 0
      %3471 = vmatprep.subr.bf16.mxu0 0
      %3472 = vmatpush1.bf16.msra.mxu0 0
      %3473 = vmatprep.subr.bf16.mxu0 0
      %3474 = vmatpush1.bf16.msra.mxu0 %v3445
      %3475 = vmatprep.subr.bf16.mxu0 0
      %3476 = vmatpush2.bf16.msra.mxu0 0
      %3477 = vmatprep.subr.bf16.mxu0 0
      %3478 = vmatpush2.bf16.msra.mxu0 0
      %3479 = vmatprep.subr.bf16.mxu0 0
      %3480 = vmatpush2.bf16.msra.mxu0 0
      %3481 = vmatprep.subr.bf16.mxu0 0
      %3482 = vmatpush2.bf16.msra.mxu0 0
      %3483 = vmatprep.subr.bf16.mxu0 0
      %3484 = vmatpush2.bf16.msra.mxu0 0
      %3485 = vmatprep.subr.bf16.mxu0 0
      %3486 = vmatpush2.bf16.msra.mxu0 0
      %3487 = vmatprep.subr.bf16.mxu0 0
      %3488 = vmatpush2.bf16.msra.mxu0 0
      %3489 = vmatprep.subr.bf16.mxu0 0
      %3490 = vmatpush2.bf16.msra.mxu0 0
      %3491 = vmatprep.mubr.bf16.mxu0 0
      %3492 = vmatmul.mubr.bf16.gmra.mxu0 %v3448
      %v3493 = vpop.f32.mrf.mxu0
      %v3494 = vadd.f32 0.0, %v3493
      %v3495 = vpop.f32.mrf.mxu0
      %v3496 = vpop.f32.mrf.mxu0
      %v3497 = vadd.f32 0.0, %v3496
      %v3498 = vpop.f32.mrf.mxu0
      %3499 = vmatprep.mubr.bf16.mxu0 0
      %3500 = vmatmul.mubr.bf16.gmra.mxu0 %v3451
      %v3501 = vpop.f32.mrf.mxu0
      %v3502 = vadd.f32 0.0, %v3501
      %v3503 = vpop.f32.mrf.mxu0
      %v3504 = vpop.f32.mrf.mxu0
      %v3505 = vadd.f32 0.0, %v3504
      %v3506 = vpop.f32.mrf.mxu0
      %3507 = vmatprep.mubr.bf16.mxu0 0
      %3508 = vmatmul.mubr.bf16.gmra.mxu0 %v3454
      %v3509 = vpop.f32.mrf.mxu0
      %v3510 = vadd.f32 0.0, %v3509
      %v3511 = vpop.f32.mrf.mxu0
      %v3512 = vpop.f32.mrf.mxu0
      %v3513 = vadd.f32 0.0, %v3512
      %v3514 = vpop.f32.mrf.mxu0
      %3515 = vmatprep.mubr.bf16.mxu0 0
      %3516 = vmatmul.mubr.bf16.gmra.mxu0 %v3457
      %v3517 = vpop.f32.mrf.mxu0
      %v3518 = vadd.f32 0.0, %v3517
      %v3519 = vpop.f32.mrf.mxu0
      %v3520 = vpop.f32.mrf.mxu0
      %v3521 = vadd.f32 0.0, %v3520
      %v3522 = vpop.f32.mrf.mxu0
      %3523 = vdwg.mxu0
      %v3524 = vadd.f32 %v3390, %v3494
      %v3525 = vadd.f32 %v3391, %v3497
      %v3526 = vadd.f32 %v3392, %v3502
      %v3527 = vadd.f32 %v3393, %v3505
      %v3528 = vadd.f32 %v3394, %v3510
      %v3529 = vadd.f32 %v3395, %v3513
      %v3530 = vadd.f32 %v3396, %v3518
      %v3531 = vadd.f32 %v3397, %v3521
      %s3532 = scalar_lea.vmem %s3, 40
      %v3533 = vld [vmem:[%s3532] sm:$0xf]
      %v3534 = vld [vmem:[%s3532 + $0x4] sm:$0xf]
      %v3536 = vunpack.c.l.b16 %v3416
      %v3537 = vpack.c.b16 %v3431, %v3430
      %v3538 = vpack.c.b16 %v3433, %v3432
      %v3539 = vpack.c.b16 %v3435, %v3434
      %v3540 = vpack.c.b16 %v3536, %v3436
      %v3543 = vunpack.c.l.b16 %v3533
      %v3544 = vunpack.c.l.b16 %v3534
      %v3545 = vpack.c.b16 %v3544, %v3543
      %v3548 = vsel %vm2615, %v3537, 0
      %v3551 = vsel %vm2615, %v3538, 0
      %v3554 = vsel %vm2615, %v3539, 0
      %v3557 = vsel %vm2615, %v3540, 0
      %3559 = vmatprep.subr.bf16.mxu0 0
      %3560 = vmatpush1.bf16.msra.mxu0 0
      %3561 = vmatprep.subr.bf16.mxu0 0
      %3562 = vmatpush1.bf16.msra.mxu0 0
      %3563 = vmatprep.subr.bf16.mxu0 0
      %3564 = vmatpush1.bf16.msra.mxu0 0
      %3565 = vmatprep.subr.bf16.mxu0 0
      %3566 = vmatpush1.bf16.msra.mxu0 0
      %3567 = vmatprep.subr.bf16.mxu0 0
      %3568 = vmatpush1.bf16.msra.mxu0 0
      %3569 = vmatprep.subr.bf16.mxu0 0
      %3570 = vmatpush1.bf16.msra.mxu0 0
      %3571 = vmatprep.subr.bf16.mxu0 0
      %3572 = vmatpush1.bf16.msra.mxu0 0
      %3573 = vmatprep.subr.bf16.mxu0 0
      %3574 = vmatpush1.bf16.msra.mxu0 %v3545
      %3575 = vmatprep.subr.bf16.mxu0 0
      %3576 = vmatpush2.bf16.msra.mxu0 0
      %3577 = vmatprep.subr.bf16.mxu0 0
      %3578 = vmatpush2.bf16.msra.mxu0 0
      %3579 = vmatprep.subr.bf16.mxu0 0
      %3580 = vmatpush2.bf16.msra.mxu0 0
      %3581 = vmatprep.subr.bf16.mxu0 0
      %3582 = vmatpush2.bf16.msra.mxu0 0
      %3583 = vmatprep.subr.bf16.mxu0 0
      %3584 = vmatpush2.bf16.msra.mxu0 0
      %3585 = vmatprep.subr.bf16.mxu0 0
      %3586 = vmatpush2.bf16.msra.mxu0 0
      %3587 = vmatprep.subr.bf16.mxu0 0
      %3588 = vmatpush2.bf16.msra.mxu0 0
      %3589 = vmatprep.subr.bf16.mxu0 0
      %3590 = vmatpush2.bf16.msra.mxu0 0
      %3591 = vmatprep.mubr.bf16.mxu0 0
      %3592 = vmatmul.mubr.bf16.gmra.mxu0 %v3548
      %v3593 = vpop.f32.mrf.mxu0
      %v3594 = vadd.f32 0.0, %v3593
      %v3595 = vpop.f32.mrf.mxu0
      %v3596 = vpop.f32.mrf.mxu0
      %v3597 = vadd.f32 0.0, %v3596
      %v3598 = vpop.f32.mrf.mxu0
      %3599 = vmatprep.mubr.bf16.mxu0 0
      %3600 = vmatmul.mubr.bf16.gmra.mxu0 %v3551
      %v3601 = vpop.f32.mrf.mxu0
      %v3602 = vadd.f32 0.0, %v3601
      %v3603 = vpop.f32.mrf.mxu0
      %v3604 = vpop.f32.mrf.mxu0
      %v3605 = vadd.f32 0.0, %v3604
      %v3606 = vpop.f32.mrf.mxu0
      %3607 = vmatprep.mubr.bf16.mxu0 0
      %3608 = vmatmul.mubr.bf16.gmra.mxu0 %v3554
      %v3609 = vpop.f32.mrf.mxu0
      %v3610 = vadd.f32 0.0, %v3609
      %v3611 = vpop.f32.mrf.mxu0
      %v3612 = vpop.f32.mrf.mxu0
      %v3613 = vadd.f32 0.0, %v3612
      %v3614 = vpop.f32.mrf.mxu0
      %3615 = vmatprep.mubr.bf16.mxu0 0
      %3616 = vmatmul.mubr.bf16.gmra.mxu0 %v3557
      %v3617 = vpop.f32.mrf.mxu0
      %v3618 = vadd.f32 0.0, %v3617
      %v3619 = vpop.f32.mrf.mxu0
      %v3620 = vpop.f32.mrf.mxu0
      %v3621 = vadd.f32 0.0, %v3620
      %v3622 = vpop.f32.mrf.mxu0
      %3623 = vdwg.mxu0
      %v3624 = vadd.f32 %v3524, %v3594
      %v3625 = vadd.f32 %v3525, %v3597
      %v3626 = vadd.f32 %v3526, %v3602
      %v3627 = vadd.f32 %v3527, %v3605
      %v3628 = vadd.f32 %v3528, %v3610
      %v3629 = vadd.f32 %v3529, %v3613
      %v3630 = vadd.f32 %v3530, %v3618
      %v3631 = vadd.f32 %v3531, %v3621
      %s3632 = scalar_lea.vmem %s3, 64
      %v3633 = vld [vmem:[%s3632] sm:$0xf]
      %v3634 = vld [vmem:[%s3632 + $0x4] sm:$0xf]
      %v3636 = vunpack.c.l.b16 %v3417
      %v3637 = vpack.c.b16 %v3636, %v3536
      %v3640 = vunpack.c.l.b16 %v3633
      %v3641 = vunpack.c.l.b16 %v3634
      %v3642 = vpack.c.b16 %v3641, %v3640
      %v3645 = vsel %vm2615, %v3637, 0
      %3647 = vmatprep.subr.bf16.mxu0 0
      %3648 = vmatpush1.bf16.msra.mxu0 0
      %3649 = vmatprep.subr.bf16.mxu0 0
      %3650 = vmatpush1.bf16.msra.mxu0 0
      %3651 = vmatprep.subr.bf16.mxu0 0
      %3652 = vmatpush1.bf16.msra.mxu0 0
      %3653 = vmatprep.subr.bf16.mxu0 0
      %3654 = vmatpush1.bf16.msra.mxu0 0
      %3655 = vmatprep.subr.bf16.mxu0 0
      %3656 = vmatpush1.bf16.msra.mxu0 0
      %3657 = vmatprep.subr.bf16.mxu0 0
      %3658 = vmatpush1.bf16.msra.mxu0 0
      %3659 = vmatprep.subr.bf16.mxu0 0
      %3660 = vmatpush1.bf16.msra.mxu0 0
      %3661 = vmatprep.subr.bf16.mxu0 0
      %3662 = vmatpush1.bf16.msra.mxu0 %v3642
      %3663 = vmatprep.subr.bf16.mxu0 0
      %3664 = vmatpush2.bf16.msra.mxu0 0
      %3665 = vmatprep.subr.bf16.mxu0 0
      %3666 = vmatpush2.bf16.msra.mxu0 0
      %3667 = vmatprep.subr.bf16.mxu0 0
      %3668 = vmatpush2.bf16.msra.mxu0 0
      %3669 = vmatprep.subr.bf16.mxu0 0
      %3670 = vmatpush2.bf16.msra.mxu0 0
      %3671 = vmatprep.subr.bf16.mxu0 0
      %3672 = vmatpush2.bf16.msra.mxu0 0
      %3673 = vmatprep.subr.bf16.mxu0 0
      %3674 = vmatpush2.bf16.msra.mxu0 0
      %3675 = vmatprep.subr.bf16.mxu0 0
      %3676 = vmatpush2.bf16.msra.mxu0 0
      %3677 = vmatprep.subr.bf16.mxu0 0
      %3678 = vmatpush2.bf16.msra.mxu0 0
      %3679 = vmatprep.mubr.bf16.mxu0 0
      %3680 = vmatmul.mubr.bf16.gmra.mxu0 %v3451
      %v3681 = vpop.f32.mrf.mxu0
      %v3682 = vadd.f32 0.0, %v3681
      %v3683 = vpop.f32.mrf.mxu0
      %v3684 = vpop.f32.mrf.mxu0
      %v3685 = vadd.f32 0.0, %v3684
      %v3686 = vpop.f32.mrf.mxu0
      %3687 = vmatprep.mubr.bf16.mxu0 0
      %3688 = vmatmul.mubr.bf16.gmra.mxu0 %v3454
      %v3689 = vpop.f32.mrf.mxu0
      %v3690 = vadd.f32 0.0, %v3689
      %v3691 = vpop.f32.mrf.mxu0
      %v3692 = vpop.f32.mrf.mxu0
      %v3693 = vadd.f32 0.0, %v3692
      %v3694 = vpop.f32.mrf.mxu0
      %3695 = vmatprep.mubr.bf16.mxu0 0
      %3696 = vmatmul.mubr.bf16.gmra.mxu0 %v3457
      %v3697 = vpop.f32.mrf.mxu0
      %v3698 = vadd.f32 0.0, %v3697
      %v3699 = vpop.f32.mrf.mxu0
      %v3700 = vpop.f32.mrf.mxu0
      %v3701 = vadd.f32 0.0, %v3700
      %v3702 = vpop.f32.mrf.mxu0
      %3703 = vmatprep.mubr.bf16.mxu0 0
      %3704 = vmatmul.mubr.bf16.gmra.mxu0 %v3645
      %v3705 = vpop.f32.mrf.mxu0
      %v3706 = vadd.f32 0.0, %v3705
      %v3707 = vpop.f32.mrf.mxu0
      %v3708 = vpop.f32.mrf.mxu0
      %v3709 = vadd.f32 0.0, %v3708
      %v3710 = vpop.f32.mrf.mxu0
      %3711 = vdwg.mxu0
      %v3712 = vadd.f32 %v3624, %v3682
      %v3713 = vadd.f32 %v3625, %v3685
      %v3714 = vadd.f32 %v3626, %v3690
      %v3715 = vadd.f32 %v3627, %v3693
      %v3716 = vadd.f32 %v3628, %v3698
      %v3717 = vadd.f32 %v3629, %v3701
      %v3718 = vadd.f32 %v3630, %v3706
      %v3719 = vadd.f32 %v3631, %v3709
      %v3720 = vld [vmem:[%s4] sm:$0x1]
      %v3722 = vlaneseq
      %v3723 = vshrl.u32 %v3722, 7
      %v3724 = vsub.s32 0, %v3723
      %v3725 = vrot.slane %v3720, %v3724
      %v3727 = vadd.f32 %v3712, %v3725
      %v3728 = vadd.f32 %v3713, %v3725
      %v3729 = vadd.f32 %v3714, %v3725
      %v3730 = vadd.f32 %v3715, %v3725
      %v3731 = vadd.f32 %v3716, %v3725
      %v3732 = vadd.f32 %v3717, %v3725
      %v3733 = vadd.f32 %v3718, %v3725
      %v3734 = vadd.f32 %v3719, %v3725
      %v3735 = vmax.f32 %v3727, 0.0
      %v3736 = vmax.f32 %v3728, 0.0
      %v3737 = vmax.f32 %v3729, 0.0
      %v3738 = vmax.f32 %v3730, 0.0
      %v3739 = vmax.f32 %v3731, 0.0
      %v3740 = vmax.f32 %v3732, 0.0
      %v3741 = vmax.f32 %v3733, 0.0
      %v3742 = vmax.f32 %v3734, 0.0
      %vm3743 = vcmask 261120
      %3744 = vst.msk [vmem:[#allocation5] sm:$0xff] %vm3743, %v3735
      %3745 = vst.msk [vmem:[#allocation5 + $0x8] sm:$0xff] %vm3743, %v3736
      %3746 = vst.msk [vmem:[#allocation5 + $0x10] sm:$0xff] %vm3743, %v3737
      %3747 = vst.msk [vmem:[#allocation5 + $0x18] sm:$0xff] %vm3743, %v3738
      %3748 = vst.msk [vmem:[#allocation5 + $0x20] sm:$0xff] %vm3743, %v3739
      %3749 = vst.msk [vmem:[#allocation5 + $0x28] sm:$0xff] %vm3743, %v3740
      %3750 = vst.msk [vmem:[#allocation5 + $0x30] sm:$0xff] %vm3743, %v3741
      %3751 = vst.msk [vmem:[#allocation5 + $0x38] sm:$0xff] %vm3743, %v3742
      %v3752 = vld [vmem:[#allocation5] ss:$2 sm:$0xf]
      %s3753 = scalar_lea.vmem [#allocation5], 16
      %v3754 = vld [vmem:[%s3753] ss:$2 sm:$0xf]
      %s3755 = scalar_lea.vmem [#allocation5], 32
      %v3756 = vld [vmem:[%s3755] ss:$2 sm:$0xf]
      %s3757 = scalar_lea.vmem [#allocation5], 48
      %v3758 = vld [vmem:[%s3757] ss:$2 sm:$0xf]
      %s3759 = scalar_lea.vmem [#allocation5], 1
      %v3760 = vld [vmem:[%s3759] ss:$2 sm:$0xf]
      %s3761 = scalar_lea.vmem [#allocation5], 17
      %v3762 = vld [vmem:[%s3761] ss:$2 sm:$0xf]
      %s3763 = scalar_lea.vmem [#allocation5], 33
      %v3764 = vld [vmem:[%s3763] ss:$2 sm:$0xf]
      %s3765 = scalar_lea.vmem [#allocation5], 49
      %v3766 = vld [vmem:[%s3765] ss:$2 sm:$0xf]
      %s3767 = scalar_lea.vmem [#allocation5], 8
      %v3768 = vld [vmem:[%s3767] ss:$2 sm:$0xf]
      %s3769 = scalar_lea.vmem %s3767, 16 [#allocation5]
      %v3770 = vld [vmem:[%s3769] ss:$2 sm:$0xf]
      %s3771 = scalar_lea.vmem %s3767, 32 [#allocation5]
      %v3772 = vld [vmem:[%s3771] ss:$2 sm:$0xf]
      %s3773 = scalar_lea.vmem %s3767, 48 [#allocation5]
      %v3774 = vld [vmem:[%s3773] ss:$2 sm:$0xf]
      %s3775 = scalar_lea.vmem %s3767, 1 [#allocation5]
      %v3776 = vld [vmem:[%s3775] ss:$2 sm:$0xf]
      %s3777 = scalar_lea.vmem %s3767, 17 [#allocation5]
      %v3778 = vld [vmem:[%s3777] ss:$2 sm:$0xf]
      %s3779 = scalar_lea.vmem %s3767, 33 [#allocation5]
      %v3780 = vld [vmem:[%s3779] ss:$2 sm:$0xf]
      %s3781 = scalar_lea.vmem %s3767, 49 [#allocation5]
      %v3782 = vld [vmem:[%s3781] ss:$2 sm:$0xf]
      %v3783 = vmax.f32 %v3752, %v3760
      %v3784 = vmax.f32 %v3754, %v3762
      %v3785 = vmax.f32 %v3756, %v3764
      %v3786 = vmax.f32 %v3758, %v3766
      %v3787 = vmax.f32 %v3768, %v3776
      %v3788 = vmax.f32 %v3770, %v3778
      %v3789 = vmax.f32 %v3772, %v3780
      %v3790 = vmax.f32 %v3774, %v3782
      %v3791 = vmax.f32 %v3783, %v3787
      %v3792 = vmax.f32 %v3784, %v3788
      %v3793 = vmax.f32 %v3785, %v3789
      %v3794 = vmax.f32 %v3786, %v3790
      %vm3795 = vcmask 257024
      %3796 = vst.msk [vmem:[#allocation6] sm:$0xf] %vm3795, %v3791
      %3797 = vst.msk [vmem:[#allocation6 + $0x4] sm:$0xf] %vm3795, %v3792
      %3798 = vst.msk [vmem:[#allocation6 + $0x8] sm:$0xf] %vm3795, %v3793
      %3799 = vst.msk [vmem:[#allocation6 + $0xc] sm:$0xf] %vm3795, %v3794
      %v3800 = vld [vmem:[%s5] sm:$0xf]
      %v3801 = vld [vmem:[%s5 + $0x4] sm:$0xf]
      %v3802 = vld [vmem:[%s5 + $0x8] sm:$0xf]
      %v3803 = vld [vmem:[%s5 + $0xc] sm:$0xf]
      %v3804 = vld [vmem:[%s5 + $0x10] sm:$0xf]
      %v3805 = vld [vmem:[%s5 + $0x14] sm:$0xf]
      %v3806 = vld [vmem:[%s5 + $0x18] sm:$0xf]
      %v3807 = vld [vmem:[%s5 + $0x1c] sm:$0xf]
      %v3808 = vld [vmem:[#allocation6] sm:$0xff]
      %v3809 = vld [vmem:[#allocation6 + $0x8] sm:$0xff]
      %v3810 = vpack.c.bf16 %v3809, %v3808
      %v3819 = vunpack.c.l.b16 %v3800
      %v3820 = vunpack.c.l.b16 %v3801
      %v3821 = vunpack.c.l.b16 %v3802
      %v3822 = vunpack.c.l.b16 %v3803
      %v3823 = vunpack.c.l.b16 %v3804
      %v3824 = vunpack.c.l.b16 %v3805
      %v3825 = vunpack.c.l.b16 %v3806
      %v3826 = vunpack.c.l.b16 %v3807
      %v3827 = vpack.c.b16 %v3820, %v3819
      %v3828 = vpack.c.b16 %v3822, %v3821
      %v3829 = vpack.c.b16 %v3824, %v3823
      %v3830 = vpack.c.b16 %v3826, %v3825
      %v3832 = vsel %vm2615, %v3827, 0
      %v3835 = vsel %vm2615, %v3828, 0
      %v3838 = vsel %vm2615, %v3829, 0
      %v3841 = vsel %vm2615, %v3830, 0
      %3843 = vmatprep.subr.bf16.mxu0 0
      %3844 = vmatpush1.bf16.msra.mxu0 0
      %3845 = vmatprep.subr.bf16.mxu0 0
      %3846 = vmatpush1.bf16.msra.mxu0 0
      %3847 = vmatprep.subr.bf16.mxu0 0
      %3848 = vmatpush1.bf16.msra.mxu0 0
      %3849 = vmatprep.subr.bf16.mxu0 0
      %3850 = vmatpush1.bf16.msra.mxu0 0
      %3851 = vmatprep.subr.bf16.mxu0 0
      %3852 = vmatpush1.bf16.msra.mxu0 0
      %3853 = vmatprep.subr.bf16.mxu0 0
      %3854 = vmatpush1.bf16.msra.mxu0 0
      %3855 = vmatprep.subr.bf16.mxu0 0
      %3856 = vmatpush1.bf16.msra.mxu0 0
      %3857 = vmatprep.subr.bf16.mxu0 0
      %3858 = vmatpush1.bf16.msra.mxu0 %v3810
      %3859 = vmatprep.subr.bf16.mxu0 0
      %3860 = vmatpush2.bf16.msra.mxu0 0
      %3861 = vmatprep.subr.bf16.mxu0 0
      %3862 = vmatpush2.bf16.msra.mxu0 0
      %3863 = vmatprep.subr.bf16.mxu0 0
      %3864 = vmatpush2.bf16.msra.mxu0 0
      %3865 = vmatprep.subr.bf16.mxu0 0
      %3866 = vmatpush2.bf16.msra.mxu0 0
      %3867 = vmatprep.subr.bf16.mxu0 0
      %3868 = vmatpush2.bf16.msra.mxu0 0
      %3869 = vmatprep.subr.bf16.mxu0 0
      %3870 = vmatpush2.bf16.msra.mxu0 0
      %3871 = vmatprep.subr.bf16.mxu0 0
      %3872 = vmatpush2.bf16.msra.mxu0 0
      %3873 = vmatprep.subr.bf16.mxu0 0
      %3874 = vmatpush2.bf16.msra.mxu0 0
      %3875 = vmatprep.mubr.bf16.mxu0 0
      %3876 = vmatmul.mubr.bf16.gmra.mxu0 %v3832
      %v3877 = vpop.f32.mrf.mxu0
      %v3878 = vadd.f32 0.0, %v3877
      %v3879 = vpop.f32.mrf.mxu0
      %v3880 = vpop.f32.mrf.mxu0
      %v3881 = vadd.f32 0.0, %v3880
      %v3882 = vpop.f32.mrf.mxu0
      %3883 = vmatprep.mubr.bf16.mxu0 0
      %3884 = vmatmul.mubr.bf16.gmra.mxu0 %v3835
      %v3885 = vpop.f32.mrf.mxu0
      %v3886 = vadd.f32 0.0, %v3885
      %v3887 = vpop.f32.mrf.mxu0
      %v3888 = vpop.f32.mrf.mxu0
      %v3889 = vadd.f32 0.0, %v3888
      %v3890 = vpop.f32.mrf.mxu0
      %3891 = vmatprep.mubr.bf16.mxu0 0
      %3892 = vmatmul.mubr.bf16.gmra.mxu0 %v3838
      %v3893 = vpop.f32.mrf.mxu0
      %v3894 = vadd.f32 0.0, %v3893
      %v3895 = vpop.f32.mrf.mxu0
      %v3896 = vpop.f32.mrf.mxu0
      %v3897 = vadd.f32 0.0, %v3896
      %v3898 = vpop.f32.mrf.mxu0
      %3899 = vmatprep.mubr.bf16.mxu0 0
      %3900 = vmatmul.mubr.bf16.gmra.mxu0 %v3841
      %v3901 = vpop.f32.mrf.mxu0
      %v3902 = vadd.f32 0.0, %v3901
      %v3903 = vpop.f32.mrf.mxu0
      %v3904 = vpop.f32.mrf.mxu0
      %v3905 = vadd.f32 0.0, %v3904
      %v3906 = vpop.f32.mrf.mxu0
      %3907 = vdwg.mxu0
      %3908 = vst.msk [vmem:[#allocation7] sm:$0xff] %vm3743, 0.0
      %vm3909 = vcmask 254976
      %3910 = vst.msk [vmem:[#allocation7 + $0x8] sm:$0x3] %vm3909, 0.0
      %s3911 = scalar_lea.vmem [#allocation7], 144
      %3912 = vst.msk [vmem:[%s3911] sm:$0xff] %vm3743, 0.0
      %3913 = vst.msk [vmem:[%s3911 + $0x8] sm:$0x3] %vm3909, 0.0
      %vm3914 = vcmask 253952
      %3915 = vst.msk [vmem:[#allocation7] sm:$0x1] %vm3914, 0.0
      %3916 = vst.msk [vmem:[#allocation7 + $0x10] sm:$0x1] %vm3914, 0.0
      %3917 = vst.msk [vmem:[#allocation7 + $0x20] sm:$0x1] %vm3914, 0.0
      %3918 = vst.msk [vmem:[#allocation7 + $0x30] sm:$0x1] %vm3914, 0.0
      %3919 = vst.msk [vmem:[#allocation7 + $0x40] sm:$0x1] %vm3914, 0.0
      %3920 = vst.msk [vmem:[#allocation7 + $0x50] sm:$0x1] %vm3914, 0.0
      %3921 = vst.msk [vmem:[#allocation7 + $0x60] sm:$0x1] %vm3914, 0.0
      %3922 = vst.msk [vmem:[#allocation7 + $0x70] sm:$0x1] %vm3914, 0.0
      %3923 = vst.msk [vmem:[#allocation7 + $0x80] sm:$0x1] %vm3914, 0.0
      %3924 = vst.msk [vmem:[#allocation7 + $0x90] sm:$0x1] %vm3914, 0.0
      %3925 = vst.msk [vmem:[#allocation7 + $0x9] sm:$0x1] %vm3914, 0.0
      %3926 = vst.msk [vmem:[#allocation7 + $0x19] sm:$0x1] %vm3914, 0.0
      %3927 = vst.msk [vmem:[#allocation7 + $0x29] sm:$0x1] %vm3914, 0.0
      %3928 = vst.msk [vmem:[#allocation7 + $0x39] sm:$0x1] %vm3914, 0.0
      %3929 = vst.msk [vmem:[#allocation7 + $0x49] sm:$0x1] %vm3914, 0.0
      %3930 = vst.msk [vmem:[#allocation7 + $0x59] sm:$0x1] %vm3914, 0.0
      %3931 = vst.msk [vmem:[#allocation7 + $0x69] sm:$0x1] %vm3914, 0.0
      %3932 = vst.msk [vmem:[#allocation7 + $0x79] sm:$0x1] %vm3914, 0.0
      %3933 = vst.msk [vmem:[#allocation7 + $0x89] sm:$0x1] %vm3914, 0.0
      %3934 = vst.msk [vmem:[#allocation7 + $0x99] sm:$0x1] %vm3914, 0.0
      %s3935 = scalar_lea.vmem [#allocation7], 16
      %3936 = vst.msk [vmem:[%s3935 + $0x1] sm:$0xff] %vm3743, %v3878
      %3937 = vst.msk [vmem:[%s3935 + $0x11] sm:$0xff] %vm3743, %v3881
      %3938 = vst.msk [vmem:[%s3935 + $0x21] sm:$0xff] %vm3743, %v3886
      %3939 = vst.msk [vmem:[%s3935 + $0x31] sm:$0xff] %vm3743, %v3889
      %3940 = vst.msk [vmem:[%s3935 + $0x41] sm:$0xff] %vm3743, %v3894
      %3941 = vst.msk [vmem:[%s3935 + $0x51] sm:$0xff] %vm3743, %v3897
      %3942 = vst.msk [vmem:[%s3935 + $0x61] sm:$0xff] %vm3743, %v3902
      %3943 = vst.msk [vmem:[%s3935 + $0x71] sm:$0xff] %vm3743, %v3905
      %v3944 = vld [vmem:[#allocation7] sm:$0xff]
      %v3945 = vld [vmem:[#allocation7 + $0x10] sm:$0xff]
      %v3946 = vld [vmem:[#allocation7 + $0x20] sm:$0xff]
      %v3947 = vld [vmem:[#allocation7 + $0x30] sm:$0xff]
      %v3948 = vld [vmem:[#allocation7 + $0x40] sm:$0xff]
      %v3949 = vld [vmem:[#allocation7 + $0x50] sm:$0xff]
      %v3950 = vld [vmem:[#allocation7 + $0x60] sm:$0xff]
      %v3951 = vld [vmem:[#allocation7 + $0x70] sm:$0xff]
      %v3952 = vld [vmem:[#allocation7 + $0x80] sm:$0xff]
      %v3953 = vld [vmem:[#allocation7 + $0x90] sm:$0xff]
      %v3954 = vpack.c.bf16 %v3944, %v3944
      %v3955 = vpack.c.bf16 %v3945, %v3945
      %v3956 = vpack.c.bf16 %v3946, %v3946
      %v3957 = vpack.c.bf16 %v3947, %v3947
      %v3958 = vpack.c.bf16 %v3948, %v3948
      %v3959 = vpack.c.bf16 %v3949, %v3949
      %v3960 = vpack.c.bf16 %v3950, %v3950
      %v3961 = vpack.c.bf16 %v3951, %v3951
      %v3962 = vpack.c.bf16 %v3952, %v3952
      %v3963 = vpack.c.bf16 %v3953, %v3953
      %v3964 = vld [vmem:[%s6] sm:$0xf]
      %v3965 = vld [vmem:[%s6 + $0x4] sm:$0xf]
      %v3966 = vld [vmem:[%s6 + $0x8] sm:$0xf]
      %v3967 = vld [vmem:[%s6 + $0xc] sm:$0xf]
      %s3968 = scalar_lea.vmem %s6, 48
      %v3969 = vld [vmem:[%s3968] sm:$0xf]
      %v3970 = vld [vmem:[%s3968 + $0x4] sm:$0xf]
      %v3971 = vld [vmem:[%s3968 + $0x8] sm:$0xf]
      %v3972 = vld [vmem:[%s3968 + $0xc] sm:$0xf]
      %v3981 = vunpack.c.l.b16 %v3955
      %v3982 = vunpack.c.l.b16 %v3956
      %v3983 = vunpack.c.l.b16 %v3957
      %v3984 = vunpack.c.l.b16 %v3958
      %v3985 = vunpack.c.l.b16 %v3959
      %v3986 = vunpack.c.l.b16 %v3960
      %v3987 = vunpack.c.l.b16 %v3961
      %v3988 = vunpack.c.l.b16 %v3962
      %v3989 = vpack.c.b16 %v3982, %v3981
      %v3990 = vpack.c.b16 %v3984, %v3983
      %v3991 = vpack.c.b16 %v3986, %v3985
      %v3992 = vpack.c.b16 %v3988, %v3987
      %v3997 = vunpack.c.l.b16 %v3969
      %v3998 = vunpack.c.l.b16 %v3970
      %v3999 = vunpack.c.l.b16 %v3971
      %v4000 = vunpack.c.l.b16 %v3972
      %v4001 = vpack.c.b16 %v3998, %v3997
      %v4002 = vpack.c.b16 %v4000, %v3999
      %v4006 = vsel %vm3743, %v3989, 0
      %v4009 = vsel %vm3743, %v3990, 0
      %v4012 = vsel %vm3743, %v3991, 0
      %v4015 = vsel %vm3743, %v3992, 0
      %4017 = vmatprep.subr.bf16.mxu0 0
      %4018 = vmatpush1.bf16.msra.mxu0 0
      %4019 = vmatprep.subr.bf16.mxu0 0
      %4020 = vmatpush1.bf16.msra.mxu0 0
      %4021 = vmatprep.subr.bf16.mxu0 0
      %4022 = vmatpush1.bf16.msra.mxu0 0
      %4023 = vmatprep.subr.bf16.mxu0 0
      %4024 = vmatpush1.bf16.msra.mxu0 0
      %4025 = vmatprep.subr.bf16.mxu0 0
      %4026 = vmatpush1.bf16.msra.mxu0 0
      %4027 = vmatprep.subr.bf16.mxu0 0
      %4028 = vmatpush1.bf16.msra.mxu0 0
      %4029 = vmatprep.subr.bf16.mxu0 0
      %4030 = vmatpush1.bf16.msra.mxu0 %v4002
      %4031 = vmatprep.subr.bf16.mxu0 0
      %4032 = vmatpush1.bf16.msra.mxu0 %v4001
      %4033 = vmatprep.subr.bf16.mxu0 0
      %4034 = vmatpush2.bf16.msra.mxu0 0
      %4035 = vmatprep.subr.bf16.mxu0 0
      %4036 = vmatpush2.bf16.msra.mxu0 0
      %4037 = vmatprep.subr.bf16.mxu0 0
      %4038 = vmatpush2.bf16.msra.mxu0 0
      %4039 = vmatprep.subr.bf16.mxu0 0
      %4040 = vmatpush2.bf16.msra.mxu0 0
      %4041 = vmatprep.subr.bf16.mxu0 0
      %4042 = vmatpush2.bf16.msra.mxu0 0
      %4043 = vmatprep.subr.bf16.mxu0 0
      %4044 = vmatpush2.bf16.msra.mxu0 0
      %4045 = vmatprep.subr.bf16.mxu0 0
      %4046 = vmatpush2.bf16.msra.mxu0 0
      %4047 = vmatprep.subr.bf16.mxu0 0
      %4048 = vmatpush2.bf16.msra.mxu0 0
      %4049 = vmatprep.mubr.bf16.mxu0 0
      %4050 = vmatmul.mubr.bf16.gmra.mxu0 %v4006
      %v4051 = vpop.f32.mrf.mxu0
      %v4052 = vadd.f32 0.0, %v4051
      %v4053 = vpop.f32.mrf.mxu0
      %v4054 = vpop.f32.mrf.mxu0
      %v4055 = vadd.f32 0.0, %v4054
      %v4056 = vpop.f32.mrf.mxu0
      %4057 = vmatprep.mubr.bf16.mxu0 0
      %4058 = vmatmul.mubr.bf16.gmra.mxu0 %v4009
      %v4059 = vpop.f32.mrf.mxu0
      %v4060 = vadd.f32 0.0, %v4059
      %v4061 = vpop.f32.mrf.mxu0
      %v4062 = vpop.f32.mrf.mxu0
      %v4063 = vadd.f32 0.0, %v4062
      %v4064 = vpop.f32.mrf.mxu0
      %4065 = vmatprep.mubr.bf16.mxu0 0
      %4066 = vmatmul.mubr.bf16.gmra.mxu0 %v4012
      %v4067 = vpop.f32.mrf.mxu0
      %v4068 = vadd.f32 0.0, %v4067
      %v4069 = vpop.f32.mrf.mxu0
      %v4070 = vpop.f32.mrf.mxu0
      %v4071 = vadd.f32 0.0, %v4070
      %v4072 = vpop.f32.mrf.mxu0
      %4073 = vmatprep.mubr.bf16.mxu0 0
      %4074 = vmatmul.mubr.bf16.gmra.mxu0 %v4015
      %v4075 = vpop.f32.mrf.mxu0
      %v4076 = vadd.f32 0.0, %v4075
      %v4077 = vpop.f32.mrf.mxu0
      %v4078 = vpop.f32.mrf.mxu0
      %v4079 = vadd.f32 0.0, %v4078
      %v4080 = vpop.f32.mrf.mxu0
      %4081 = vdwg.mxu0
      %v4083 = vunpack.c.l.b16 %v3954
      %v4084 = vpack.c.b16 %v3981, %v4083
      %v4085 = vpack.c.b16 %v3983, %v3982
      %v4086 = vpack.c.b16 %v3985, %v3984
      %v4087 = vpack.c.b16 %v3987, %v3986
      %v4092 = vunpack.c.l.b16 %v3964
      %v4093 = vunpack.c.l.b16 %v3965
      %v4094 = vunpack.c.l.b16 %v3966
      %v4095 = vunpack.c.l.b16 %v3967
      %v4096 = vpack.c.b16 %v4093, %v4092
      %v4097 = vpack.c.b16 %v4095, %v4094
      %v4101 = vsel %vm3743, %v4084, 0
      %v4104 = vsel %vm3743, %v4085, 0
      %v4107 = vsel %vm3743, %v4086, 0
      %v4110 = vsel %vm3743, %v4087, 0
      %4112 = vmatprep.subr.bf16.mxu0 0
      %4113 = vmatpush1.bf16.msra.mxu0 0
      %4114 = vmatprep.subr.bf16.mxu0 0
      %4115 = vmatpush1.bf16.msra.mxu0 0
      %4116 = vmatprep.subr.bf16.mxu0 0
      %4117 = vmatpush1.bf16.msra.mxu0 0
      %4118 = vmatprep.subr.bf16.mxu0 0
      %4119 = vmatpush1.bf16.msra.mxu0 0
      %4120 = vmatprep.subr.bf16.mxu0 0
      %4121 = vmatpush1.bf16.msra.mxu0 0
      %4122 = vmatprep.subr.bf16.mxu0 0
      %4123 = vmatpush1.bf16.msra.mxu0 0
      %4124 = vmatprep.subr.bf16.mxu0 0
      %4125 = vmatpush1.bf16.msra.mxu0 %v4097
      %4126 = vmatprep.subr.bf16.mxu0 0
      %4127 = vmatpush1.bf16.msra.mxu0 %v4096
      %4128 = vmatprep.subr.bf16.mxu0 0
      %4129 = vmatpush2.bf16.msra.mxu0 0
      %4130 = vmatprep.subr.bf16.mxu0 0
      %4131 = vmatpush2.bf16.msra.mxu0 0
      %4132 = vmatprep.subr.bf16.mxu0 0
      %4133 = vmatpush2.bf16.msra.mxu0 0
      %4134 = vmatprep.subr.bf16.mxu0 0
      %4135 = vmatpush2.bf16.msra.mxu0 0
      %4136 = vmatprep.subr.bf16.mxu0 0
      %4137 = vmatpush2.bf16.msra.mxu0 0
      %4138 = vmatprep.subr.bf16.mxu0 0
      %4139 = vmatpush2.bf16.msra.mxu0 0
      %4140 = vmatprep.subr.bf16.mxu0 0
      %4141 = vmatpush2.bf16.msra.mxu0 0
      %4142 = vmatprep.subr.bf16.mxu0 0
      %4143 = vmatpush2.bf16.msra.mxu0 0
      %4144 = vmatprep.mubr.bf16.mxu0 0
      %4145 = vmatmul.mubr.bf16.gmra.mxu0 %v4101
      %v4146 = vpop.f32.mrf.mxu0
      %v4147 = vadd.f32 %v4052, %v4146
      %v4148 = vpop.f32.mrf.mxu0
      %v4149 = vpop.f32.mrf.mxu0
      %v4150 = vadd.f32 %v4055, %v4149
      %v4151 = vpop.f32.mrf.mxu0
      %4152 = vmatprep.mubr.bf16.mxu0 0
      %4153 = vmatmul.mubr.bf16.gmra.mxu0 %v4104
      %v4154 = vpop.f32.mrf.mxu0
      %v4155 = vadd.f32 %v4060, %v4154
      %v4156 = vpop.f32.mrf.mxu0
      %v4157 = vpop.f32.mrf.mxu0
      %v4158 = vadd.f32 %v4063, %v4157
      %v4159 = vpop.f32.mrf.mxu0
      %4160 = vmatprep.mubr.bf16.mxu0 0
      %4161 = vmatmul.mubr.bf16.gmra.mxu0 %v4107
      %v4162 = vpop.f32.mrf.mxu0
      %v4163 = vadd.f32 %v4068, %v4162
      %v4164 = vpop.f32.mrf.mxu0
      %v4165 = vpop.f32.mrf.mxu0
      %v4166 = vadd.f32 %v4071, %v4165
      %v4167 = vpop.f32.mrf.mxu0
      %4168 = vmatprep.mubr.bf16.mxu0 0
      %4169 = vmatmul.mubr.bf16.gmra.mxu0 %v4110
      %v4170 = vpop.f32.mrf.mxu0
      %v4171 = vadd.f32 %v4076, %v4170
      %v4172 = vpop.f32.mrf.mxu0
      %v4173 = vpop.f32.mrf.mxu0
      %v4174 = vadd.f32 %v4079, %v4173
      %v4175 = vpop.f32.mrf.mxu0
      %4176 = vdwg.mxu0
      %s4177 = scalar_lea.vmem %s6, 96
      %v4178 = vld [vmem:[%s4177] sm:$0xf]
      %v4179 = vld [vmem:[%s4177 + $0x4] sm:$0xf]
      %v4180 = vld [vmem:[%s4177 + $0x8] sm:$0xf]
      %v4181 = vld [vmem:[%s4177 + $0xc] sm:$0xf]
      %v4183 = vunpack.c.l.b16 %v3963
      %v4184 = vpack.c.b16 %v4183, %v3988
      %v4189 = vunpack.c.l.b16 %v4178
      %v4190 = vunpack.c.l.b16 %v4179
      %v4191 = vunpack.c.l.b16 %v4180
      %v4192 = vunpack.c.l.b16 %v4181
      %v4193 = vpack.c.b16 %v4190, %v4189
      %v4194 = vpack.c.b16 %v4192, %v4191
      %v4198 = vsel %vm3743, %v4184, 0
      %4200 = vmatprep.subr.bf16.mxu0 0
      %4201 = vmatpush1.bf16.msra.mxu0 0
      %4202 = vmatprep.subr.bf16.mxu0 0
      %4203 = vmatpush1.bf16.msra.mxu0 0
      %4204 = vmatprep.subr.bf16.mxu0 0
      %4205 = vmatpush1.bf16.msra.mxu0 0
      %4206 = vmatprep.subr.bf16.mxu0 0
      %4207 = vmatpush1.bf16.msra.mxu0 0
      %4208 = vmatprep.subr.bf16.mxu0 0
      %4209 = vmatpush1.bf16.msra.mxu0 0
      %4210 = vmatprep.subr.bf16.mxu0 0
      %4211 = vmatpush1.bf16.msra.mxu0 0
      %4212 = vmatprep.subr.bf16.mxu0 0
      %4213 = vmatpush1.bf16.msra.mxu0 %v4194
      %4214 = vmatprep.subr.bf16.mxu0 0
      %4215 = vmatpush1.bf16.msra.mxu0 %v4193
      %4216 = vmatprep.subr.bf16.mxu0 0
      %4217 = vmatpush2.bf16.msra.mxu0 0
      %4218 = vmatprep.subr.bf16.mxu0 0
      %4219 = vmatpush2.bf16.msra.mxu0 0
      %4220 = vmatprep.subr.bf16.mxu0 0
      %4221 = vmatpush2.bf16.msra.mxu0 0
      %4222 = vmatprep.subr.bf16.mxu0 0
      %4223 = vmatpush2.bf16.msra.mxu0 0
      %4224 = vmatprep.subr.bf16.mxu0 0
      %4225 = vmatpush2.bf16.msra.mxu0 0
      %4226 = vmatprep.subr.bf16.mxu0 0
      %4227 = vmatpush2.bf16.msra.mxu0 0
      %4228 = vmatprep.subr.bf16.mxu0 0
      %4229 = vmatpush2.bf16.msra.mxu0 0
      %4230 = vmatprep.subr.bf16.mxu0 0
      %4231 = vmatpush2.bf16.msra.mxu0 0
      %4232 = vmatprep.mubr.bf16.mxu0 0
      %4233 = vmatmul.mubr.bf16.gmra.mxu0 %v4104
      %v4234 = vpop.f32.mrf.mxu0
      %v4235 = vadd.f32 0.0, %v4234
      %v4236 = vpop.f32.mrf.mxu0
      %v4237 = vpop.f32.mrf.mxu0
      %v4238 = vadd.f32 0.0, %v4237
      %v4239 = vpop.f32.mrf.mxu0
      %4240 = vmatprep.mubr.bf16.mxu0 0
      %4241 = vmatmul.mubr.bf16.gmra.mxu0 %v4107
      %v4242 = vpop.f32.mrf.mxu0
      %v4243 = vadd.f32 0.0, %v4242
      %v4244 = vpop.f32.mrf.mxu0
      %v4245 = vpop.f32.mrf.mxu0
      %v4246 = vadd.f32 0.0, %v4245
      %v4247 = vpop.f32.mrf.mxu0
      %4248 = vmatprep.mubr.bf16.mxu0 0
      %4249 = vmatmul.mubr.bf16.gmra.mxu0 %v4110
      %v4250 = vpop.f32.mrf.mxu0
      %v4251 = vadd.f32 0.0, %v4250
      %v4252 = vpop.f32.mrf.mxu0
      %v4253 = vpop.f32.mrf.mxu0
      %v4254 = vadd.f32 0.0, %v4253
      %v4255 = vpop.f32.mrf.mxu0
      %4256 = vmatprep.mubr.bf16.mxu0 0
      %4257 = vmatmul.mubr.bf16.gmra.mxu0 %v4198
      %v4258 = vpop.f32.mrf.mxu0
      %v4259 = vadd.f32 0.0, %v4258
      %v4260 = vpop.f32.mrf.mxu0
      %v4261 = vpop.f32.mrf.mxu0
      %v4262 = vadd.f32 0.0, %v4261
      %v4263 = vpop.f32.mrf.mxu0
      %4264 = vdwg.mxu0
      %v4265 = vadd.f32 %v4147, %v4235
      %v4266 = vadd.f32 %v4150, %v4238
      %v4267 = vadd.f32 %v4155, %v4243
      %v4268 = vadd.f32 %v4158, %v4246
      %v4269 = vadd.f32 %v4163, %v4251
      %v4270 = vadd.f32 %v4166, %v4254
      %v4271 = vadd.f32 %v4171, %v4259
      %v4272 = vadd.f32 %v4174, %v4262
      %v4273 = vld [vmem:[#allocation7 + $0x1] sm:$0xff]
      %v4274 = vld [vmem:[#allocation7 + $0x11] sm:$0xff]
      %v4275 = vld [vmem:[#allocation7 + $0x21] sm:$0xff]
      %v4276 = vld [vmem:[#allocation7 + $0x31] sm:$0xff]
      %v4277 = vld [vmem:[#allocation7 + $0x41] sm:$0xff]
      %v4278 = vld [vmem:[#allocation7 + $0x51] sm:$0xff]
      %v4279 = vld [vmem:[#allocation7 + $0x61] sm:$0xff]
      %v4280 = vld [vmem:[#allocation7 + $0x71] sm:$0xff]
      %v4281 = vld [vmem:[#allocation7 + $0x81] sm:$0xff]
      %v4282 = vld [vmem:[#allocation7 + $0x91] sm:$0xff]
      %v4283 = vpack.c.bf16 %v4273, %v4273
      %v4284 = vpack.c.bf16 %v4274, %v4274
      %v4285 = vpack.c.bf16 %v4275, %v4275
      %v4286 = vpack.c.bf16 %v4276, %v4276
      %v4287 = vpack.c.bf16 %v4277, %v4277
      %v4288 = vpack.c.bf16 %v4278, %v4278
      %v4289 = vpack.c.bf16 %v4279, %v4279
      %v4290 = vpack.c.bf16 %v4280, %v4280
      %v4291 = vpack.c.bf16 %v4281, %v4281
      %v4292 = vpack.c.bf16 %v4282, %v4282
      %s4293 = scalar_lea.vmem %s6, 16
      %v4294 = vld [vmem:[%s4293] sm:$0xf]
      %v4295 = vld [vmem:[%s4293 + $0x4] sm:$0xf]
      %v4296 = vld [vmem:[%s4293 + $0x8] sm:$0xf]
      %v4297 = vld [vmem:[%s4293 + $0xc] sm:$0xf]
      %v4306 = vunpack.c.l.b16 %v4283
      %v4307 = vunpack.c.l.b16 %v4284
      %v4308 = vunpack.c.l.b16 %v4285
      %v4309 = vunpack.c.l.b16 %v4286
      %v4310 = vunpack.c.l.b16 %v4287
      %v4311 = vunpack.c.l.b16 %v4288
      %v4312 = vunpack.c.l.b16 %v4289
      %v4313 = vunpack.c.l.b16 %v4290
      %v4314 = vpack.c.b16 %v4307, %v4306
      %v4315 = vpack.c.b16 %v4309, %v4308
      %v4316 = vpack.c.b16 %v4311, %v4310
      %v4317 = vpack.c.b16 %v4313, %v4312
      %v4322 = vunpack.c.l.b16 %v4294
      %v4323 = vunpack.c.l.b16 %v4295
      %v4324 = vunpack.c.l.b16 %v4296
      %v4325 = vunpack.c.l.b16 %v4297
      %v4326 = vpack.c.b16 %v4323, %v4322
      %v4327 = vpack.c.b16 %v4325, %v4324
      %v4331 = vsel %vm3743, %v4314, 0
      %v4334 = vsel %vm3743, %v4315, 0
      %v4337 = vsel %vm3743, %v4316, 0
      %v4340 = vsel %vm3743, %v4317, 0
      %4342 = vmatprep.subr.bf16.mxu0 0
      %4343 = vmatpush1.bf16.msra.mxu0 0
      %4344 = vmatprep.subr.bf16.mxu0 0
      %4345 = vmatpush1.bf16.msra.mxu0 0
      %4346 = vmatprep.subr.bf16.mxu0 0
      %4347 = vmatpush1.bf16.msra.mxu0 0
      %4348 = vmatprep.subr.bf16.mxu0 0
      %4349 = vmatpush1.bf16.msra.mxu0 0
      %4350 = vmatprep.subr.bf16.mxu0 0
      %4351 = vmatpush1.bf16.msra.mxu0 0
      %4352 = vmatprep.subr.bf16.mxu0 0
      %4353 = vmatpush1.bf16.msra.mxu0 0
      %4354 = vmatprep.subr.bf16.mxu0 0
      %4355 = vmatpush1.bf16.msra.mxu0 %v4327
      %4356 = vmatprep.subr.bf16.mxu0 0
      %4357 = vmatpush1.bf16.msra.mxu0 %v4326
      %4358 = vmatprep.subr.bf16.mxu0 0
      %4359 = vmatpush2.bf16.msra.mxu0 0
      %4360 = vmatprep.subr.bf16.mxu0 0
      %4361 = vmatpush2.bf16.msra.mxu0 0
      %4362 = vmatprep.subr.bf16.mxu0 0
      %4363 = vmatpush2.bf16.msra.mxu0 0
      %4364 = vmatprep.subr.bf16.mxu0 0
      %4365 = vmatpush2.bf16.msra.mxu0 0
      %4366 = vmatprep.subr.bf16.mxu0 0
      %4367 = vmatpush2.bf16.msra.mxu0 0
      %4368 = vmatprep.subr.bf16.mxu0 0
      %4369 = vmatpush2.bf16.msra.mxu0 0
      %4370 = vmatprep.subr.bf16.mxu0 0
      %4371 = vmatpush2.bf16.msra.mxu0 0
      %4372 = vmatprep.subr.bf16.mxu0 0
      %4373 = vmatpush2.bf16.msra.mxu0 0
      %4374 = vmatprep.mubr.bf16.mxu0 0
      %4375 = vmatmul.mubr.bf16.gmra.mxu0 %v4331
      %v4376 = vpop.f32.mrf.mxu0
      %v4377 = vadd.f32 0.0, %v4376
      %v4378 = vpop.f32.mrf.mxu0
      %v4379 = vpop.f32.mrf.mxu0
      %v4380 = vadd.f32 0.0, %v4379
      %v4381 = vpop.f32.mrf.mxu0
      %4382 = vmatprep.mubr.bf16.mxu0 0
      %4383 = vmatmul.mubr.bf16.gmra.mxu0 %v4334
      %v4384 = vpop.f32.mrf.mxu0
      %v4385 = vadd.f32 0.0, %v4384
      %v4386 = vpop.f32.mrf.mxu0
      %v4387 = vpop.f32.mrf.mxu0
      %v4388 = vadd.f32 0.0, %v4387
      %v4389 = vpop.f32.mrf.mxu0
      %4390 = vmatprep.mubr.bf16.mxu0 0
      %4391 = vmatmul.mubr.bf16.gmra.mxu0 %v4337
      %v4392 = vpop.f32.mrf.mxu0
      %v4393 = vadd.f32 0.0, %v4392
      %v4394 = vpop.f32.mrf.mxu0
      %v4395 = vpop.f32.mrf.mxu0
      %v4396 = vadd.f32 0.0, %v4395
      %v4397 = vpop.f32.mrf.mxu0
      %4398 = vmatprep.mubr.bf16.mxu0 0
      %4399 = vmatmul.mubr.bf16.gmra.mxu0 %v4340
      %v4400 = vpop.f32.mrf.mxu0
      %v4401 = vadd.f32 0.0, %v4400
      %v4402 = vpop.f32.mrf.mxu0
      %v4403 = vpop.f32.mrf.mxu0
      %v4404 = vadd.f32 0.0, %v4403
      %v4405 = vpop.f32.mrf.mxu0
      %4406 = vdwg.mxu0
      %v4407 = vadd.f32 %v4265, %v4377
      %v4408 = vadd.f32 %v4266, %v4380
      %v4409 = vadd.f32 %v4267, %v4385
      %v4410 = vadd.f32 %v4268, %v4388
      %v4411 = vadd.f32 %v4269, %v4393
      %v4412 = vadd.f32 %v4270, %v4396
      %v4413 = vadd.f32 %v4271, %v4401
      %v4414 = vadd.f32 %v4272, %v4404
      %s4415 = scalar_lea.vmem %s6, 64
      %v4416 = vld [vmem:[%s4415] sm:$0xf]
      %v4417 = vld [vmem:[%s4415 + $0x4] sm:$0xf]
      %v4418 = vld [vmem:[%s4415 + $0x8] sm:$0xf]
      %v4419 = vld [vmem:[%s4415 + $0xc] sm:$0xf]
      %v4421 = vunpack.c.l.b16 %v4291
      %v4422 = vpack.c.b16 %v4308, %v4307
      %v4423 = vpack.c.b16 %v4310, %v4309
      %v4424 = vpack.c.b16 %v4312, %v4311
      %v4425 = vpack.c.b16 %v4421, %v4313
      %v4430 = vunpack.c.l.b16 %v4416
      %v4431 = vunpack.c.l.b16 %v4417
      %v4432 = vunpack.c.l.b16 %v4418
      %v4433 = vunpack.c.l.b16 %v4419
      %v4434 = vpack.c.b16 %v4431, %v4430
      %v4435 = vpack.c.b16 %v4433, %v4432
      %v4439 = vsel %vm3743, %v4422, 0
      %v4442 = vsel %vm3743, %v4423, 0
      %v4445 = vsel %vm3743, %v4424, 0
      %v4448 = vsel %vm3743, %v4425, 0
      %4450 = vmatprep.subr.bf16.mxu0 0
      %4451 = vmatpush1.bf16.msra.mxu0 0
      %4452 = vmatprep.subr.bf16.mxu0 0
      %4453 = vmatpush1.bf16.msra.mxu0 0
      %4454 = vmatprep.subr.bf16.mxu0 0
      %4455 = vmatpush1.bf16.msra.mxu0 0
      %4456 = vmatprep.subr.bf16.mxu0 0
      %4457 = vmatpush1.bf16.msra.mxu0 0
      %4458 = vmatprep.subr.bf16.mxu0 0
      %4459 = vmatpush1.bf16.msra.mxu0 0
      %4460 = vmatprep.subr.bf16.mxu0 0
      %4461 = vmatpush1.bf16.msra.mxu0 0
      %4462 = vmatprep.subr.bf16.mxu0 0
      %4463 = vmatpush1.bf16.msra.mxu0 %v4435
      %4464 = vmatprep.subr.bf16.mxu0 0
      %4465 = vmatpush1.bf16.msra.mxu0 %v4434
      %4466 = vmatprep.subr.bf16.mxu0 0
      %4467 = vmatpush2.bf16.msra.mxu0 0
      %4468 = vmatprep.subr.bf16.mxu0 0
      %4469 = vmatpush2.bf16.msra.mxu0 0
      %4470 = vmatprep.subr.bf16.mxu0 0
      %4471 = vmatpush2.bf16.msra.mxu0 0
      %4472 = vmatprep.subr.bf16.mxu0 0
      %4473 = vmatpush2.bf16.msra.mxu0 0
      %4474 = vmatprep.subr.bf16.mxu0 0
      %4475 = vmatpush2.bf16.msra.mxu0 0
      %4476 = vmatprep.subr.bf16.mxu0 0
      %4477 = vmatpush2.bf16.msra.mxu0 0
      %4478 = vmatprep.subr.bf16.mxu0 0
      %4479 = vmatpush2.bf16.msra.mxu0 0
      %4480 = vmatprep.subr.bf16.mxu0 0
      %4481 = vmatpush2.bf16.msra.mxu0 0
      %4482 = vmatprep.mubr.bf16.mxu0 0
      %4483 = vmatmul.mubr.bf16.gmra.mxu0 %v4439
      %v4484 = vpop.f32.mrf.mxu0
      %v4485 = vadd.f32 0.0, %v4484
      %v4486 = vpop.f32.mrf.mxu0
      %v4487 = vpop.f32.mrf.mxu0
      %v4488 = vadd.f32 0.0, %v4487
      %v4489 = vpop.f32.mrf.mxu0
      %4490 = vmatprep.mubr.bf16.mxu0 0
      %4491 = vmatmul.mubr.bf16.gmra.mxu0 %v4442
      %v4492 = vpop.f32.mrf.mxu0
      %v4493 = vadd.f32 0.0, %v4492
      %v4494 = vpop.f32.mrf.mxu0
      %v4495 = vpop.f32.mrf.mxu0
      %v4496 = vadd.f32 0.0, %v4495
      %v4497 = vpop.f32.mrf.mxu0
      %4498 = vmatprep.mubr.bf16.mxu0 0
      %4499 = vmatmul.mubr.bf16.gmra.mxu0 %v4445
      %v4500 = vpop.f32.mrf.mxu0
      %v4501 = vadd.f32 0.0, %v4500
      %v4502 = vpop.f32.mrf.mxu0
      %v4503 = vpop.f32.mrf.mxu0
      %v4504 = vadd.f32 0.0, %v4503
      %v4505 = vpop.f32.mrf.mxu0
      %4506 = vmatprep.mubr.bf16.mxu0 0
      %4507 = vmatmul.mubr.bf16.gmra.mxu0 %v4448
      %v4508 = vpop.f32.mrf.mxu0
      %v4509 = vadd.f32 0.0, %v4508
      %v4510 = vpop.f32.mrf.mxu0
      %v4511 = vpop.f32.mrf.mxu0
      %v4512 = vadd.f32 0.0, %v4511
      %v4513 = vpop.f32.mrf.mxu0
      %4514 = vdwg.mxu0
      %v4515 = vadd.f32 %v4407, %v4485
      %v4516 = vadd.f32 %v4408, %v4488
      %v4517 = vadd.f32 %v4409, %v4493
      %v4518 = vadd.f32 %v4410, %v4496
      %v4519 = vadd.f32 %v4411, %v4501
      %v4520 = vadd.f32 %v4412, %v4504
      %v4521 = vadd.f32 %v4413, %v4509
      %v4522 = vadd.f32 %v4414, %v4512
      %s4523 = scalar_lea.vmem %s6, 112
      %v4524 = vld [vmem:[%s4523] sm:$0xf]
      %v4525 = vld [vmem:[%s4523 + $0x4] sm:$0xf]
      %v4526 = vld [vmem:[%s4523 + $0x8] sm:$0xf]
      %v4527 = vld [vmem:[%s4523 + $0xc] sm:$0xf]
      %v4529 = vunpack.c.l.b16 %v4292
      %v4530 = vpack.c.b16 %v4529, %v4421
      %v4535 = vunpack.c.l.b16 %v4524
      %v4536 = vunpack.c.l.b16 %v4525
      %v4537 = vunpack.c.l.b16 %v4526
      %v4538 = vunpack.c.l.b16 %v4527
      %v4539 = vpack.c.b16 %v4536, %v4535
      %v4540 = vpack.c.b16 %v4538, %v4537
      %v4544 = vsel %vm3743, %v4530, 0
      %4546 = vmatprep.subr.bf16.mxu0 0
      %4547 = vmatpush1.bf16.msra.mxu0 0
      %4548 = vmatprep.subr.bf16.mxu0 0
      %4549 = vmatpush1.bf16.msra.mxu0 0
      %4550 = vmatprep.subr.bf16.mxu0 0
      %4551 = vmatpush1.bf16.msra.mxu0 0
      %4552 = vmatprep.subr.bf16.mxu0 0
      %4553 = vmatpush1.bf16.msra.mxu0 0
      %4554 = vmatprep.subr.bf16.mxu0 0
      %4555 = vmatpush1.bf16.msra.mxu0 0
      %4556 = vmatprep.subr.bf16.mxu0 0
      %4557 = vmatpush1.bf16.msra.mxu0 0
      %4558 = vmatprep.subr.bf16.mxu0 0
      %4559 = vmatpush1.bf16.msra.mxu0 %v4540
      %4560 = vmatprep.subr.bf16.mxu0 0
      %4561 = vmatpush1.bf16.msra.mxu0 %v4539
      %4562 = vmatprep.subr.bf16.mxu0 0
      %4563 = vmatpush2.bf16.msra.mxu0 0
      %4564 = vmatprep.subr.bf16.mxu0 0
      %4565 = vmatpush2.bf16.msra.mxu0 0
      %4566 = vmatprep.subr.bf16.mxu0 0
      %4567 = vmatpush2.bf16.msra.mxu0 0
      %4568 = vmatprep.subr.bf16.mxu0 0
      %4569 = vmatpush2.bf16.msra.mxu0 0
      %4570 = vmatprep.subr.bf16.mxu0 0
      %4571 = vmatpush2.bf16.msra.mxu0 0
      %4572 = vmatprep.subr.bf16.mxu0 0
      %4573 = vmatpush2.bf16.msra.mxu0 0
      %4574 = vmatprep.subr.bf16.mxu0 0
      %4575 = vmatpush2.bf16.msra.mxu0 0
      %4576 = vmatprep.subr.bf16.mxu0 0
      %4577 = vmatpush2.bf16.msra.mxu0 0
      %4578 = vmatprep.mubr.bf16.mxu0 0
      %4579 = vmatmul.mubr.bf16.gmra.mxu0 %v4334
      %v4580 = vpop.f32.mrf.mxu0
      %v4581 = vadd.f32 0.0, %v4580
      %v4582 = vpop.f32.mrf.mxu0
      %v4583 = vpop.f32.mrf.mxu0
      %v4584 = vadd.f32 0.0, %v4583
      %v4585 = vpop.f32.mrf.mxu0
      %4586 = vmatprep.mubr.bf16.mxu0 0
      %4587 = vmatmul.mubr.bf16.gmra.mxu0 %v4337
      %v4588 = vpop.f32.mrf.mxu0
      %v4589 = vadd.f32 0.0, %v4588
      %v4590 = vpop.f32.mrf.mxu0
      %v4591 = vpop.f32.mrf.mxu0
      %v4592 = vadd.f32 0.0, %v4591
      %v4593 = vpop.f32.mrf.mxu0
      %4594 = vmatprep.mubr.bf16.mxu0 0
      %4595 = vmatmul.mubr.bf16.gmra.mxu0 %v4340
      %v4596 = vpop.f32.mrf.mxu0
      %v4597 = vadd.f32 0.0, %v4596
      %v4598 = vpop.f32.mrf.mxu0
      %v4599 = vpop.f32.mrf.mxu0
      %v4600 = vadd.f32 0.0, %v4599
      %v4601 = vpop.f32.mrf.mxu0
      %4602 = vmatprep.mubr.bf16.mxu0 0
      %4603 = vmatmul.mubr.bf16.gmra.mxu0 %v4544
      %v4604 = vpop.f32.mrf.mxu0
      %v4605 = vadd.f32 0.0, %v4604
      %v4606 = vpop.f32.mrf.mxu0
      %v4607 = vpop.f32.mrf.mxu0
      %v4608 = vadd.f32 0.0, %v4607
      %v4609 = vpop.f32.mrf.mxu0
      %4610 = vdwg.mxu0
      %v4611 = vadd.f32 %v4515, %v4581
      %v4612 = vadd.f32 %v4516, %v4584
      %v4613 = vadd.f32 %v4517, %v4589
      %v4614 = vadd.f32 %v4518, %v4592
      %v4615 = vadd.f32 %v4519, %v4597
      %v4616 = vadd.f32 %v4520, %v4600
      %v4617 = vadd.f32 %v4521, %v4605
      %v4618 = vadd.f32 %v4522, %v4608
      %v4619 = vld [vmem:[#allocation7 + $0x2] sm:$0xff]
      %v4620 = vld [vmem:[#allocation7 + $0x12] sm:$0xff]
      %v4621 = vld [vmem:[#allocation7 + $0x22] sm:$0xff]
      %v4622 = vld [vmem:[#allocation7 + $0x32] sm:$0xff]
      %v4623 = vld [vmem:[#allocation7 + $0x42] sm:$0xff]
      %v4624 = vld [vmem:[#allocation7 + $0x52] sm:$0xff]
      %v4625 = vld [vmem:[#allocation7 + $0x62] sm:$0xff]
      %v4626 = vld [vmem:[#allocation7 + $0x72] sm:$0xff]
      %v4627 = vld [vmem:[#allocation7 + $0x82] sm:$0xff]
      %v4628 = vld [vmem:[#allocation7 + $0x92] sm:$0xff]
      %v4629 = vpack.c.bf16 %v4619, %v4619
      %v4630 = vpack.c.bf16 %v4620, %v4620
      %v4631 = vpack.c.bf16 %v4621, %v4621
      %v4632 = vpack.c.bf16 %v4622, %v4622
      %v4633 = vpack.c.bf16 %v4623, %v4623
      %v4634 = vpack.c.bf16 %v4624, %v4624
      %v4635 = vpack.c.bf16 %v4625, %v4625
      %v4636 = vpack.c.bf16 %v4626, %v4626
      %v4637 = vpack.c.bf16 %v4627, %v4627
      %v4638 = vpack.c.bf16 %v4628, %v4628
      %s4639 = scalar_lea.vmem %s6, 32
      %v4640 = vld [vmem:[%s4639] sm:$0xf]
      %v4641 = vld [vmem:[%s4639 + $0x4] sm:$0xf]
      %v4642 = vld [vmem:[%s4639 + $0x8] sm:$0xf]
      %v4643 = vld [vmem:[%s4639 + $0xc] sm:$0xf]
      %v4652 = vunpack.c.l.b16 %v4629
      %v4653 = vunpack.c.l.b16 %v4630
      %v4654 = vunpack.c.l.b16 %v4631
      %v4655 = vunpack.c.l.b16 %v4632
      %v4656 = vunpack.c.l.b16 %v4633
      %v4657 = vunpack.c.l.b16 %v4634
      %v4658 = vunpack.c.l.b16 %v4635
      %v4659 = vunpack.c.l.b16 %v4636
      %v4660 = vpack.c.b16 %v4653, %v4652
      %v4661 = vpack.c.b16 %v4655, %v4654
      %v4662 = vpack.c.b16 %v4657, %v4656
      %v4663 = vpack.c.b16 %v4659, %v4658
      %v4668 = vunpack.c.l.b16 %v4640
      %v4669 = vunpack.c.l.b16 %v4641
      %v4670 = vunpack.c.l.b16 %v4642
      %v4671 = vunpack.c.l.b16 %v4643
      %v4672 = vpack.c.b16 %v4669, %v4668
      %v4673 = vpack.c.b16 %v4671, %v4670
      %v4677 = vsel %vm3743, %v4660, 0
      %v4680 = vsel %vm3743, %v4661, 0
      %v4683 = vsel %vm3743, %v4662, 0
      %v4686 = vsel %vm3743, %v4663, 0
      %4688 = vmatprep.subr.bf16.mxu0 0
      %4689 = vmatpush1.bf16.msra.mxu0 0
      %4690 = vmatprep.subr.bf16.mxu0 0
      %4691 = vmatpush1.bf16.msra.mxu0 0
      %4692 = vmatprep.subr.bf16.mxu0 0
      %4693 = vmatpush1.bf16.msra.mxu0 0
      %4694 = vmatprep.subr.bf16.mxu0 0
      %4695 = vmatpush1.bf16.msra.mxu0 0
      %4696 = vmatprep.subr.bf16.mxu0 0
      %4697 = vmatpush1.bf16.msra.mxu0 0
      %4698 = vmatprep.subr.bf16.mxu0 0
      %4699 = vmatpush1.bf16.msra.mxu0 0
      %4700 = vmatprep.subr.bf16.mxu0 0
      %4701 = vmatpush1.bf16.msra.mxu0 %v4673
      %4702 = vmatprep.subr.bf16.mxu0 0
      %4703 = vmatpush1.bf16.msra.mxu0 %v4672
      %4704 = vmatprep.subr.bf16.mxu0 0
      %4705 = vmatpush2.bf16.msra.mxu0 0
      %4706 = vmatprep.subr.bf16.mxu0 0
      %4707 = vmatpush2.bf16.msra.mxu0 0
      %4708 = vmatprep.subr.bf16.mxu0 0
      %4709 = vmatpush2.bf16.msra.mxu0 0
      %4710 = vmatprep.subr.bf16.mxu0 0
      %4711 = vmatpush2.bf16.msra.mxu0 0
      %4712 = vmatprep.subr.bf16.mxu0 0
      %4713 = vmatpush2.bf16.msra.mxu0 0
      %4714 = vmatprep.subr.bf16.mxu0 0
      %4715 = vmatpush2.bf16.msra.mxu0 0
      %4716 = vmatprep.subr.bf16.mxu0 0
      %4717 = vmatpush2.bf16.msra.mxu0 0
      %4718 = vmatprep.subr.bf16.mxu0 0
      %4719 = vmatpush2.bf16.msra.mxu0 0
      %4720 = vmatprep.mubr.bf16.mxu0 0
      %4721 = vmatmul.mubr.bf16.gmra.mxu0 %v4677
      %v4722 = vpop.f32.mrf.mxu0
      %v4723 = vadd.f32 0.0, %v4722
      %v4724 = vpop.f32.mrf.mxu0
      %v4725 = vpop.f32.mrf.mxu0
      %v4726 = vadd.f32 0.0, %v4725
      %v4727 = vpop.f32.mrf.mxu0
      %4728 = vmatprep.mubr.bf16.mxu0 0
      %4729 = vmatmul.mubr.bf16.gmra.mxu0 %v4680
      %v4730 = vpop.f32.mrf.mxu0
      %v4731 = vadd.f32 0.0, %v4730
      %v4732 = vpop.f32.mrf.mxu0
      %v4733 = vpop.f32.mrf.mxu0
      %v4734 = vadd.f32 0.0, %v4733
      %v4735 = vpop.f32.mrf.mxu0
      %4736 = vmatprep.mubr.bf16.mxu0 0
      %4737 = vmatmul.mubr.bf16.gmra.mxu0 %v4683
      %v4738 = vpop.f32.mrf.mxu0
      %v4739 = vadd.f32 0.0, %v4738
      %v4740 = vpop.f32.mrf.mxu0
      %v4741 = vpop.f32.mrf.mxu0
      %v4742 = vadd.f32 0.0, %v4741
      %v4743 = vpop.f32.mrf.mxu0
      %4744 = vmatprep.mubr.bf16.mxu0 0
      %4745 = vmatmul.mubr.bf16.gmra.mxu0 %v4686
      %v4746 = vpop.f32.mrf.mxu0
      %v4747 = vadd.f32 0.0, %v4746
      %v4748 = vpop.f32.mrf.mxu0
      %v4749 = vpop.f32.mrf.mxu0
      %v4750 = vadd.f32 0.0, %v4749
      %v4751 = vpop.f32.mrf.mxu0
      %4752 = vdwg.mxu0
      %v4753 = vadd.f32 %v4611, %v4723
      %v4754 = vadd.f32 %v4612, %v4726
      %v4755 = vadd.f32 %v4613, %v4731
      %v4756 = vadd.f32 %v4614, %v4734
      %v4757 = vadd.f32 %v4615, %v4739
      %v4758 = vadd.f32 %v4616, %v4742
      %v4759 = vadd.f32 %v4617, %v4747
      %v4760 = vadd.f32 %v4618, %v4750
      %s4761 = scalar_lea.vmem %s6, 80
      %v4762 = vld [vmem:[%s4761] sm:$0xf]
      %v4763 = vld [vmem:[%s4761 + $0x4] sm:$0xf]
      %v4764 = vld [vmem:[%s4761 + $0x8] sm:$0xf]
      %v4765 = vld [vmem:[%s4761 + $0xc] sm:$0xf]
      %v4767 = vunpack.c.l.b16 %v4637
      %v4768 = vpack.c.b16 %v4654, %v4653
      %v4769 = vpack.c.b16 %v4656, %v4655
      %v4770 = vpack.c.b16 %v4658, %v4657
      %v4771 = vpack.c.b16 %v4767, %v4659
      %v4776 = vunpack.c.l.b16 %v4762
      %v4777 = vunpack.c.l.b16 %v4763
      %v4778 = vunpack.c.l.b16 %v4764
      %v4779 = vunpack.c.l.b16 %v4765
      %v4780 = vpack.c.b16 %v4777, %v4776
      %v4781 = vpack.c.b16 %v4779, %v4778
      %v4785 = vsel %vm3743, %v4768, 0
      %v4788 = vsel %vm3743, %v4769, 0
      %v4791 = vsel %vm3743, %v4770, 0
      %v4794 = vsel %vm3743, %v4771, 0
      %4796 = vmatprep.subr.bf16.mxu0 0
      %4797 = vmatpush1.bf16.msra.mxu0 0
      %4798 = vmatprep.subr.bf16.mxu0 0
      %4799 = vmatpush1.bf16.msra.mxu0 0
      %4800 = vmatprep.subr.bf16.mxu0 0
      %4801 = vmatpush1.bf16.msra.mxu0 0
      %4802 = vmatprep.subr.bf16.mxu0 0
      %4803 = vmatpush1.bf16.msra.mxu0 0
      %4804 = vmatprep.subr.bf16.mxu0 0
      %4805 = vmatpush1.bf16.msra.mxu0 0
      %4806 = vmatprep.subr.bf16.mxu0 0
      %4807 = vmatpush1.bf16.msra.mxu0 0
      %4808 = vmatprep.subr.bf16.mxu0 0
      %4809 = vmatpush1.bf16.msra.mxu0 %v4781
      %4810 = vmatprep.subr.bf16.mxu0 0
      %4811 = vmatpush1.bf16.msra.mxu0 %v4780
      %4812 = vmatprep.subr.bf16.mxu0 0
      %4813 = vmatpush2.bf16.msra.mxu0 0
      %4814 = vmatprep.subr.bf16.mxu0 0
      %4815 = vmatpush2.bf16.msra.mxu0 0
      %4816 = vmatprep.subr.bf16.mxu0 0
      %4817 = vmatpush2.bf16.msra.mxu0 0
      %4818 = vmatprep.subr.bf16.mxu0 0
      %4819 = vmatpush2.bf16.msra.mxu0 0
      %4820 = vmatprep.subr.bf16.mxu0 0
      %4821 = vmatpush2.bf16.msra.mxu0 0
      %4822 = vmatprep.subr.bf16.mxu0 0
      %4823 = vmatpush2.bf16.msra.mxu0 0
      %4824 = vmatprep.subr.bf16.mxu0 0
      %4825 = vmatpush2.bf16.msra.mxu0 0
      %4826 = vmatprep.subr.bf16.mxu0 0
      %4827 = vmatpush2.bf16.msra.mxu0 0
      %4828 = vmatprep.mubr.bf16.mxu0 0
      %4829 = vmatmul.mubr.bf16.gmra.mxu0 %v4785
      %v4830 = vpop.f32.mrf.mxu0
      %v4831 = vadd.f32 0.0, %v4830
      %v4832 = vpop.f32.mrf.mxu0
      %v4833 = vpop.f32.mrf.mxu0
      %v4834 = vadd.f32 0.0, %v4833
      %v4835 = vpop.f32.mrf.mxu0
      %4836 = vmatprep.mubr.bf16.mxu0 0
      %4837 = vmatmul.mubr.bf16.gmra.mxu0 %v4788
      %v4838 = vpop.f32.mrf.mxu0
      %v4839 = vadd.f32 0.0, %v4838
      %v4840 = vpop.f32.mrf.mxu0
      %v4841 = vpop.f32.mrf.mxu0
      %v4842 = vadd.f32 0.0, %v4841
      %v4843 = vpop.f32.mrf.mxu0
      %4844 = vmatprep.mubr.bf16.mxu0 0
      %4845 = vmatmul.mubr.bf16.gmra.mxu0 %v4791
      %v4846 = vpop.f32.mrf.mxu0
      %v4847 = vadd.f32 0.0, %v4846
      %v4848 = vpop.f32.mrf.mxu0
      %v4849 = vpop.f32.mrf.mxu0
      %v4850 = vadd.f32 0.0, %v4849
      %v4851 = vpop.f32.mrf.mxu0
      %4852 = vmatprep.mubr.bf16.mxu0 0
      %4853 = vmatmul.mubr.bf16.gmra.mxu0 %v4794
      %v4854 = vpop.f32.mrf.mxu0
      %v4855 = vadd.f32 0.0, %v4854
      %v4856 = vpop.f32.mrf.mxu0
      %v4857 = vpop.f32.mrf.mxu0
      %v4858 = vadd.f32 0.0, %v4857
      %v4859 = vpop.f32.mrf.mxu0
      %4860 = vdwg.mxu0
      %v4861 = vadd.f32 %v4753, %v4831
      %v4862 = vadd.f32 %v4754, %v4834
      %v4863 = vadd.f32 %v4755, %v4839
      %v4864 = vadd.f32 %v4756, %v4842
      %v4865 = vadd.f32 %v4757, %v4847
      %v4866 = vadd.f32 %v4758, %v4850
      %v4867 = vadd.f32 %v4759, %v4855
      %v4868 = vadd.f32 %v4760, %v4858
      %s4869 = scalar_lea.vmem %s6, 128
      %v4870 = vld [vmem:[%s4869] sm:$0xf]
      %v4871 = vld [vmem:[%s4869 + $0x4] sm:$0xf]
      %v4872 = vld [vmem:[%s4869 + $0x8] sm:$0xf]
      %v4873 = vld [vmem:[%s4869 + $0xc] sm:$0xf]
      %v4875 = vunpack.c.l.b16 %v4638
      %v4876 = vpack.c.b16 %v4875, %v4767
      %v4881 = vunpack.c.l.b16 %v4870
      %v4882 = vunpack.c.l.b16 %v4871
      %v4883 = vunpack.c.l.b16 %v4872
      %v4884 = vunpack.c.l.b16 %v4873
      %v4885 = vpack.c.b16 %v4882, %v4881
      %v4886 = vpack.c.b16 %v4884, %v4883
      %v4890 = vsel %vm3743, %v4876, 0
      %4892 = vmatprep.subr.bf16.mxu0 0
      %4893 = vmatpush1.bf16.msra.mxu0 0
      %4894 = vmatprep.subr.bf16.mxu0 0
      %4895 = vmatpush1.bf16.msra.mxu0 0
      %4896 = vmatprep.subr.bf16.mxu0 0
      %4897 = vmatpush1.bf16.msra.mxu0 0
      %4898 = vmatprep.subr.bf16.mxu0 0
      %4899 = vmatpush1.bf16.msra.mxu0 0
      %4900 = vmatprep.subr.bf16.mxu0 0
      %4901 = vmatpush1.bf16.msra.mxu0 0
      %4902 = vmatprep.subr.bf16.mxu0 0
      %4903 = vmatpush1.bf16.msra.mxu0 0
      %4904 = vmatprep.subr.bf16.mxu0 0
      %4905 = vmatpush1.bf16.msra.mxu0 %v4886
      %4906 = vmatprep.subr.bf16.mxu0 0
      %4907 = vmatpush1.bf16.msra.mxu0 %v4885
      %4908 = vmatprep.subr.bf16.mxu0 0
      %4909 = vmatpush2.bf16.msra.mxu0 0
      %4910 = vmatprep.subr.bf16.mxu0 0
      %4911 = vmatpush2.bf16.msra.mxu0 0
      %4912 = vmatprep.subr.bf16.mxu0 0
      %4913 = vmatpush2.bf16.msra.mxu0 0
      %4914 = vmatprep.subr.bf16.mxu0 0
      %4915 = vmatpush2.bf16.msra.mxu0 0
      %4916 = vmatprep.subr.bf16.mxu0 0
      %4917 = vmatpush2.bf16.msra.mxu0 0
      %4918 = vmatprep.subr.bf16.mxu0 0
      %4919 = vmatpush2.bf16.msra.mxu0 0
      %4920 = vmatprep.subr.bf16.mxu0 0
      %4921 = vmatpush2.bf16.msra.mxu0 0
      %4922 = vmatprep.subr.bf16.mxu0 0
      %4923 = vmatpush2.bf16.msra.mxu0 0
      %4924 = vmatprep.mubr.bf16.mxu0 0
      %4925 = vmatmul.mubr.bf16.gmra.mxu0 %v4680
      %v4926 = vpop.f32.mrf.mxu0
      %v4927 = vadd.f32 0.0, %v4926
      %v4928 = vpop.f32.mrf.mxu0
      %v4929 = vpop.f32.mrf.mxu0
      %v4930 = vadd.f32 0.0, %v4929
      %v4931 = vpop.f32.mrf.mxu0
      %4932 = vmatprep.mubr.bf16.mxu0 0
      %4933 = vmatmul.mubr.bf16.gmra.mxu0 %v4683
      %v4934 = vpop.f32.mrf.mxu0
      %v4935 = vadd.f32 0.0, %v4934
      %v4936 = vpop.f32.mrf.mxu0
      %v4937 = vpop.f32.mrf.mxu0
      %v4938 = vadd.f32 0.0, %v4937
      %v4939 = vpop.f32.mrf.mxu0
      %4940 = vmatprep.mubr.bf16.mxu0 0
      %4941 = vmatmul.mubr.bf16.gmra.mxu0 %v4686
      %v4942 = vpop.f32.mrf.mxu0
      %v4943 = vadd.f32 0.0, %v4942
      %v4944 = vpop.f32.mrf.mxu0
      %v4945 = vpop.f32.mrf.mxu0
      %v4946 = vadd.f32 0.0, %v4945
      %v4947 = vpop.f32.mrf.mxu0
      %4948 = vmatprep.mubr.bf16.mxu0 0
      %4949 = vmatmul.mubr.bf16.gmra.mxu0 %v4890
      %v4950 = vpop.f32.mrf.mxu0
      %v4951 = vadd.f32 0.0, %v4950
      %v4952 = vpop.f32.mrf.mxu0
      %v4953 = vpop.f32.mrf.mxu0
      %v4954 = vadd.f32 0.0, %v4953
      %v4955 = vpop.f32.mrf.mxu0
      %4956 = vdwg.mxu0
      %v4957 = vadd.f32 %v4861, %v4927
      %v4958 = vadd.f32 %v4862, %v4930
      %v4959 = vadd.f32 %v4863, %v4935
      %v4960 = vadd.f32 %v4864, %v4938
      %v4961 = vadd.f32 %v4865, %v4943
      %v4962 = vadd.f32 %v4866, %v4946
      %v4963 = vadd.f32 %v4867, %v4951
      %v4964 = vadd.f32 %v4868, %v4954
      %v4965 = vld [vmem:[%s7] sm:$0x1]
      %v4967 = vlaneseq
      %v4968 = vshrl.u32 %v4967, 7
      %v4969 = vsub.s32 0, %v4968
      %v4970 = vrot.slane %v4965, %v4969
      %v4972 = vadd.f32 %v4957, %v4970
      %v4973 = vadd.f32 %v4958, %v4970
      %v4974 = vadd.f32 %v4959, %v4970
      %v4975 = vadd.f32 %v4960, %v4970
      %v4976 = vadd.f32 %v4961, %v4970
      %v4977 = vadd.f32 %v4962, %v4970
      %v4978 = vadd.f32 %v4963, %v4970
      %v4979 = vadd.f32 %v4964, %v4970
      %v4980 = vmax.f32 %v4972, 0.0
      %v4981 = vmax.f32 %v4973, 0.0
      %v4982 = vmax.f32 %v4974, 0.0
      %v4983 = vmax.f32 %v4975, 0.0
      %v4984 = vmax.f32 %v4976, 0.0
      %v4985 = vmax.f32 %v4977, 0.0
      %v4986 = vmax.f32 %v4978, 0.0
      %v4987 = vmax.f32 %v4979, 0.0
      %v4988 = vpack.c.bf16 %v4981, %v4980
      %v4989 = vpack.c.bf16 %v4983, %v4982
      %v4990 = vpack.c.bf16 %v4985, %v4984
      %v4991 = vpack.c.bf16 %v4987, %v4986
      %v4992 = vld [vmem:[%s8] sm:$0xff]
      %v4993 = vld [vmem:[%s8 + $0x8] sm:$0xff]
      %v4994 = vld [vmem:[%s8 + $0x10] sm:$0xff]
      %v4995 = vld [vmem:[%s8 + $0x18] sm:$0xff]
      %v4996 = vld [vmem:[%s8 + $0x20] sm:$0xff]
      %v4997 = vld [vmem:[%s8 + $0x28] sm:$0xff]
      %v4998 = vld [vmem:[%s8 + $0x30] sm:$0xff]
      %v4999 = vld [vmem:[%s8 + $0x38] sm:$0xff]
      %5000 = vxpose.xlu0.c.b16.start [1/8] %v4988, 128
      %5001 = vxpose.xlu0.c.b16.cont [2/8] %v4989, 128
      %5002 = vxpose.xlu0.c.b16.cont [3/8] %v4990, 128
      %5003 = vxpose.xlu0.c.b16.cont [4/8] %v4991, 128
      %5004 = vxpose.xlu0.c.b16.cont [5/8] 0, 128
      %5005 = vxpose.xlu0.c.b16.cont [6/8] 0, 128
      %5006 = vxpose.xlu0.c.b16.cont [7/8] 0, 128
      %5007 = vxpose.xlu0.c.b16.end [8/8] 0, 128
      %v5008 = vpop.trf.xlu0
      %v5009 = vpop.trf.xlu0
      %v5010 = vpop.trf.xlu0
      %v5011 = vpop.trf.xlu0
      %v5012 = vpop.trf.xlu0
      %v5013 = vpop.trf.xlu0
      %v5014 = vpop.trf.xlu0
      %v5015 = vpop.trf.xlu0
      %v5024 = vunpack.c.l.b16 %v4992
      %v5025 = vunpack.c.h.b16 %v4992
      %v5026 = vunpack.c.l.b16 %v4993
      %v5027 = vunpack.c.h.b16 %v4993
      %v5028 = vunpack.c.l.b16 %v4994
      %v5029 = vunpack.c.h.b16 %v4994
      %v5030 = vunpack.c.l.b16 %v4995
      %v5031 = vunpack.c.h.b16 %v4995
      %v5032 = vunpack.c.l.b16 %v4996
      %v5033 = vunpack.c.h.b16 %v4996
      %v5034 = vunpack.c.l.b16 %v4997
      %v5035 = vunpack.c.h.b16 %v4997
      %v5036 = vunpack.c.l.b16 %v4998
      %v5037 = vunpack.c.h.b16 %v4998
      %v5038 = vunpack.c.l.b16 %v4999
      %v5039 = vunpack.c.h.b16 %v4999
      %v5040 = vpack.c.b16 %v5026, %v5024
      %v5041 = vpack.c.b16 %v5027, %v5025
      %v5042 = vpack.c.b16 %v5030, %v5028
      %v5043 = vpack.c.b16 %v5031, %v5029
      %v5044 = vpack.c.b16 %v5034, %v5032
      %v5045 = vpack.c.b16 %v5035, %v5033
      %v5046 = vpack.c.b16 %v5038, %v5036
      %v5047 = vpack.c.b16 %v5039, %v5037
      %vm5056 = vcmask 523264
      %v5058 = vsel %vm5056, %v5008, 0
      %5060 = vmatprep.subr.bf16.mxu0 0
      %5061 = vmatpush1.bf16.msra.mxu0 0
      %5062 = vmatprep.subr.bf16.mxu0 0
      %5063 = vmatpush1.bf16.msra.mxu0 0
      %5064 = vmatprep.subr.bf16.mxu0 0
      %5065 = vmatpush1.bf16.msra.mxu0 0
      %5066 = vmatprep.subr.bf16.mxu0 0
      %5067 = vmatpush1.bf16.msra.mxu0 0
      %5068 = vmatprep.subr.bf16.mxu0 %v5047
      %5069 = vmatpush1.bf16.msra.mxu0 %v5046
      %5070 = vmatprep.subr.bf16.mxu0 %v5045
      %5071 = vmatpush1.bf16.msra.mxu0 %v5044
      %5072 = vmatprep.subr.bf16.mxu0 %v5043
      %5073 = vmatpush1.bf16.msra.mxu0 %v5042
      %5074 = vmatprep.subr.bf16.mxu0 %v5041
      %5075 = vmatpush1.bf16.msra.mxu0 %v5040
      %5076 = vmatprep.subr.bf16.mxu0 0
      %5077 = vmatpush2.bf16.msra.mxu0 0
      %5078 = vmatprep.subr.bf16.mxu0 0
      %5079 = vmatpush2.bf16.msra.mxu0 0
      %5080 = vmatprep.subr.bf16.mxu0 0
      %5081 = vmatpush2.bf16.msra.mxu0 0
      %5082 = vmatprep.subr.bf16.mxu0 0
      %5083 = vmatpush2.bf16.msra.mxu0 0
      %5084 = vmatprep.subr.bf16.mxu0 0
      %5085 = vmatpush2.bf16.msra.mxu0 0
      %5086 = vmatprep.subr.bf16.mxu0 0
      %5087 = vmatpush2.bf16.msra.mxu0 0
      %5088 = vmatprep.subr.bf16.mxu0 0
      %5089 = vmatpush2.bf16.msra.mxu0 0
      %5090 = vmatprep.subr.bf16.mxu0 0
      %5091 = vmatpush2.bf16.msra.mxu0 0
      %5092 = vmatprep.mubr.bf16.mxu0 0
      %5093 = vmatmul.mubr.bf16.gmra.mxu0 %v5058
      %v5094 = vpop.f32.mrf.mxu0
      %v5095 = vadd.f32 0.0, %v5094
      %v5096 = vpop.f32.mrf.mxu0
      %v5097 = vadd.f32 0.0, %v5096
      %v5098 = vpop.f32.mrf.mxu0
      %v5099 = vadd.f32 0.0, %v5098
      %v5100 = vpop.f32.mrf.mxu0
      %v5101 = vadd.f32 0.0, %v5100
      %5102 = vdwg.mxu0
      %v5103 = vld [vmem:[%s9] sm:$0x3]
      %v5104 = vpack.c.bf16 %v5099, %v5095
      %v5105 = vpack.c.bf16 %v5101, %v5097
      %v5106 = vld [vmem:[%s10] sm:$0xf]
      %5108 = vset.pattern.permute.xlu0 0
      %5109 = vperm.xlu0 %5108, %v5106
      %v5110 = vpop.permute.xlu0 %5109
      %v5113 = vsel %vm2615, %v5103, 0
      %5115 = vmatprep.subr.bf16.mxu0 0
      %5116 = vmatpush1.bf16.msra.mxu0 0
      %5117 = vmatprep.subr.bf16.mxu0 0
      %5118 = vmatpush1.bf16.msra.mxu0 0
      %5119 = vmatprep.subr.bf16.mxu0 0
      %5120 = vmatpush1.bf16.msra.mxu0 0
      %5121 = vmatprep.subr.bf16.mxu0 0
      %5122 = vmatpush1.bf16.msra.mxu0 0
      %5123 = vmatprep.subr.bf16.mxu0 0
      %5124 = vmatpush1.bf16.msra.mxu0 0
      %5125 = vmatprep.subr.bf16.mxu0 0
      %5126 = vmatpush1.bf16.msra.mxu0 0
      %5127 = vmatprep.subr.bf16.mxu0 0
      %5128 = vmatpush1.bf16.msra.mxu0 0
      %5129 = vmatprep.subr.bf16.mxu0 %v5105
      %5130 = vmatpush1.bf16.msra.mxu0 %v5104
      %5131 = vmatprep.subr.bf16.mxu0 0
      %5132 = vmatpush2.bf16.msra.mxu0 0
      %5133 = vmatprep.subr.bf16.mxu0 0
      %5134 = vmatpush2.bf16.msra.mxu0 0
      %5135 = vmatprep.subr.bf16.mxu0 0
      %5136 = vmatpush2.bf16.msra.mxu0 0
      %5137 = vmatprep.subr.bf16.mxu0 0
      %5138 = vmatpush2.bf16.msra.mxu0 0
      %5139 = vmatprep.subr.bf16.mxu0 0
      %5140 = vmatpush2.bf16.msra.mxu0 0
      %5141 = vmatprep.subr.bf16.mxu0 0
      %5142 = vmatpush2.bf16.msra.mxu0 0
      %5143 = vmatprep.subr.bf16.mxu0 0
      %5144 = vmatpush2.bf16.msra.mxu0 0
      %5145 = vmatprep.subr.bf16.mxu0 0
      %5146 = vmatpush2.bf16.msra.mxu0 0
      %5147 = vmatprep.mubr.bf16.mxu0 0
      %5148 = vmatmul.mubr.bf16.gmra.mxu0 %v5113
      %v5149 = vpop.f32.mrf.mxu0
      %v5150 = vadd.f32 %v5110, %v5149
      %v5151 = vpop.f32.mrf.mxu0
      %v5152 = vadd.f32 %v5110, %v5151
      %v5153 = vpop.f32.mrf.mxu0
      %v5154 = vpop.f32.mrf.mxu0
      %5155 = vdwg.mxu0
      %v5158 = vcombine.low %v5150, %v5152
      %5160 = vst [vmem:[%s386] sm:$0xff] %v5158
      %p5161 = scmp.lt.s32.totalorder %s22, 1
      %s5162 = scalar_select %p5161, %s22, 1
      %s5163 = smul.addr %s5162, 2
      %s5164 = smul.addr %s5163, 4
      %s5165 = scalar_lea.vmem %s11, %s5164
      // Predicated region
      $region65: #{simple_fcn_forward.1} parent=63 // pred_check
        %p5166 = pneg %p276
      $region66: #{simple_fcn_forward.1} parent=63 // pred_check_branch
        %5168 = sbr.rel (%p5166) target = $region68
      $region67: #{simple_fcn_forward.1} parent=63 // pred_region
        _
      $region68: #{simple_fcn_forward.1} parent=63 // pred_fallthru
        _
    $region64: #{simple_fcn_forward.1} parent=5 // pred_fallthru
      _
    %p5169 = scmp.le.s32.totalorder 2, %s17
    // Predicated region
    $region69: #{simple_fcn_forward.1} parent=5 // pred_check
      %p5170 = pneg %p5169
    $region70: #{simple_fcn_forward.1} parent=5 // pred_check_branch
      %5172 = sbr.rel (%p5170) target = $region72
    $region71: #{simple_fcn_forward.1} parent=5 // pred_region
      %s5173 = ssub.s32 %s17, 2
      // Predicated region
      $region73: #{simple_fcn_forward.1} parent=71 // pred_check
        %p5174 = pneg %p282
      $region74: #{simple_fcn_forward.1} parent=71 // pred_check_branch
        %5176 = sbr.rel (%p5174) target = $region76
      $region75: #{simple_fcn_forward.1} parent=71 // pred_region
        %p5177 = scmp.lt.s32.totalorder %s23, 1
        %s5178 = scalar_select %p5177, %s23, 1
        %s5179 = smul.addr %s5178, 2
        %s5180 = smul.addr %s5179, 4
        %s5181 = scalar_lea.vmem %s11, %s5180
      $region76: #{simple_fcn_forward.1} parent=71 // pred_fallthru
        _
    $region72: #{simple_fcn_forward.1} parent=5 // pred_fallthru
      _
  $region6: #{simple_fcn_forward.1} parent=0 // loop_footer
    %s21 = sadd.s32 1, %s17
  $region7: #{simple_fcn_forward.1} parent=0 // loop_footer_branch
    %16 = sbr.rel target = $region3
  $region8: #{simple_fcn_forward.1} parent=0 // loop_exit
    _

</llo_original>
